<compile_context>
chip_gen: v7x
topology: tpu7x:2x2x1
jax: 0.10.0
libtpu: 0.0.40
codegen_flags: <defaults>
</compile_context>

<pallas_src>
import jax
import jax.numpy as jnp
from jax import lax
from jax.experimental import pallas as pl
from jax.experimental.pallas import tpu as pltpu

# ----------------------------- model config (small, TPU-tile friendly) -----------------
B, S = 2, 8              # batch, sequence length
H = 128                  # hidden size (stand-in for targetDimension=512)
NH, DH = 2, 64           # attention heads, head dim
FF = 256                 # FFN intermediate size
NLAYERS = 2
VOCAB, MAXPOS, NTYPES = 64, 16, 2
TYPE_ROWS = 8            # type-embedding table padded to 8 rows (tile-friendly one-hot matmul)
NUM_LABELS = 7           # classifier head exists but is unused in forward() (as in PyTorch)
DR_RATE = 0.4            # TODO(synk): dropout is defined in __init__ but never applied in forward()

MM_DTYPE = jnp.bfloat16  # matmul operand dtype (f32 accumulation)


# ----------------------------- in-kernel helpers ----------------------------------------
def _mm(a, w):
    """bf16 x bf16 matmul with f32 accumulation (weights already stored in bf16)."""
    return jnp.dot(a.astype(MM_DTYPE), w, preferred_element_type=jnp.float32)


def _layernorm(x, g, b, eps=1e-12):
    xf = x.astype(jnp.float32)
    mu = jnp.mean(xf, axis=-1, keepdims=True)
    var = jnp.mean(jnp.square(xf - mu), axis=-1, keepdims=True)
    return (xf - mu) * lax.rsqrt(var + eps) * g + b


def _onehot_gather(idx_col, table, n):
    """Embedding gather as a one-hot matmul on the MXU.

    idx_col: (S, 1) int32, table: (n, H) f32  ->  (S, H) f32
    """
    iota = lax.broadcasted_iota(jnp.int32, (idx_col.shape[0], n), 1)
    onehot = (iota == idx_col).astype(jnp.float32)
    return jnp.dot(onehot, table, preferred_element_type=jnp.float32)


# ----------------------------- fused encoder kernel (one batch row per grid step) -------
def _encoder_kernel(ids_ref, type_ref, mask_ref,
                    wemb_ref, pemb_ref, temb_ref, eg_ref, eb_ref,
                    wqkv_ref, bqkv_ref, wo_ref, bo_ref, ln1g_ref, ln1b_ref,
                    w1_ref, b1_ref, w2_ref, b2_ref, ln2g_ref, ln2b_ref,
                    poolw_ref, poolb_ref,
                    seq_ref, pool_ref):
    scale = 1.0 / float(DH) ** 0.5

    # ---- embeddings: one-hot gathers + add + LN, entirely in VMEM ----
    ids = ids_ref[...]                                   # (S, 1) int32
    types = type_ref[...]                                # (S, 1) int32
    x = (_onehot_gather(ids, wemb_ref[...], VOCAB)
         + pemb_ref[...][:S, :]
         + _onehot_gather(types, temb_ref[...], TYPE_ROWS))          # (S, H) f32
    x = _layernorm(x, eg_ref[...], eb_ref[...])

    # additive attention mask, broadcast over query rows
    madd = (1.0 - mask_ref[...].astype(jnp.float32)) * (-1e9)        # (1, S)

    for l in range(NLAYERS):                             # static unroll over layers
        # fused QKV projection: one (S,H) @ (H,3H) matmul
        qkv = _mm(x, wqkv_ref[l]) + bqkv_ref[l]                      # (S, 3H) f32

        # per-head attention; merge-heads + output projection fused as
        # ctx @ Wo == sum_h ctx_h @ Wo[h]  (keeps every store 128-lane dense)
        attn = jnp.zeros((S, H), jnp.float32)
        for h in range(NH):
            q_h = qkv[:, h * DH:(h + 1) * DH]
            k_h = qkv[:, H + h * DH:H + (h + 1) * DH]
            v_h = qkv[:, 2 * H + h * DH:2 * H + (h + 1) * DH]
            s = lax.dot_general(q_h, k_h, (((1,), (1,)), ((), ())),
                                preferred_element_type=jnp.float32) * scale
            p = jax.nn.softmax(s + madd, axis=-1)                    # (S, S)
            ctx_h = jnp.dot(p, v_h, preferred_element_type=jnp.float32)  # (S, DH)
            attn = attn + _mm(ctx_h, wo_ref[l, h])                   # (S, H)
        attn = attn + bo_ref[l]

        # residual + LN fused right after the projection
        x = _layernorm(x + attn, ln1g_ref[l], ln1b_ref[l])

        # feed-forward (gelu) + residual + LN, all fused
        # TODO(synk): HF/KoBERT uses exact (erf) GELU; tanh approximation differs ~1e-3.
        ffn = jax.nn.gelu(_mm(x, w1_ref[l]) + b1_ref[l], approximate=True)
        ffn = _mm(ffn, w2_ref[l]) + b2_ref[l]
        x = _layernorm(x + ffn, ln2g_ref[l], ln2b_ref[l])

    seq_ref[...] = x.astype(seq_ref.dtype)

    # pooler: tanh(cls @ Wp + bp), fused into the kernel tail (EUP slot is free)
    cls = x[0:1, :]
    pooled = jnp.tanh(_mm(cls, poolw_ref[...]) + poolb_ref[...])
    pool_ref[...] = pooled.astype(pool_ref.dtype)


# ----------------------------- forward pass (BERTClassifier.forward) --------------------
def bert_classifier_forward(params, input_ids, attention_mask, token_type_ids):
    """Returns (sequence_output, pooled_output) -- the bert(...) output ("pooler")."""
    Bq, Sq = input_ids.shape
    assert Sq == S

    # free metadata reshapes so the kernel gets TPU-friendly layouts:
    #   ids/types along sublanes (S,1) for one-hot vs lane iota; mask along lanes (1,S)
    ids3 = input_ids.astype(jnp.int32).reshape(Bq, Sq, 1)
    types3 = token_type_ids.astype(jnp.int32).reshape(Bq, Sq, 1)
    mask3 = attention_mask.astype(jnp.int32).reshape(Bq, 1, Sq)

    def const_spec(arr):
        return pl.BlockSpec(tuple(arr.shape), lambda b, nd=arr.ndim: (0,) * nd)

    in_specs = [
        pl.BlockSpec((pl.Squeezed(), Sq, 1), lambda b: (b, 0, 0)),   # input_ids
        pl.BlockSpec((pl.Squeezed(), Sq, 1), lambda b: (b, 0, 0)),   # token_type_ids
        pl.BlockSpec((pl.Squeezed(), 1, Sq), lambda b: (b, 0, 0)),   # attention_mask
        const_spec(params["word_emb"]), const_spec(params["pos_emb"]),
        const_spec(params["type_emb"]),
        const_spec(params["emb_ln_g"]), const_spec(params["emb_ln_b"]),
        const_spec(params["wqkv"]), const_spec(params["bqkv"]),
        const_spec(params["wo"]), const_spec(params["bo"]),
        const_spec(params["ln1_g"]), const_spec(params["ln1_b"]),
        const_spec(params["w1"]), const_spec(params["b1"]),
        const_spec(params["w2"]), const_spec(params["b2"]),
        const_spec(params["ln2_g"]), const_spec(params["ln2_b"]),
        const_spec(params["pool_w"]), const_spec(params["pool_b"]),
    ]
    out_specs = [
        pl.BlockSpec((pl.Squeezed(), Sq, H), lambda b: (b, 0, 0)),
        pl.BlockSpec((pl.Squeezed(), 1, H), lambda b: (b, 0, 0)),
    ]

    seq_out, pooled = pl.pallas_call(
        _encoder_kernel,
        out_shape=(jax.ShapeDtypeStruct((Bq, Sq, H), jnp.float32),
                   jax.ShapeDtypeStruct((Bq, 1, H), jnp.float32)),
        grid=(Bq,),
        in_specs=in_specs,
        out_specs=out_specs,
        compiler_params=pltpu.CompilerParams(
            dimension_semantics=("parallel",)),   # v7x: one batch row per TensorCore
    )(ids3, types3, mask3,
      params["word_emb"], params["pos_emb"], params["type_emb"],
      params["emb_ln_g"], params["emb_ln_b"],
      params["wqkv"], params["bqkv"], params["wo"], params["bo"],
      params["ln1_g"], params["ln1_b"],
      params["w1"], params["b1"], params["w2"], params["b2"],
      params["ln2_g"], params["ln2_b"],
      params["pool_w"], params["pool_b"])

    # forward() returns the bert output ("pooler"); classifier/dropout are NOT applied.
    return seq_out, pooled.reshape(Bq, H)


# ----------------------------- deterministic parameter init (pre-packed) ----------------
def init_params(key):
    keys = iter(jax.random.split(key, 32))

    def nrm(shape, dtype=jnp.float32):
        return (jax.random.normal(next(keys), shape, jnp.float32) * 0.02).astype(dtype)

    zeros = lambda shape: jnp.zeros(shape, jnp.float32)
    ones = lambda shape: jnp.ones(shape, jnp.float32)

    # type-embedding table padded to TYPE_ROWS rows (only first NTYPES rows are used)
    type_emb = jnp.zeros((TYPE_ROWS, H), jnp.float32).at[:NTYPES].set(
        jax.random.normal(next(keys), (NTYPES, H), jnp.float32) * 0.02)

    params = {
        "word_emb": nrm((VOCAB, H)),
        "pos_emb": nrm((MAXPOS, H)),
        "type_emb": type_emb,
        "emb_ln_g": ones((1, H)), "emb_ln_b": zeros((1, H)),
        # per-layer weights pre-stacked along a leading layer axis; Q|K|V fused into one
        # [H,3H] matmul weight; Wo pre-split per head [NH,DH,H]; matmul weights in bf16.
        "wqkv": nrm((NLAYERS, H, 3 * H), MM_DTYPE),
        "bqkv": zeros((NLAYERS, 1, 3 * H)),
        "wo": nrm((NLAYERS, NH, DH, H), MM_DTYPE),
        "bo": zeros((NLAYERS, 1, H)),
        "ln1_g": ones((NLAYERS, 1, H)), "ln1_b": zeros((NLAYERS, 1, H)),
        "w1": nrm((NLAYERS, H, FF), MM_DTYPE),
        "b1": zeros((NLAYERS, 1, FF)),
        "w2": nrm((NLAYERS, FF, H), MM_DTYPE),
        "b2": zeros((NLAYERS, 1, H)),
        "ln2_g": ones((NLAYERS, 1, H)), "ln2_b": zeros((NLAYERS, 1, H)),
        "pool_w": nrm((H, H), MM_DTYPE),
        "pool_b": zeros((1, H)),
        # classifier head: present in __init__, NOT used in forward() (matches PyTorch)
        "cls_w": nrm((H, NUM_LABELS)),
        "cls_b": zeros((NUM_LABELS,)),
    }
    return params


# ----------------------------- driver ----------------------------------------------------
if __name__ == "__main__":
    key = jax.random.PRNGKey(0)
    k_params, k_ids, k_types = jax.random.split(key, 3)

    params = init_params(k_params)
    input_ids = jax.random.randint(k_ids, (B, S), 0, VOCAB, dtype=jnp.int32)
    token_type_ids = jax.random.randint(k_types, (B, S), 0, NTYPES, dtype=jnp.int32)
    # second sequence has 2 padding positions at the end
    attention_mask = jnp.array([[1] * S, [1] * (S - 2) + [0, 0]], dtype=jnp.int32)

    fwd = jax.jit(bert_classifier_forward)
    seq_out, pooled = fwd(params, input_ids, attention_mask, token_type_ids)
    jax.block_until_ready((seq_out, pooled))

    assert seq_out.shape == (B, S, H) and pooled.shape == (B, H)
    assert jnp.all(jnp.isfinite(seq_out)) and jnp.all(jnp.isfinite(pooled))
    print("KERNEL_OK")
</pallas_src>

<mosaic_0001>
module attributes {stable_mosaic.version = 11 : i64} {
  func.func @_encoder_kernel(%arg0: i32, %arg1: memref<1x8x1xi32, #tpu.memory_space<vmem>>, %arg2: memref<1x8x1xi32, #tpu.memory_space<vmem>>, %arg3: memref<1x1x8xi32, #tpu.memory_space<vmem>>, %arg4: memref<64x128xf32, #tpu.memory_space<vmem>>, %arg5: memref<16x128xf32, #tpu.memory_space<vmem>>, %arg6: memref<8x128xf32, #tpu.memory_space<vmem>>, %arg7: memref<1x128xf32, #tpu.memory_space<vmem>>, %arg8: memref<1x128xf32, #tpu.memory_space<vmem>>, %arg9: memref<2x128x384xbf16, #tpu.memory_space<vmem>>, %arg10: memref<2x1x384xf32, #tpu.memory_space<vmem>>, %arg11: memref<2x2x64x128xbf16, #tpu.memory_space<vmem>>, %arg12: memref<2x1x128xf32, #tpu.memory_space<vmem>>, %arg13: memref<2x1x128xf32, #tpu.memory_space<vmem>>, %arg14: memref<2x1x128xf32, #tpu.memory_space<vmem>>, %arg15: memref<2x128x256xbf16, #tpu.memory_space<vmem>>, %arg16: memref<2x1x256xf32, #tpu.memory_space<vmem>>, %arg17: memref<2x256x128xbf16, #tpu.memory_space<vmem>>, %arg18: memref<2x1x128xf32, #tpu.memory_space<vmem>>, %arg19: memref<2x1x128xf32, #tpu.memory_space<vmem>>, %arg20: memref<2x1x128xf32, #tpu.memory_space<vmem>>, %arg21: memref<128x128xbf16, #tpu.memory_space<vmem>>, %arg22: memref<1x128xf32, #tpu.memory_space<vmem>>, %arg23: memref<1x8x128xf32, #tpu.memory_space<vmem>>, %arg24: memref<1x1x128xf32, #tpu.memory_space<vmem>>) attributes {dimension_semantics = [#tpu.dimension_semantics<parallel>], iteration_bounds = array<i64: 2>, scalar_prefetch = 0 : i64, scratch_operands = 0 : i64, tpu.core_type = #tpu.core_type<tc>, window_params = [{transform_indices = @transform_0, window_bounds = array<i64: 1, 8, 1>}, {transform_indices = @transform_1, window_bounds = array<i64: 1, 8, 1>}, {transform_indices = @transform_2, window_bounds = array<i64: 1, 1, 8>}, {pipeline_mode = #tpu.pipeline_mode<synchronous>, transform_indices = @transform_3, window_bounds = array<i64: 64, 128>}, {pipeline_mode = #tpu.pipeline_mode<synchronous>, transform_indices = @transform_4, window_bounds = array<i64: 16, 128>}, {pipeline_mode = #tpu.pipeline_mode<synchronous>, transform_indices = @transform_5, window_bounds = array<i64: 8, 128>}, {pipeline_mode = #tpu.pipeline_mode<synchronous>, transform_indices = @transform_6, window_bounds = array<i64: 1, 128>}, {pipeline_mode = #tpu.pipeline_mode<synchronous>, transform_indices = @transform_7, window_bounds = array<i64: 1, 128>}, {pipeline_mode = #tpu.pipeline_mode<synchronous>, transform_indices = @transform_8, window_bounds = array<i64: 2, 128, 384>}, {pipeline_mode = #tpu.pipeline_mode<synchronous>, transform_indices = @transform_9, window_bounds = array<i64: 2, 1, 384>}, {pipeline_mode = #tpu.pipeline_mode<synchronous>, transform_indices = @transform_10, window_bounds = array<i64: 2, 2, 64, 128>}, {pipeline_mode = #tpu.pipeline_mode<synchronous>, transform_indices = @transform_11, window_bounds = array<i64: 2, 1, 128>}, {pipeline_mode = #tpu.pipeline_mode<synchronous>, transform_indices = @transform_12, window_bounds = array<i64: 2, 1, 128>}, {pipeline_mode = #tpu.pipeline_mode<synchronous>, transform_indices = @transform_13, window_bounds = array<i64: 2, 1, 128>}, {pipeline_mode = #tpu.pipeline_mode<synchronous>, transform_indices = @transform_14, window_bounds = array<i64: 2, 128, 256>}, {pipeline_mode = #tpu.pipeline_mode<synchronous>, transform_indices = @transform_15, window_bounds = array<i64: 2, 1, 256>}, {pipeline_mode = #tpu.pipeline_mode<synchronous>, transform_indices = @transform_16, window_bounds = array<i64: 2, 256, 128>}, {pipeline_mode = #tpu.pipeline_mode<synchronous>, transform_indices = @transform_17, window_bounds = array<i64: 2, 1, 128>}, {pipeline_mode = #tpu.pipeline_mode<synchronous>, transform_indices = @transform_18, window_bounds = array<i64: 2, 1, 128>}, {pipeline_mode = #tpu.pipeline_mode<synchronous>, transform_indices = @transform_19, window_bounds = array<i64: 2, 1, 128>}, {pipeline_mode = #tpu.pipeline_mode<synchronous>, transform_indices = @transform_20, window_bounds = array<i64: 128, 128>}, {pipeline_mode = #tpu.pipeline_mode<synchronous>, transform_indices = @transform_21, window_bounds = array<i64: 1, 128>}, {transform_indices = @transform_22, window_bounds = array<i64: 1, 8, 128>}, {transform_indices = @transform_23, window_bounds = array<i64: 1, 1, 128>}]} {
    %c0 = arith.constant 0 : index
    %c0_0 = arith.constant 0 : index
    %c0_1 = arith.constant 0 : index
    %0 = vector.load %arg1[%c0, %c0_0, %c0_1] : memref<1x8x1xi32, #tpu.memory_space<vmem>>, vector<1x8x1xi32>
    %1 = vector.shape_cast %0 : vector<1x8x1xi32> to vector<8x1xi32>
    %c0_2 = arith.constant 0 : index
    %c0_3 = arith.constant 0 : index
    %c0_4 = arith.constant 0 : index
    %2 = vector.load %arg2[%c0_2, %c0_3, %c0_4] : memref<1x8x1xi32, #tpu.memory_space<vmem>>, vector<1x8x1xi32>
    %3 = vector.shape_cast %2 : vector<1x8x1xi32> to vector<8x1xi32>
    %c0_5 = arith.constant 0 : index
    %c0_6 = arith.constant 0 : index
    %4 = vector.load %arg4[%c0_5, %c0_6] : memref<64x128xf32, #tpu.memory_space<vmem>>, vector<64x128xf32>
    %5 = tpu.iota {dimensions = array<i32: 1>} : vector<8x64xi32>
    %6 = vector.broadcast %1 : vector<8x1xi32> to vector<8x64xi32>
    %7 = arith.cmpi eq, %5, %6 : vector<8x64xi32>
    %8 = arith.extui %7 : vector<8x64xi1> to vector<8x64xi32>
    %9 = arith.sitofp %8 : vector<8x64xi32> to vector<8x64xf32>
    %cst = arith.constant dense<0.000000e+00> : vector<8x128xf32>
    %10 = tpu.matmul %9, %4, %cst {dimension_numbers = #tpu.dot_dimension_numbers<[1], [0], [0], [1], [0, 0, 1, 1], [], []>} : vector<8x64xf32>, vector<64x128xf32>, vector<8x128xf32> -> vector<8x128xf32>
    %c0_7 = arith.constant 0 : index
    %c0_8 = arith.constant 0 : index
    %11 = vector.load %arg5[%c0_7, %c0_8] : memref<16x128xf32, #tpu.memory_space<vmem>>, vector<16x128xf32>
    %12 = vector.extract_strided_slice %11 {offsets = [0, 0], sizes = [8, 128], strides = [1, 1]} : vector<16x128xf32> to vector<8x128xf32>
    %13 = arith.addf %10, %12 : vector<8x128xf32>
    %c0_9 = arith.constant 0 : index
    %c0_10 = arith.constant 0 : index
    %14 = vector.load %arg6[%c0_9, %c0_10] : memref<8x128xf32, #tpu.memory_space<vmem>>, vector<8x128xf32>
    %15 = tpu.iota {dimensions = array<i32: 1>} : vector<8x8xi32>
    %16 = vector.broadcast %3 : vector<8x1xi32> to vector<8x8xi32>
    %17 = arith.cmpi eq, %15, %16 : vector<8x8xi32>
    %18 = arith.extui %17 : vector<8x8xi1> to vector<8x8xi32>
    %19 = arith.sitofp %18 : vector<8x8xi32> to vector<8x8xf32>
    %cst_11 = arith.constant dense<0.000000e+00> : vector<8x128xf32>
    %20 = tpu.matmul %19, %14, %cst_11 {dimension_numbers = #tpu.dot_dimension_numbers<[1], [0], [0], [1], [0, 0, 1, 1], [], []>} : vector<8x8xf32>, vector<8x128xf32>, vector<8x128xf32> -> vector<8x128xf32>
    %21 = arith.addf %13, %20 : vector<8x128xf32>
    %c0_12 = arith.constant 0 : index
    %c0_13 = arith.constant 0 : index
    %22 = vector.load %arg7[%c0_12, %c0_13] : memref<1x128xf32, #tpu.memory_space<vmem>>, vector<1x128xf32>
    %c0_14 = arith.constant 0 : index
    %c0_15 = arith.constant 0 : index
    %23 = vector.load %arg8[%c0_14, %c0_15] : memref<1x128xf32, #tpu.memory_space<vmem>>, vector<1x128xf32>
    %cst_16 = arith.constant dense<0.000000e+00> : vector<8xf32>
    %24 = vector.multi_reduction <add>, %21, %cst_16 [1] : vector<8x128xf32> to vector<8xf32>
    %25 = vector.shape_cast %24 : vector<8xf32> to vector<8x1xf32>
    %cst_17 = arith.constant 1.280000e+02 : f32
    %26 = vector.broadcast %cst_17 : f32 to vector<8x1xf32>
    %27 = arith.divf %25, %26 : vector<8x1xf32>
    %28 = vector.broadcast %27 : vector<8x1xf32> to vector<8x128xf32>
    %29 = arith.subf %21, %28 : vector<8x128xf32>
    %30 = arith.mulf %29, %29 : vector<8x128xf32>
    %cst_18 = arith.constant dense<0.000000e+00> : vector<8xf32>
    %31 = vector.multi_reduction <add>, %30, %cst_18 [1] : vector<8x128xf32> to vector<8xf32>
    %32 = vector.shape_cast %31 : vector<8xf32> to vector<8x1xf32>
    %cst_19 = arith.constant 1.280000e+02 : f32
    %33 = vector.broadcast %cst_19 : f32 to vector<8x1xf32>
    %34 = arith.divf %32, %33 : vector<8x1xf32>
    %35 = vector.broadcast %27 : vector<8x1xf32> to vector<8x128xf32>
    %36 = arith.subf %21, %35 : vector<8x128xf32>
    %cst_20 = arith.constant 9.99999996E-13 : f32
    %37 = vector.broadcast %cst_20 : f32 to vector<8x1xf32>
    %38 = arith.addf %34, %37 : vector<8x1xf32>
    %39 = math.rsqrt %38 : vector<8x1xf32>
    %40 = vector.broadcast %39 : vector<8x1xf32> to vector<8x128xf32>
    %41 = arith.mulf %36, %40 : vector<8x128xf32>
    %42 = vector.broadcast %22 : vector<1x128xf32> to vector<8x128xf32>
    %43 = arith.mulf %41, %42 : vector<8x128xf32>
    %44 = vector.broadcast %23 : vector<1x128xf32> to vector<8x128xf32>
    %45 = arith.addf %43, %44 : vector<8x128xf32>
    %c0_21 = arith.constant 0 : index
    %c0_22 = arith.constant 0 : index
    %c0_23 = arith.constant 0 : index
    %46 = vector.load %arg3[%c0_21, %c0_22, %c0_23] : memref<1x1x8xi32, #tpu.memory_space<vmem>>, vector<1x1x8xi32>
    %47 = vector.shape_cast %46 : vector<1x1x8xi32> to vector<1x8xi32>
    %48 = arith.sitofp %47 : vector<1x8xi32> to vector<1x8xf32>
    %cst_24 = arith.constant 1.000000e+00 : f32
    %49 = vector.broadcast %cst_24 : f32 to vector<1x8xf32>
    %50 = arith.subf %49, %48 : vector<1x8xf32>
    %cst_25 = arith.constant -1.000000e+09 : f32
    %51 = vector.broadcast %cst_25 : f32 to vector<1x8xf32>
    %52 = arith.mulf %50, %51 : vector<1x8xf32>
    %c0_26 = arith.constant 0 : index
    %c0_27 = arith.constant 0 : index
    %c0_28 = arith.constant 0 : index
    %53 = vector.load %arg9[%c0_26, %c0_27, %c0_28] : memref<2x128x384xbf16, #tpu.memory_space<vmem>>, vector<1x128x384xbf16>
    %54 = vector.shape_cast %53 : vector<1x128x384xbf16> to vector<128x384xbf16>
    %55 = arith.truncf %45 : vector<8x128xf32> to vector<8x128xbf16>
    %cst_29 = arith.constant dense<0.000000e+00> : vector<8x384xf32>
    %56 = tpu.matmul %55, %54, %cst_29 {dimension_numbers = #tpu.dot_dimension_numbers<[1], [0], [0], [1], [0, 0, 1, 1], [], []>} : vector<8x128xbf16>, vector<128x384xbf16>, vector<8x384xf32> -> vector<8x384xf32>
    %c0_30 = arith.constant 0 : index
    %c0_31 = arith.constant 0 : index
    %c0_32 = arith.constant 0 : index
    %57 = vector.load %arg10[%c0_30, %c0_31, %c0_32] : memref<2x1x384xf32, #tpu.memory_space<vmem>>, vector<1x1x384xf32>
    %58 = vector.shape_cast %57 : vector<1x1x384xf32> to vector<1x384xf32>
    %59 = vector.broadcast %58 : vector<1x384xf32> to vector<8x384xf32>
    %60 = arith.addf %56, %59 : vector<8x384xf32>
    %cst_33 = arith.constant 0.000000e+00 : f32
    %61 = vector.broadcast %cst_33 : f32 to vector<8x128xf32>
    %62 = vector.extract_strided_slice %60 {offsets = [0, 0], sizes = [8, 64], strides = [1, 1]} : vector<8x384xf32> to vector<8x64xf32>
    %63 = vector.extract_strided_slice %60 {offsets = [0, 128], sizes = [8, 64], strides = [1, 1]} : vector<8x384xf32> to vector<8x64xf32>
    %64 = vector.extract_strided_slice %60 {offsets = [0, 256], sizes = [8, 64], strides = [1, 1]} : vector<8x384xf32> to vector<8x64xf32>
    %cst_34 = arith.constant dense<0.000000e+00> : vector<8x8xf32>
    %65 = tpu.matmul %62, %63, %cst_34 {dimension_numbers = #tpu.dot_dimension_numbers<[1], [1], [0], [0], [0, 0, 1, 0], [], []>} : vector<8x64xf32>, vector<8x64xf32>, vector<8x8xf32> -> vector<8x8xf32>
    %cst_35 = arith.constant 1.250000e-01 : f32
    %66 = vector.broadcast %cst_35 : f32 to vector<8x8xf32>
    %67 = arith.mulf %65, %66 : vector<8x8xf32>
    %68 = vector.broadcast %52 : vector<1x8xf32> to vector<8x8xf32>
    %69 = arith.addf %67, %68 : vector<8x8xf32>
    %cst_36 = arith.constant dense<0xFF800000> : vector<8xf32>
    %70 = vector.multi_reduction <maximumf>, %69, %cst_36 [1] : vector<8x8xf32> to vector<8xf32>
    %cst_37 = arith.constant 0xFF800000 : f32
    %71 = vector.broadcast %cst_37 : f32 to vector<8xf32>
    %72 = arith.maximumf %71, %70 : vector<8xf32>
    %73 = vector.shape_cast %72 : vector<8xf32> to vector<8x1xf32>
    %74 = vector.broadcast %73 : vector<8x1xf32> to vector<8x8xf32>
    %75 = arith.subf %69, %74 : vector<8x8xf32>
    %76 = math.exp %75 : vector<8x8xf32>
    %cst_38 = arith.constant dense<0.000000e+00> : vector<8xf32>
    %77 = vector.multi_reduction <add>, %76, %cst_38 [1] : vector<8x8xf32> to vector<8xf32>
    %78 = vector.shape_cast %77 : vector<8xf32> to vector<8x1xf32>
    %79 = vector.broadcast %78 : vector<8x1xf32> to vector<8x8xf32>
    %80 = arith.divf %76, %79 : vector<8x8xf32>
    %cst_39 = arith.constant dense<0.000000e+00> : vector<8x64xf32>
    %81 = tpu.matmul %80, %64, %cst_39 {dimension_numbers = #tpu.dot_dimension_numbers<[1], [0], [0], [1], [0, 0, 1, 1], [], []>} : vector<8x8xf32>, vector<8x64xf32>, vector<8x64xf32> -> vector<8x64xf32>
    %c0_40 = arith.constant 0 : index
    %c0_41 = arith.constant 0 : index
    %c0_42 = arith.constant 0 : index
    %c0_43 = arith.constant 0 : index
    %82 = vector.load %arg11[%c0_40, %c0_41, %c0_42, %c0_43] : memref<2x2x64x128xbf16, #tpu.memory_space<vmem>>, vector<1x1x64x128xbf16>
    %83 = vector.shape_cast %82 : vector<1x1x64x128xbf16> to vector<64x128xbf16>
    %84 = arith.truncf %81 : vector<8x64xf32> to vector<8x64xbf16>
    %cst_44 = arith.constant dense<0.000000e+00> : vector<8x128xf32>
    %85 = tpu.matmul %84, %83, %cst_44 {dimension_numbers = #tpu.dot_dimension_numbers<[1], [0], [0], [1], [0, 0, 1, 1], [], []>} : vector<8x64xbf16>, vector<64x128xbf16>, vector<8x128xf32> -> vector<8x128xf32>
    %86 = arith.addf %61, %85 : vector<8x128xf32>
    %87 = vector.extract_strided_slice %60 {offsets = [0, 64], sizes = [8, 64], strides = [1, 1]} : vector<8x384xf32> to vector<8x64xf32>
    %88 = vector.extract_strided_slice %60 {offsets = [0, 192], sizes = [8, 64], strides = [1, 1]} : vector<8x384xf32> to vector<8x64xf32>
    %89 = vector.extract_strided_slice %60 {offsets = [0, 320], sizes = [8, 64], strides = [1, 1]} : vector<8x384xf32> to vector<8x64xf32>
    %cst_45 = arith.constant dense<0.000000e+00> : vector<8x8xf32>
    %90 = tpu.matmul %87, %88, %cst_45 {dimension_numbers = #tpu.dot_dimension_numbers<[1], [1], [0], [0], [0, 0, 1, 0], [], []>} : vector<8x64xf32>, vector<8x64xf32>, vector<8x8xf32> -> vector<8x8xf32>
    %cst_46 = arith.constant 1.250000e-01 : f32
    %91 = vector.broadcast %cst_46 : f32 to vector<8x8xf32>
    %92 = arith.mulf %90, %91 : vector<8x8xf32>
    %93 = vector.broadcast %52 : vector<1x8xf32> to vector<8x8xf32>
    %94 = arith.addf %92, %93 : vector<8x8xf32>
    %cst_47 = arith.constant dense<0xFF800000> : vector<8xf32>
    %95 = vector.multi_reduction <maximumf>, %94, %cst_47 [1] : vector<8x8xf32> to vector<8xf32>
    %cst_48 = arith.constant 0xFF800000 : f32
    %96 = vector.broadcast %cst_48 : f32 to vector<8xf32>
    %97 = arith.maximumf %96, %95 : vector<8xf32>
    %98 = vector.shape_cast %97 : vector<8xf32> to vector<8x1xf32>
    %99 = vector.broadcast %98 : vector<8x1xf32> to vector<8x8xf32>
    %100 = arith.subf %94, %99 : vector<8x8xf32>
    %101 = math.exp %100 : vector<8x8xf32>
    %cst_49 = arith.constant dense<0.000000e+00> : vector<8xf32>
    %102 = vector.multi_reduction <add>, %101, %cst_49 [1] : vector<8x8xf32> to vector<8xf32>
    %103 = vector.shape_cast %102 : vector<8xf32> to vector<8x1xf32>
    %104 = vector.broadcast %103 : vector<8x1xf32> to vector<8x8xf32>
    %105 = arith.divf %101, %104 : vector<8x8xf32>
    %cst_50 = arith.constant dense<0.000000e+00> : vector<8x64xf32>
    %106 = tpu.matmul %105, %89, %cst_50 {dimension_numbers = #tpu.dot_dimension_numbers<[1], [0], [0], [1], [0, 0, 1, 1], [], []>} : vector<8x8xf32>, vector<8x64xf32>, vector<8x64xf32> -> vector<8x64xf32>
    %c0_51 = arith.constant 0 : index
    %c1 = arith.constant 1 : index
    %c0_52 = arith.constant 0 : index
    %c0_53 = arith.constant 0 : index
    %107 = vector.load %arg11[%c0_51, %c1, %c0_52, %c0_53] : memref<2x2x64x128xbf16, #tpu.memory_space<vmem>>, vector<1x1x64x128xbf16>
    %108 = vector.shape_cast %107 : vector<1x1x64x128xbf16> to vector<64x128xbf16>
    %109 = arith.truncf %106 : vector<8x64xf32> to vector<8x64xbf16>
    %cst_54 = arith.constant dense<0.000000e+00> : vector<8x128xf32>
    %110 = tpu.matmul %109, %108, %cst_54 {dimension_numbers = #tpu.dot_dimension_numbers<[1], [0], [0], [1], [0, 0, 1, 1], [], []>} : vector<8x64xbf16>, vector<64x128xbf16>, vector<8x128xf32> -> vector<8x128xf32>
    %111 = arith.addf %86, %110 : vector<8x128xf32>
    %c0_55 = arith.constant 0 : index
    %c0_56 = arith.constant 0 : index
    %c0_57 = arith.constant 0 : index
    %112 = vector.load %arg12[%c0_55, %c0_56, %c0_57] : memref<2x1x128xf32, #tpu.memory_space<vmem>>, vector<1x1x128xf32>
    %113 = vector.shape_cast %112 : vector<1x1x128xf32> to vector<1x128xf32>
    %114 = vector.broadcast %113 : vector<1x128xf32> to vector<8x128xf32>
    %115 = arith.addf %111, %114 : vector<8x128xf32>
    %116 = arith.addf %45, %115 : vector<8x128xf32>
    %c0_58 = arith.constant 0 : index
    %c0_59 = arith.constant 0 : index
    %c0_60 = arith.constant 0 : index
    %117 = vector.load %arg13[%c0_58, %c0_59, %c0_60] : memref<2x1x128xf32, #tpu.memory_space<vmem>>, vector<1x1x128xf32>
    %118 = vector.shape_cast %117 : vector<1x1x128xf32> to vector<1x128xf32>
    %c0_61 = arith.constant 0 : index
    %c0_62 = arith.constant 0 : index
    %c0_63 = arith.constant 0 : index
    %119 = vector.load %arg14[%c0_61, %c0_62, %c0_63] : memref<2x1x128xf32, #tpu.memory_space<vmem>>, vector<1x1x128xf32>
    %120 = vector.shape_cast %119 : vector<1x1x128xf32> to vector<1x128xf32>
    %cst_64 = arith.constant dense<0.000000e+00> : vector<8xf32>
    %121 = vector.multi_reduction <add>, %116, %cst_64 [1] : vector<8x128xf32> to vector<8xf32>
    %122 = vector.shape_cast %121 : vector<8xf32> to vector<8x1xf32>
    %cst_65 = arith.constant 1.280000e+02 : f32
    %123 = vector.broadcast %cst_65 : f32 to vector<8x1xf32>
    %124 = arith.divf %122, %123 : vector<8x1xf32>
    %125 = vector.broadcast %124 : vector<8x1xf32> to vector<8x128xf32>
    %126 = arith.subf %116, %125 : vector<8x128xf32>
    %127 = arith.mulf %126, %126 : vector<8x128xf32>
    %cst_66 = arith.constant dense<0.000000e+00> : vector<8xf32>
    %128 = vector.multi_reduction <add>, %127, %cst_66 [1] : vector<8x128xf32> to vector<8xf32>
    %129 = vector.shape_cast %128 : vector<8xf32> to vector<8x1xf32>
    %cst_67 = arith.constant 1.280000e+02 : f32
    %130 = vector.broadcast %cst_67 : f32 to vector<8x1xf32>
    %131 = arith.divf %129, %130 : vector<8x1xf32>
    %132 = vector.broadcast %124 : vector<8x1xf32> to vector<8x128xf32>
    %133 = arith.subf %116, %132 : vector<8x128xf32>
    %cst_68 = arith.constant 9.99999996E-13 : f32
    %134 = vector.broadcast %cst_68 : f32 to vector<8x1xf32>
    %135 = arith.addf %131, %134 : vector<8x1xf32>
    %136 = math.rsqrt %135 : vector<8x1xf32>
    %137 = vector.broadcast %136 : vector<8x1xf32> to vector<8x128xf32>
    %138 = arith.mulf %133, %137 : vector<8x128xf32>
    %139 = vector.broadcast %118 : vector<1x128xf32> to vector<8x128xf32>
    %140 = arith.mulf %138, %139 : vector<8x128xf32>
    %141 = vector.broadcast %120 : vector<1x128xf32> to vector<8x128xf32>
    %142 = arith.addf %140, %141 : vector<8x128xf32>
    %c0_69 = arith.constant 0 : index
    %c0_70 = arith.constant 0 : index
    %c0_71 = arith.constant 0 : index
    %143 = vector.load %arg15[%c0_69, %c0_70, %c0_71] : memref<2x128x256xbf16, #tpu.memory_space<vmem>>, vector<1x128x256xbf16>
    %144 = vector.shape_cast %143 : vector<1x128x256xbf16> to vector<128x256xbf16>
    %145 = arith.truncf %142 : vector<8x128xf32> to vector<8x128xbf16>
    %cst_72 = arith.constant dense<0.000000e+00> : vector<8x256xf32>
    %146 = tpu.matmul %145, %144, %cst_72 {dimension_numbers = #tpu.dot_dimension_numbers<[1], [0], [0], [1], [0, 0, 1, 1], [], []>} : vector<8x128xbf16>, vector<128x256xbf16>, vector<8x256xf32> -> vector<8x256xf32>
    %c0_73 = arith.constant 0 : index
    %c0_74 = arith.constant 0 : index
    %c0_75 = arith.constant 0 : index
    %147 = vector.load %arg16[%c0_73, %c0_74, %c0_75] : memref<2x1x256xf32, #tpu.memory_space<vmem>>, vector<1x1x256xf32>
    %148 = vector.shape_cast %147 : vector<1x1x256xf32> to vector<1x256xf32>
    %149 = vector.broadcast %148 : vector<1x256xf32> to vector<8x256xf32>
    %150 = arith.addf %146, %149 : vector<8x256xf32>
    %151 = arith.mulf %150, %150 : vector<8x256xf32>
    %152 = arith.mulf %150, %151 : vector<8x256xf32>
    %cst_76 = arith.constant 4.471500e-02 : f32
    %153 = vector.broadcast %cst_76 : f32 to vector<8x256xf32>
    %154 = arith.mulf %153, %152 : vector<8x256xf32>
    %155 = arith.addf %150, %154 : vector<8x256xf32>
    %cst_77 = arith.constant 0.797884583 : f32
    %156 = vector.broadcast %cst_77 : f32 to vector<8x256xf32>
    %157 = arith.mulf %156, %155 : vector<8x256xf32>
    %158 = math.tanh %157 : vector<8x256xf32>
    %cst_78 = arith.constant 1.000000e+00 : f32
    %159 = vector.broadcast %cst_78 : f32 to vector<8x256xf32>
    %160 = arith.addf %159, %158 : vector<8x256xf32>
    %cst_79 = arith.constant 5.000000e-01 : f32
    %161 = vector.broadcast %cst_79 : f32 to vector<8x256xf32>
    %162 = arith.mulf %161, %160 : vector<8x256xf32>
    %163 = arith.mulf %150, %162 : vector<8x256xf32>
    %c0_80 = arith.constant 0 : index
    %c0_81 = arith.constant 0 : index
    %c0_82 = arith.constant 0 : index
    %164 = vector.load %arg17[%c0_80, %c0_81, %c0_82] : memref<2x256x128xbf16, #tpu.memory_space<vmem>>, vector<1x256x128xbf16>
    %165 = vector.shape_cast %164 : vector<1x256x128xbf16> to vector<256x128xbf16>
    %166 = arith.truncf %163 : vector<8x256xf32> to vector<8x256xbf16>
    %cst_83 = arith.constant dense<0.000000e+00> : vector<8x128xf32>
    %167 = tpu.matmul %166, %165, %cst_83 {dimension_numbers = #tpu.dot_dimension_numbers<[1], [0], [0], [1], [0, 0, 1, 1], [], []>} : vector<8x256xbf16>, vector<256x128xbf16>, vector<8x128xf32> -> vector<8x128xf32>
    %c0_84 = arith.constant 0 : index
    %c0_85 = arith.constant 0 : index
    %c0_86 = arith.constant 0 : index
    %168 = vector.load %arg18[%c0_84, %c0_85, %c0_86] : memref<2x1x128xf32, #tpu.memory_space<vmem>>, vector<1x1x128xf32>
    %169 = vector.shape_cast %168 : vector<1x1x128xf32> to vector<1x128xf32>
    %170 = vector.broadcast %169 : vector<1x128xf32> to vector<8x128xf32>
    %171 = arith.addf %167, %170 : vector<8x128xf32>
    %172 = arith.addf %142, %171 : vector<8x128xf32>
    %c0_87 = arith.constant 0 : index
    %c0_88 = arith.constant 0 : index
    %c0_89 = arith.constant 0 : index
    %173 = vector.load %arg19[%c0_87, %c0_88, %c0_89] : memref<2x1x128xf32, #tpu.memory_space<vmem>>, vector<1x1x128xf32>
    %174 = vector.shape_cast %173 : vector<1x1x128xf32> to vector<1x128xf32>
    %c0_90 = arith.constant 0 : index
    %c0_91 = arith.constant 0 : index
    %c0_92 = arith.constant 0 : index
    %175 = vector.load %arg20[%c0_90, %c0_91, %c0_92] : memref<2x1x128xf32, #tpu.memory_space<vmem>>, vector<1x1x128xf32>
    %176 = vector.shape_cast %175 : vector<1x1x128xf32> to vector<1x128xf32>
    %cst_93 = arith.constant dense<0.000000e+00> : vector<8xf32>
    %177 = vector.multi_reduction <add>, %172, %cst_93 [1] : vector<8x128xf32> to vector<8xf32>
    %178 = vector.shape_cast %177 : vector<8xf32> to vector<8x1xf32>
    %cst_94 = arith.constant 1.280000e+02 : f32
    %179 = vector.broadcast %cst_94 : f32 to vector<8x1xf32>
    %180 = arith.divf %178, %179 : vector<8x1xf32>
    %181 = vector.broadcast %180 : vector<8x1xf32> to vector<8x128xf32>
    %182 = arith.subf %172, %181 : vector<8x128xf32>
    %183 = arith.mulf %182, %182 : vector<8x128xf32>
    %cst_95 = arith.constant dense<0.000000e+00> : vector<8xf32>
    %184 = vector.multi_reduction <add>, %183, %cst_95 [1] : vector<8x128xf32> to vector<8xf32>
    %185 = vector.shape_cast %184 : vector<8xf32> to vector<8x1xf32>
    %cst_96 = arith.constant 1.280000e+02 : f32
    %186 = vector.broadcast %cst_96 : f32 to vector<8x1xf32>
    %187 = arith.divf %185, %186 : vector<8x1xf32>
    %188 = vector.broadcast %180 : vector<8x1xf32> to vector<8x128xf32>
    %189 = arith.subf %172, %188 : vector<8x128xf32>
    %cst_97 = arith.constant 9.99999996E-13 : f32
    %190 = vector.broadcast %cst_97 : f32 to vector<8x1xf32>
    %191 = arith.addf %187, %190 : vector<8x1xf32>
    %192 = math.rsqrt %191 : vector<8x1xf32>
    %193 = vector.broadcast %192 : vector<8x1xf32> to vector<8x128xf32>
    %194 = arith.mulf %189, %193 : vector<8x128xf32>
    %195 = vector.broadcast %174 : vector<1x128xf32> to vector<8x128xf32>
    %196 = arith.mulf %194, %195 : vector<8x128xf32>
    %197 = vector.broadcast %176 : vector<1x128xf32> to vector<8x128xf32>
    %198 = arith.addf %196, %197 : vector<8x128xf32>
    %c1_98 = arith.constant 1 : index
    %c0_99 = arith.constant 0 : index
    %c0_100 = arith.constant 0 : index
    %199 = vector.load %arg9[%c1_98, %c0_99, %c0_100] : memref<2x128x384xbf16, #tpu.memory_space<vmem>>, vector<1x128x384xbf16>
    %200 = vector.shape_cast %199 : vector<1x128x384xbf16> to vector<128x384xbf16>
    %201 = arith.truncf %198 : vector<8x128xf32> to vector<8x128xbf16>
    %cst_101 = arith.constant dense<0.000000e+00> : vector<8x384xf32>
    %202 = tpu.matmul %201, %200, %cst_101 {dimension_numbers = #tpu.dot_dimension_numbers<[1], [0], [0], [1], [0, 0, 1, 1], [], []>} : vector<8x128xbf16>, vector<128x384xbf16>, vector<8x384xf32> -> vector<8x384xf32>
    %c1_102 = arith.constant 1 : index
    %c0_103 = arith.constant 0 : index
    %c0_104 = arith.constant 0 : index
    %203 = vector.load %arg10[%c1_102, %c0_103, %c0_104] : memref<2x1x384xf32, #tpu.memory_space<vmem>>, vector<1x1x384xf32>
    %204 = vector.shape_cast %203 : vector<1x1x384xf32> to vector<1x384xf32>
    %205 = vector.broadcast %204 : vector<1x384xf32> to vector<8x384xf32>
    %206 = arith.addf %202, %205 : vector<8x384xf32>
    %cst_105 = arith.constant 0.000000e+00 : f32
    %207 = vector.broadcast %cst_105 : f32 to vector<8x128xf32>
    %208 = vector.extract_strided_slice %206 {offsets = [0, 0], sizes = [8, 64], strides = [1, 1]} : vector<8x384xf32> to vector<8x64xf32>
    %209 = vector.extract_strided_slice %206 {offsets = [0, 128], sizes = [8, 64], strides = [1, 1]} : vector<8x384xf32> to vector<8x64xf32>
    %210 = vector.extract_strided_slice %206 {offsets = [0, 256], sizes = [8, 64], strides = [1, 1]} : vector<8x384xf32> to vector<8x64xf32>
    %cst_106 = arith.constant dense<0.000000e+00> : vector<8x8xf32>
    %211 = tpu.matmul %208, %209, %cst_106 {dimension_numbers = #tpu.dot_dimension_numbers<[1], [1], [0], [0], [0, 0, 1, 0], [], []>} : vector<8x64xf32>, vector<8x64xf32>, vector<8x8xf32> -> vector<8x8xf32>
    %cst_107 = arith.constant 1.250000e-01 : f32
    %212 = vector.broadcast %cst_107 : f32 to vector<8x8xf32>
    %213 = arith.mulf %211, %212 : vector<8x8xf32>
    %214 = vector.broadcast %52 : vector<1x8xf32> to vector<8x8xf32>
    %215 = arith.addf %213, %214 : vector<8x8xf32>
    %cst_108 = arith.constant dense<0xFF800000> : vector<8xf32>
    %216 = vector.multi_reduction <maximumf>, %215, %cst_108 [1] : vector<8x8xf32> to vector<8xf32>
    %cst_109 = arith.constant 0xFF800000 : f32
    %217 = vector.broadcast %cst_109 : f32 to vector<8xf32>
    %218 = arith.maximumf %217, %216 : vector<8xf32>
    %219 = vector.shape_cast %218 : vector<8xf32> to vector<8x1xf32>
    %220 = vector.broadcast %219 : vector<8x1xf32> to vector<8x8xf32>
    %221 = arith.subf %215, %220 : vector<8x8xf32>
    %222 = math.exp %221 : vector<8x8xf32>
    %cst_110 = arith.constant dense<0.000000e+00> : vector<8xf32>
    %223 = vector.multi_reduction <add>, %222, %cst_110 [1] : vector<8x8xf32> to vector<8xf32>
    %224 = vector.shape_cast %223 : vector<8xf32> to vector<8x1xf32>
    %225 = vector.broadcast %224 : vector<8x1xf32> to vector<8x8xf32>
    %226 = arith.divf %222, %225 : vector<8x8xf32>
    %cst_111 = arith.constant dense<0.000000e+00> : vector<8x64xf32>
    %227 = tpu.matmul %226, %210, %cst_111 {dimension_numbers = #tpu.dot_dimension_numbers<[1], [0], [0], [1], [0, 0, 1, 1], [], []>} : vector<8x8xf32>, vector<8x64xf32>, vector<8x64xf32> -> vector<8x64xf32>
    %c1_112 = arith.constant 1 : index
    %c0_113 = arith.constant 0 : index
    %c0_114 = arith.constant 0 : index
    %c0_115 = arith.constant 0 : index
    %228 = vector.load %arg11[%c1_112, %c0_113, %c0_114, %c0_115] : memref<2x2x64x128xbf16, #tpu.memory_space<vmem>>, vector<1x1x64x128xbf16>
    %229 = vector.shape_cast %228 : vector<1x1x64x128xbf16> to vector<64x128xbf16>
    %230 = arith.truncf %227 : vector<8x64xf32> to vector<8x64xbf16>
    %cst_116 = arith.constant dense<0.000000e+00> : vector<8x128xf32>
    %231 = tpu.matmul %230, %229, %cst_116 {dimension_numbers = #tpu.dot_dimension_numbers<[1], [0], [0], [1], [0, 0, 1, 1], [], []>} : vector<8x64xbf16>, vector<64x128xbf16>, vector<8x128xf32> -> vector<8x128xf32>
    %232 = arith.addf %207, %231 : vector<8x128xf32>
    %233 = vector.extract_strided_slice %206 {offsets = [0, 64], sizes = [8, 64], strides = [1, 1]} : vector<8x384xf32> to vector<8x64xf32>
    %234 = vector.extract_strided_slice %206 {offsets = [0, 192], sizes = [8, 64], strides = [1, 1]} : vector<8x384xf32> to vector<8x64xf32>
    %235 = vector.extract_strided_slice %206 {offsets = [0, 320], sizes = [8, 64], strides = [1, 1]} : vector<8x384xf32> to vector<8x64xf32>
    %cst_117 = arith.constant dense<0.000000e+00> : vector<8x8xf32>
    %236 = tpu.matmul %233, %234, %cst_117 {dimension_numbers = #tpu.dot_dimension_numbers<[1], [1], [0], [0], [0, 0, 1, 0], [], []>} : vector<8x64xf32>, vector<8x64xf32>, vector<8x8xf32> -> vector<8x8xf32>
    %cst_118 = arith.constant 1.250000e-01 : f32
    %237 = vector.broadcast %cst_118 : f32 to vector<8x8xf32>
    %238 = arith.mulf %236, %237 : vector<8x8xf32>
    %239 = vector.broadcast %52 : vector<1x8xf32> to vector<8x8xf32>
    %240 = arith.addf %238, %239 : vector<8x8xf32>
    %cst_119 = arith.constant dense<0xFF800000> : vector<8xf32>
    %241 = vector.multi_reduction <maximumf>, %240, %cst_119 [1] : vector<8x8xf32> to vector<8xf32>
    %cst_120 = arith.constant 0xFF800000 : f32
    %242 = vector.broadcast %cst_120 : f32 to vector<8xf32>
    %243 = arith.maximumf %242, %241 : vector<8xf32>
    %244 = vector.shape_cast %243 : vector<8xf32> to vector<8x1xf32>
    %245 = vector.broadcast %244 : vector<8x1xf32> to vector<8x8xf32>
    %246 = arith.subf %240, %245 : vector<8x8xf32>
    %247 = math.exp %246 : vector<8x8xf32>
    %cst_121 = arith.constant dense<0.000000e+00> : vector<8xf32>
    %248 = vector.multi_reduction <add>, %247, %cst_121 [1] : vector<8x8xf32> to vector<8xf32>
    %249 = vector.shape_cast %248 : vector<8xf32> to vector<8x1xf32>
    %250 = vector.broadcast %249 : vector<8x1xf32> to vector<8x8xf32>
    %251 = arith.divf %247, %250 : vector<8x8xf32>
    %cst_122 = arith.constant dense<0.000000e+00> : vector<8x64xf32>
    %252 = tpu.matmul %251, %235, %cst_122 {dimension_numbers = #tpu.dot_dimension_numbers<[1], [0], [0], [1], [0, 0, 1, 1], [], []>} : vector<8x8xf32>, vector<8x64xf32>, vector<8x64xf32> -> vector<8x64xf32>
    %c1_123 = arith.constant 1 : index
    %c1_124 = arith.constant 1 : index
    %c0_125 = arith.constant 0 : index
    %c0_126 = arith.constant 0 : index
    %253 = vector.load %arg11[%c1_123, %c1_124, %c0_125, %c0_126] : memref<2x2x64x128xbf16, #tpu.memory_space<vmem>>, vector<1x1x64x128xbf16>
    %254 = vector.shape_cast %253 : vector<1x1x64x128xbf16> to vector<64x128xbf16>
    %255 = arith.truncf %252 : vector<8x64xf32> to vector<8x64xbf16>
    %cst_127 = arith.constant dense<0.000000e+00> : vector<8x128xf32>
    %256 = tpu.matmul %255, %254, %cst_127 {dimension_numbers = #tpu.dot_dimension_numbers<[1], [0], [0], [1], [0, 0, 1, 1], [], []>} : vector<8x64xbf16>, vector<64x128xbf16>, vector<8x128xf32> -> vector<8x128xf32>
    %257 = arith.addf %232, %256 : vector<8x128xf32>
    %c1_128 = arith.constant 1 : index
    %c0_129 = arith.constant 0 : index
    %c0_130 = arith.constant 0 : index
    %258 = vector.load %arg12[%c1_128, %c0_129, %c0_130] : memref<2x1x128xf32, #tpu.memory_space<vmem>>, vector<1x1x128xf32>
    %259 = vector.shape_cast %258 : vector<1x1x128xf32> to vector<1x128xf32>
    %260 = vector.broadcast %259 : vector<1x128xf32> to vector<8x128xf32>
    %261 = arith.addf %257, %260 : vector<8x128xf32>
    %262 = arith.addf %198, %261 : vector<8x128xf32>
    %c1_131 = arith.constant 1 : index
    %c0_132 = arith.constant 0 : index
    %c0_133 = arith.constant 0 : index
    %263 = vector.load %arg13[%c1_131, %c0_132, %c0_133] : memref<2x1x128xf32, #tpu.memory_space<vmem>>, vector<1x1x128xf32>
    %264 = vector.shape_cast %263 : vector<1x1x128xf32> to vector<1x128xf32>
    %c1_134 = arith.constant 1 : index
    %c0_135 = arith.constant 0 : index
    %c0_136 = arith.constant 0 : index
    %265 = vector.load %arg14[%c1_134, %c0_135, %c0_136] : memref<2x1x128xf32, #tpu.memory_space<vmem>>, vector<1x1x128xf32>
    %266 = vector.shape_cast %265 : vector<1x1x128xf32> to vector<1x128xf32>
    %cst_137 = arith.constant dense<0.000000e+00> : vector<8xf32>
    %267 = vector.multi_reduction <add>, %262, %cst_137 [1] : vector<8x128xf32> to vector<8xf32>
    %268 = vector.shape_cast %267 : vector<8xf32> to vector<8x1xf32>
    %cst_138 = arith.constant 1.280000e+02 : f32
    %269 = vector.broadcast %cst_138 : f32 to vector<8x1xf32>
    %270 = arith.divf %268, %269 : vector<8x1xf32>
    %271 = vector.broadcast %270 : vector<8x1xf32> to vector<8x128xf32>
    %272 = arith.subf %262, %271 : vector<8x128xf32>
    %273 = arith.mulf %272, %272 : vector<8x128xf32>
    %cst_139 = arith.constant dense<0.000000e+00> : vector<8xf32>
    %274 = vector.multi_reduction <add>, %273, %cst_139 [1] : vector<8x128xf32> to vector<8xf32>
    %275 = vector.shape_cast %274 : vector<8xf32> to vector<8x1xf32>
    %cst_140 = arith.constant 1.280000e+02 : f32
    %276 = vector.broadcast %cst_140 : f32 to vector<8x1xf32>
    %277 = arith.divf %275, %276 : vector<8x1xf32>
    %278 = vector.broadcast %270 : vector<8x1xf32> to vector<8x128xf32>
    %279 = arith.subf %262, %278 : vector<8x128xf32>
    %cst_141 = arith.constant 9.99999996E-13 : f32
    %280 = vector.broadcast %cst_141 : f32 to vector<8x1xf32>
    %281 = arith.addf %277, %280 : vector<8x1xf32>
    %282 = math.rsqrt %281 : vector<8x1xf32>
    %283 = vector.broadcast %282 : vector<8x1xf32> to vector<8x128xf32>
    %284 = arith.mulf %279, %283 : vector<8x128xf32>
    %285 = vector.broadcast %264 : vector<1x128xf32> to vector<8x128xf32>
    %286 = arith.mulf %284, %285 : vector<8x128xf32>
    %287 = vector.broadcast %266 : vector<1x128xf32> to vector<8x128xf32>
    %288 = arith.addf %286, %287 : vector<8x128xf32>
    %c1_142 = arith.constant 1 : index
    %c0_143 = arith.constant 0 : index
    %c0_144 = arith.constant 0 : index
    %289 = vector.load %arg15[%c1_142, %c0_143, %c0_144] : memref<2x128x256xbf16, #tpu.memory_space<vmem>>, vector<1x128x256xbf16>
    %290 = vector.shape_cast %289 : vector<1x128x256xbf16> to vector<128x256xbf16>
    %291 = arith.truncf %288 : vector<8x128xf32> to vector<8x128xbf16>
    %cst_145 = arith.constant dense<0.000000e+00> : vector<8x256xf32>
    %292 = tpu.matmul %291, %290, %cst_145 {dimension_numbers = #tpu.dot_dimension_numbers<[1], [0], [0], [1], [0, 0, 1, 1], [], []>} : vector<8x128xbf16>, vector<128x256xbf16>, vector<8x256xf32> -> vector<8x256xf32>
    %c1_146 = arith.constant 1 : index
    %c0_147 = arith.constant 0 : index
    %c0_148 = arith.constant 0 : index
    %293 = vector.load %arg16[%c1_146, %c0_147, %c0_148] : memref<2x1x256xf32, #tpu.memory_space<vmem>>, vector<1x1x256xf32>
    %294 = vector.shape_cast %293 : vector<1x1x256xf32> to vector<1x256xf32>
    %295 = vector.broadcast %294 : vector<1x256xf32> to vector<8x256xf32>
    %296 = arith.addf %292, %295 : vector<8x256xf32>
    %297 = arith.mulf %296, %296 : vector<8x256xf32>
    %298 = arith.mulf %296, %297 : vector<8x256xf32>
    %cst_149 = arith.constant 4.471500e-02 : f32
    %299 = vector.broadcast %cst_149 : f32 to vector<8x256xf32>
    %300 = arith.mulf %299, %298 : vector<8x256xf32>
    %301 = arith.addf %296, %300 : vector<8x256xf32>
    %cst_150 = arith.constant 0.797884583 : f32
    %302 = vector.broadcast %cst_150 : f32 to vector<8x256xf32>
    %303 = arith.mulf %302, %301 : vector<8x256xf32>
    %304 = math.tanh %303 : vector<8x256xf32>
    %cst_151 = arith.constant 1.000000e+00 : f32
    %305 = vector.broadcast %cst_151 : f32 to vector<8x256xf32>
    %306 = arith.addf %305, %304 : vector<8x256xf32>
    %cst_152 = arith.constant 5.000000e-01 : f32
    %307 = vector.broadcast %cst_152 : f32 to vector<8x256xf32>
    %308 = arith.mulf %307, %306 : vector<8x256xf32>
    %309 = arith.mulf %296, %308 : vector<8x256xf32>
    %c1_153 = arith.constant 1 : index
    %c0_154 = arith.constant 0 : index
    %c0_155 = arith.constant 0 : index
    %310 = vector.load %arg17[%c1_153, %c0_154, %c0_155] : memref<2x256x128xbf16, #tpu.memory_space<vmem>>, vector<1x256x128xbf16>
    %311 = vector.shape_cast %310 : vector<1x256x128xbf16> to vector<256x128xbf16>
    %312 = arith.truncf %309 : vector<8x256xf32> to vector<8x256xbf16>
    %cst_156 = arith.constant dense<0.000000e+00> : vector<8x128xf32>
    %313 = tpu.matmul %312, %311, %cst_156 {dimension_numbers = #tpu.dot_dimension_numbers<[1], [0], [0], [1], [0, 0, 1, 1], [], []>} : vector<8x256xbf16>, vector<256x128xbf16>, vector<8x128xf32> -> vector<8x128xf32>
    %c1_157 = arith.constant 1 : index
    %c0_158 = arith.constant 0 : index
    %c0_159 = arith.constant 0 : index
    %314 = vector.load %arg18[%c1_157, %c0_158, %c0_159] : memref<2x1x128xf32, #tpu.memory_space<vmem>>, vector<1x1x128xf32>
    %315 = vector.shape_cast %314 : vector<1x1x128xf32> to vector<1x128xf32>
    %316 = vector.broadcast %315 : vector<1x128xf32> to vector<8x128xf32>
    %317 = arith.addf %313, %316 : vector<8x128xf32>
    %318 = arith.addf %288, %317 : vector<8x128xf32>
    %c1_160 = arith.constant 1 : index
    %c0_161 = arith.constant 0 : index
    %c0_162 = arith.constant 0 : index
    %319 = vector.load %arg19[%c1_160, %c0_161, %c0_162] : memref<2x1x128xf32, #tpu.memory_space<vmem>>, vector<1x1x128xf32>
    %320 = vector.shape_cast %319 : vector<1x1x128xf32> to vector<1x128xf32>
    %c1_163 = arith.constant 1 : index
    %c0_164 = arith.constant 0 : index
    %c0_165 = arith.constant 0 : index
    %321 = vector.load %arg20[%c1_163, %c0_164, %c0_165] : memref<2x1x128xf32, #tpu.memory_space<vmem>>, vector<1x1x128xf32>
    %322 = vector.shape_cast %321 : vector<1x1x128xf32> to vector<1x128xf32>
    %cst_166 = arith.constant dense<0.000000e+00> : vector<8xf32>
    %323 = vector.multi_reduction <add>, %318, %cst_166 [1] : vector<8x128xf32> to vector<8xf32>
    %324 = vector.shape_cast %323 : vector<8xf32> to vector<8x1xf32>
    %cst_167 = arith.constant 1.280000e+02 : f32
    %325 = vector.broadcast %cst_167 : f32 to vector<8x1xf32>
    %326 = arith.divf %324, %325 : vector<8x1xf32>
    %327 = vector.broadcast %326 : vector<8x1xf32> to vector<8x128xf32>
    %328 = arith.subf %318, %327 : vector<8x128xf32>
    %329 = arith.mulf %328, %328 : vector<8x128xf32>
    %cst_168 = arith.constant dense<0.000000e+00> : vector<8xf32>
    %330 = vector.multi_reduction <add>, %329, %cst_168 [1] : vector<8x128xf32> to vector<8xf32>
    %331 = vector.shape_cast %330 : vector<8xf32> to vector<8x1xf32>
    %cst_169 = arith.constant 1.280000e+02 : f32
    %332 = vector.broadcast %cst_169 : f32 to vector<8x1xf32>
    %333 = arith.divf %331, %332 : vector<8x1xf32>
    %334 = vector.broadcast %326 : vector<8x1xf32> to vector<8x128xf32>
    %335 = arith.subf %318, %334 : vector<8x128xf32>
    %cst_170 = arith.constant 9.99999996E-13 : f32
    %336 = vector.broadcast %cst_170 : f32 to vector<8x1xf32>
    %337 = arith.addf %333, %336 : vector<8x1xf32>
    %338 = math.rsqrt %337 : vector<8x1xf32>
    %339 = vector.broadcast %338 : vector<8x1xf32> to vector<8x128xf32>
    %340 = arith.mulf %335, %339 : vector<8x128xf32>
    %341 = vector.broadcast %320 : vector<1x128xf32> to vector<8x128xf32>
    %342 = arith.mulf %340, %341 : vector<8x128xf32>
    %343 = vector.broadcast %322 : vector<1x128xf32> to vector<8x128xf32>
    %344 = arith.addf %342, %343 : vector<8x128xf32>
    %c0_171 = arith.constant 0 : index
    %c0_172 = arith.constant 0 : index
    %c0_173 = arith.constant 0 : index
    %345 = vector.load %arg23[%c0_171, %c0_172, %c0_173] : memref<1x8x128xf32, #tpu.memory_space<vmem>>, vector<1x8x128xf32>
    %346 = vector.shape_cast %345 : vector<1x8x128xf32> to vector<8x128xf32>
    %347 = vector.shape_cast %344 : vector<8x128xf32> to vector<1x8x128xf32>
    tpu.vector_store %arg23[%c0_171, %c0_172, %c0_173], %347 {strides = array<i32>} : memref<1x8x128xf32, #tpu.memory_space<vmem>>, vector<1x8x128xf32>,
    %348 = vector.extract_strided_slice %344 {offsets = [0, 0], sizes = [1, 128], strides = [1, 1]} : vector<8x128xf32> to vector<1x128xf32>
    %c0_174 = arith.constant 0 : index
    %c0_175 = arith.constant 0 : index
    %349 = vector.load %arg21[%c0_174, %c0_175] : memref<128x128xbf16, #tpu.memory_space<vmem>>, vector<128x128xbf16>
    %350 = arith.truncf %348 : vector<1x128xf32> to vector<1x128xbf16>
    %cst_176 = arith.constant dense<0.000000e+00> : vector<1x128xf32>
    %351 = tpu.matmul %350, %349, %cst_176 {dimension_numbers = #tpu.dot_dimension_numbers<[1], [0], [0], [1], [0, 0, 1, 1], [], []>} : vector<1x128xbf16>, vector<128x128xbf16>, vector<1x128xf32> -> vector<1x128xf32>
    %c0_177 = arith.constant 0 : index
    %c0_178 = arith.constant 0 : index
    %352 = vector.load %arg22[%c0_177, %c0_178] : memref<1x128xf32, #tpu.memory_space<vmem>>, vector<1x128xf32>
    %353 = arith.addf %351, %352 : vector<1x128xf32>
    %354 = math.tanh %353 : vector<1x128xf32>
    %c0_179 = arith.constant 0 : index
    %c0_180 = arith.constant 0 : index
    %c0_181 = arith.constant 0 : index
    %355 = vector.load %arg24[%c0_179, %c0_180, %c0_181] : memref<1x1x128xf32, #tpu.memory_space<vmem>>, vector<1x1x128xf32>
    %356 = vector.shape_cast %355 : vector<1x1x128xf32> to vector<1x128xf32>
    %357 = vector.shape_cast %354 : vector<1x128xf32> to vector<1x1x128xf32>
    tpu.vector_store %arg24[%c0_179, %c0_180, %c0_181], %357 {strides = array<i32>} : memref<1x1x128xf32, #tpu.memory_space<vmem>>, vector<1x1x128xf32>,
    return
  }
  func.func @transform_0(%arg0: i32) -> (i32, i32, i32) {
    %c0_i32 = arith.constant 0 : i32
    %c0_i32_0 = arith.constant 0 : i32
    %c0_i32_1 = arith.constant 0 : i32
    return %arg0, %c0_i32, %c0_i32_0 : i32, i32, i32
  }
  func.func @transform_1(%arg0: i32) -> (i32, i32, i32) {
    %c0_i32 = arith.constant 0 : i32
    %c0_i32_0 = arith.constant 0 : i32
    %c0_i32_1 = arith.constant 0 : i32
    return %arg0, %c0_i32, %c0_i32_0 : i32, i32, i32
  }
  func.func @transform_2(%arg0: i32) -> (i32, i32, i32) {
    %c0_i32 = arith.constant 0 : i32
    %c0_i32_0 = arith.constant 0 : i32
    %c0_i32_1 = arith.constant 0 : i32
    return %arg0, %c0_i32, %c0_i32_0 : i32, i32, i32
  }
  func.func @transform_3(%arg0: i32) -> (i32, i32) {
    %c0_i32 = arith.constant 0 : i32
    %c0_i32_0 = arith.constant 0 : i32
    %c0_i32_1 = arith.constant 0 : i32
    return %c0_i32, %c0_i32_0 : i32, i32
  }
  func.func @transform_4(%arg0: i32) -> (i32, i32) {
    %c0_i32 = arith.constant 0 : i32
    %c0_i32_0 = arith.constant 0 : i32
    %c0_i32_1 = arith.constant 0 : i32
    return %c0_i32, %c0_i32_0 : i32, i32
  }
  func.func @transform_5(%arg0: i32) -> (i32, i32) {
    %c0_i32 = arith.constant 0 : i32
    %c0_i32_0 = arith.constant 0 : i32
    %c0_i32_1 = arith.constant 0 : i32
    return %c0_i32, %c0_i32_0 : i32, i32
  }
  func.func @transform_6(%arg0: i32) -> (i32, i32) {
    %c0_i32 = arith.constant 0 : i32
    %c0_i32_0 = arith.constant 0 : i32
    %c0_i32_1 = arith.constant 0 : i32
    return %c0_i32, %c0_i32_0 : i32, i32
  }
  func.func @transform_7(%arg0: i32) -> (i32, i32) {
    %c0_i32 = arith.constant 0 : i32
    %c0_i32_0 = arith.constant 0 : i32
    %c0_i32_1 = arith.constant 0 : i32
    return %c0_i32, %c0_i32_0 : i32, i32
  }
  func.func @transform_8(%arg0: i32) -> (i32, i32, i32) {
    %c0_i32 = arith.constant 0 : i32
    %c0_i32_0 = arith.constant 0 : i32
    %c0_i32_1 = arith.constant 0 : i32
    %c0_i32_2 = arith.constant 0 : i32
    return %c0_i32, %c0_i32_0, %c0_i32_1 : i32, i32, i32
  }
  func.func @transform_9(%arg0: i32) -> (i32, i32, i32) {
    %c0_i32 = arith.constant 0 : i32
    %c0_i32_0 = arith.constant 0 : i32
    %c0_i32_1 = arith.constant 0 : i32
    %c0_i32_2 = arith.constant 0 : i32
    return %c0_i32, %c0_i32_0, %c0_i32_1 : i32, i32, i32
  }
  func.func @transform_10(%arg0: i32) -> (i32, i32, i32, i32) {
    %c0_i32 = arith.constant 0 : i32
    %c0_i32_0 = arith.constant 0 : i32
    %c0_i32_1 = arith.constant 0 : i32
    %c0_i32_2 = arith.constant 0 : i32
    %c0_i32_3 = arith.constant 0 : i32
    return %c0_i32, %c0_i32_0, %c0_i32_1, %c0_i32_2 : i32, i32, i32, i32
  }
  func.func @transform_11(%arg0: i32) -> (i32, i32, i32) {
    %c0_i32 = arith.constant 0 : i32
    %c0_i32_0 = arith.constant 0 : i32
    %c0_i32_1 = arith.constant 0 : i32
    %c0_i32_2 = arith.constant 0 : i32
    return %c0_i32, %c0_i32_0, %c0_i32_1 : i32, i32, i32
  }
  func.func @transform_12(%arg0: i32) -> (i32, i32, i32) {
    %c0_i32 = arith.constant 0 : i32
    %c0_i32_0 = arith.constant 0 : i32
    %c0_i32_1 = arith.constant 0 : i32
    %c0_i32_2 = arith.constant 0 : i32
    return %c0_i32, %c0_i32_0, %c0_i32_1 : i32, i32, i32
  }
  func.func @transform_13(%arg0: i32) -> (i32, i32, i32) {
    %c0_i32 = arith.constant 0 : i32
    %c0_i32_0 = arith.constant 0 : i32
    %c0_i32_1 = arith.constant 0 : i32
    %c0_i32_2 = arith.constant 0 : i32
    return %c0_i32, %c0_i32_0, %c0_i32_1 : i32, i32, i32
  }
  func.func @transform_14(%arg0: i32) -> (i32, i32, i32) {
    %c0_i32 = arith.constant 0 : i32
    %c0_i32_0 = arith.constant 0 : i32
    %c0_i32_1 = arith.constant 0 : i32
    %c0_i32_2 = arith.constant 0 : i32
    return %c0_i32, %c0_i32_0, %c0_i32_1 : i32, i32, i32
  }
  func.func @transform_15(%arg0: i32) -> (i32, i32, i32) {
    %c0_i32 = arith.constant 0 : i32
    %c0_i32_0 = arith.constant 0 : i32
    %c0_i32_1 = arith.constant 0 : i32
    %c0_i32_2 = arith.constant 0 : i32
    return %c0_i32, %c0_i32_0, %c0_i32_1 : i32, i32, i32
  }
  func.func @transform_16(%arg0: i32) -> (i32, i32, i32) {
    %c0_i32 = arith.constant 0 : i32
    %c0_i32_0 = arith.constant 0 : i32
    %c0_i32_1 = arith.constant 0 : i32
    %c0_i32_2 = arith.constant 0 : i32
    return %c0_i32, %c0_i32_0, %c0_i32_1 : i32, i32, i32
  }
  func.func @transform_17(%arg0: i32) -> (i32, i32, i32) {
    %c0_i32 = arith.constant 0 : i32
    %c0_i32_0 = arith.constant 0 : i32
    %c0_i32_1 = arith.constant 0 : i32
    %c0_i32_2 = arith.constant 0 : i32
    return %c0_i32, %c0_i32_0, %c0_i32_1 : i32, i32, i32
  }
  func.func @transform_18(%arg0: i32) -> (i32, i32, i32) {
    %c0_i32 = arith.constant 0 : i32
    %c0_i32_0 = arith.constant 0 : i32
    %c0_i32_1 = arith.constant 0 : i32
    %c0_i32_2 = arith.constant 0 : i32
    return %c0_i32, %c0_i32_0, %c0_i32_1 : i32, i32, i32
  }
  func.func @transform_19(%arg0: i32) -> (i32, i32, i32) {
    %c0_i32 = arith.constant 0 : i32
    %c0_i32_0 = arith.constant 0 : i32
    %c0_i32_1 = arith.constant 0 : i32
    %c0_i32_2 = arith.constant 0 : i32
    return %c0_i32, %c0_i32_0, %c0_i32_1 : i32, i32, i32
  }
  func.func @transform_20(%arg0: i32) -> (i32, i32) {
    %c0_i32 = arith.constant 0 : i32
    %c0_i32_0 = arith.constant 0 : i32
    %c0_i32_1 = arith.constant 0 : i32
    return %c0_i32, %c0_i32_0 : i32, i32
  }
  func.func @transform_21(%arg0: i32) -> (i32, i32) {
    %c0_i32 = arith.constant 0 : i32
    %c0_i32_0 = arith.constant 0 : i32
    %c0_i32_1 = arith.constant 0 : i32
    return %c0_i32, %c0_i32_0 : i32, i32
  }
  func.func @transform_22(%arg0: i32) -> (i32, i32, i32) {
    %c0_i32 = arith.constant 0 : i32
    %c0_i32_0 = arith.constant 0 : i32
    %c0_i32_1 = arith.constant 0 : i32
    return %arg0, %c0_i32, %c0_i32_0 : i32, i32, i32
  }
  func.func @transform_23(%arg0: i32) -> (i32, i32, i32) {
    %c0_i32 = arith.constant 0 : i32
    %c0_i32_0 = arith.constant 0 : i32
    %c0_i32_1 = arith.constant 0 : i32
    return %arg0, %c0_i32, %c0_i32_0 : i32, i32, i32
  }
}

</mosaic_0001>

<llo_original>
// kernel: bert_classifier_forward.1
$region0: #{bert_classifier_forward.1}
  #allocation0 [shape = 'u32[]', space=smem, size = 0x4, offset = 0x4, fixed_abs, tag = 'smem constant byte address 0x4 - core index']
  #allocation1 [shape = 'u32[144,128]{1,0:T(1,128)}', space=vmem, size = 0x12000, scoped, tag = 'internal scratch']
  %s0 = inlined_call_operand.vmem [shape: s32[2,8,1], index: 0, kind: input, shape index: {}]
  %s1 = inlined_call_operand.vmem [shape: s32[2,8,1], index: 1, kind: input, shape index: {}]
  %s2 = inlined_call_operand.vmem [shape: s32[2,1,8], index: 2, kind: input, shape index: {}]
  %s3 = inlined_call_operand.vmem [shape: f32[64,128], index: 3, kind: input, shape index: {}]
  %s4 = inlined_call_operand.vmem [shape: f32[16,128], index: 4, kind: input, shape index: {}]
  %s5 = inlined_call_operand.vmem [shape: f32[8,128], index: 5, kind: input, shape index: {}]
  %s6 = inlined_call_operand.vmem [shape: f32[1,128], index: 6, kind: input, shape index: {}]
  %s7 = inlined_call_operand.hbm [shape: f32[1,128], index: 7, kind: input, shape index: {}]
  %s8 = inlined_call_operand.hbm [shape: bf16[2,128,384], index: 8, kind: input, shape index: {}]
  %s9 = inlined_call_operand.vmem [shape: f32[2,1,384], index: 9, kind: input, shape index: {}]
  %s10 = inlined_call_operand.hbm [shape: bf16[2,2,64,128], index: 10, kind: input, shape index: {}]
  %s11 = inlined_call_operand.vmem [shape: f32[2,1,128], index: 11, kind: input, shape index: {}]
  %s12 = inlined_call_operand.vmem [shape: f32[2,1,128], index: 12, kind: input, shape index: {}]
  %s13 = inlined_call_operand.vmem [shape: f32[2,1,128], index: 13, kind: input, shape index: {}]
  %s14 = inlined_call_operand.hbm [shape: bf16[2,128,256], index: 14, kind: input, shape index: {}]
  %s15 = inlined_call_operand.vmem [shape: f32[2,1,256], index: 15, kind: input, shape index: {}]
  %s16 = inlined_call_operand.hbm [shape: bf16[2,256,128], index: 16, kind: input, shape index: {}]
  %s17 = inlined_call_operand.vmem [shape: f32[2,1,128], index: 17, kind: input, shape index: {}]
  %s18 = inlined_call_operand.vmem [shape: f32[2,1,128], index: 18, kind: input, shape index: {}]
  %s19 = inlined_call_operand.hbm [shape: f32[2,1,128], index: 19, kind: input, shape index: {}]
  %s20 = inlined_call_operand.hbm [shape: bf16[128,128], index: 20, kind: input, shape index: {}]
  %s21 = inlined_call_operand.hbm [shape: f32[1,128], index: 21, kind: input, shape index: {}]
  %s22 = inlined_call_operand.hbm [shape: f32[2,8,128], index: 22, kind: output, shape index: {0}]
  %s23 = inlined_call_operand.hbm [shape: f32[2,1,128], index: 23, kind: output, shape index: {1}]
  %24 = xla_tuple %s22, %s23
  %s25 = sld [smem:[#allocation0]]
  $region161: #{bert_classifier_forward.1} parent=0
    _
  %s27 = ssub.s32 1, %s25
  %s28 = scalar_select 0, %s27, %s25
  $region1: #{bert_classifier_forward.1} parent=0
    #allocation2 [shape = 'u8[512]{0}', space=vmem, size = 0x400, scoped, tag = 'input window, operand 7, single buffered']
    #allocation3 [shape = 's32[2]{0}', space=sflag, size = 0x8, scoped, tag = 'scoped memory for bert_classifier_forward.1']
    #allocation4 [shape = 's32[2]{0}', space=sflag, size = 0x8, scoped, tag = 'scoped memory for bert_classifier_forward.1']
    #allocation5 [shape = 'u8[196608]{0}', space=vmem, size = 0x30000, scoped, tag = 'input window, operand 8, single buffered']
    #allocation6 [shape = 's32[1]{0}', space=sflag, size = 0x4, scoped, tag = 'scoped memory for bert_classifier_forward.1']
    #allocation7 [shape = 'u8[65536]{0}', space=vmem, size = 0x10000, scoped, tag = 'input window, operand 10, single buffered']
    #allocation8 [shape = 'u8[131072]{0}', space=vmem, size = 0x20000, scoped, tag = 'input window, operand 14, single buffered']
    #allocation9 [shape = 's32[1]{0}', space=sflag, size = 0x4, scoped, tag = 'scoped memory for bert_classifier_forward.1']
    #allocation10 [shape = 'u8[131072]{0}', space=vmem, size = 0x20000, scoped, tag = 'input window, operand 16, single buffered']
    #allocation11 [shape = 'u8[1024]{0}', space=vmem, size = 0x400, scoped, tag = 'input window, operand 19, single buffered']
    #allocation12 [shape = 's32[1]{0}', space=sflag, size = 0x4, scoped, tag = 'scoped memory for bert_classifier_forward.1']
    #allocation13 [shape = 'u8[32768]{0}', space=vmem, size = 0x8000, scoped, tag = 'input window, operand 20, single buffered']
    #allocation14 [shape = 'u8[512]{0}', space=vmem, size = 0x400, scoped, tag = 'input window, operand 21, single buffered']
    #allocation15 [shape = 's32[1]{0}', space=sflag, size = 0x4, scoped, tag = 'scoped memory for bert_classifier_forward.1']
    #allocation16 [shape = 'u8[8192]{0}', space=vmem, size = 0x2000, scoped, tag = 'output window, operand 0']
    #allocation17 [shape = 'u8[1024]{0}', space=vmem, size = 0x400, scoped, tag = 'output window, operand 1']
    #allocation18 [shape = 's32[2]{0}', space=sflag, size = 0x8, scoped, tag = 'scoped memory for bert_classifier_forward.1']
    %29 = vsyncpa [#allocation3], 0
    %30 = vsyncpa [#allocation6], 0
    %31 = vsyncpa [#allocation9], 0
    %32 = vsyncpa [#allocation12], 0
    %33 = vsyncpa [#allocation15], 0
    %34 = vsyncpa [#allocation4], 0
    %s35 = scalar_lea.sflag [#allocation4], 1
    %36 = vsyncpa %s35, 0
    %37 = vsyncpa [#allocation18], 0
    %s38 = scalar_lea.sflag [#allocation18], 1
    %39 = vsyncpa %s38, 0
    loop: start=0, step=1, limit=4
    $region2: #{bert_classifier_forward.1} parent=1 // loop_pre_header
      _
    $region3: #{bert_classifier_forward.1} parent=1 // loop_header
      %s41 = sphi 0, %s45
      %p42 = scmp.ge.s32.totalorder %s41, 4
      %s51 = sphi 0, %s53
      %s54 = sphi 0, %s51
      %s55 = sphi 0, %s54
      %s71 = sphi 0, %s55
      %s77 = sphi 0, %s79
      %s80 = sphi 0, %s77
      %s81 = sphi 0, %s80
      %s97 = sphi 0, %s81
      %s103 = sphi 0, %s105
      %s106 = sphi 0, %s103
      %s107 = sphi 0, %s106
      %s123 = sphi 0, %s107
      %s127 = sphi 0, %s127
      %s129 = sphi 0, %s127
      %s130 = sphi 0, %s129
      %s144 = sphi 0, %s130
      %s148 = sphi 0, %s148
      %s150 = sphi 0, %s148
      %s151 = sphi 0, %s150
      %s165 = sphi 0, %s151
      %s169 = sphi 0, %s169
      %s171 = sphi 0, %s169
      %s172 = sphi 0, %s171
      %s186 = sphi 0, %s172
      %s190 = sphi 0, %s190
      %s192 = sphi 0, %s190
      %s193 = sphi 0, %s192
      %s207 = sphi 0, %s193
      %s211 = sphi 0, %s211
      %s213 = sphi 0, %s211
      %s214 = sphi 0, %s213
      %s228 = sphi 0, %s214
      %s232 = sphi 0, %s232
      %s234 = sphi 0, %s232
      %s235 = sphi 0, %s234
      %s249 = sphi 0, %s235
      %s253 = sphi 0, %s253
      %s255 = sphi 0, %s253
      %s256 = sphi 0, %s255
      %s270 = sphi 0, %s256
      %s274 = sphi 0, %s274
      %s276 = sphi 0, %s274
      %s277 = sphi 0, %s276
      %s291 = sphi 0, %s277
      %s295 = sphi 0, %s295
      %s297 = sphi 0, %s295
      %s298 = sphi 0, %s297
      %s312 = sphi 0, %s298
      %s316 = sphi 0, %s316
      %s318 = sphi 0, %s316
      %s319 = sphi 0, %s318
      %s333 = sphi 0, %s319
      %s337 = sphi 0, %s337
      %s339 = sphi 0, %s337
      %s340 = sphi 0, %s339
      %s354 = sphi 0, %s340
      %s358 = sphi 0, %s358
      %s360 = sphi 0, %s358
      %s361 = sphi 0, %s360
      %s375 = sphi 0, %s361
      %s379 = sphi 0, %s379
      %s381 = sphi 0, %s379
      %s382 = sphi 0, %s381
      %s396 = sphi 0, %s382
      %s400 = sphi 0, %s400
      %s402 = sphi 0, %s400
      %s403 = sphi 0, %s402
      %s417 = sphi 0, %s403
      %s421 = sphi 0, %s421
      %s423 = sphi 0, %s421
      %s424 = sphi 0, %s423
      %s438 = sphi 0, %s424
      %s442 = sphi 0, %s442
      %s444 = sphi 0, %s442
      %s445 = sphi 0, %s444
      %s459 = sphi 0, %s445
      %s463 = sphi 0, %s463
      %s465 = sphi 0, %s463
      %s466 = sphi 0, %s465
      %s480 = sphi 0, %s466
      %s484 = sphi 0, %s484
      %s486 = sphi 0, %s484
      %s487 = sphi 0, %s486
      %s501 = sphi 0, %s487
      %s505 = sphi 0, %s505
      %s507 = sphi 0, %s505
      %s508 = sphi 0, %s507
      %s522 = sphi 0, %s508
      %s528 = sphi 0, %s530
      %s531 = sphi 0, %s528
      %s532 = sphi 0, %s531
      %s548 = sphi 0, %s532
      %s554 = sphi 0, %s556
      %s557 = sphi 0, %s554
      %s558 = sphi 0, %s557
      %s574 = sphi 0, %s558
    $region4: #{bert_classifier_forward.1} parent=1 // loop_header_branch
      %44 = sbr.rel (%p42) target = $region8
    $region5: #{bert_classifier_forward.1} parent=1 // loop_body
      %s46 = ssub.s32 %s41, 1
      %s47 = ssub.s32 %s41, 2
      %s48 = sadd.s32 %s41, 1
      %s49 = ssub.s32 %s41, %s48
      %p50 = scmp.eq.s32.totalorder %s49, 0
      %s52 = sadd.s32 %s51, 1
      %s53 = scalar_select %p50, %s51, %s52
      %p56 = pneg %p50
      %p57 = scmp.eq.s32.totalorder %s41, 1
      %p58 = por %p56, %p57
      %p59 = scmp.ne.s32.totalorder %s51, %s54
      %p60 = scmp.eq.s32.totalorder %s41, 0
      %p61 = por %p59, %p60
      %p62 = scmp.ne.s32.totalorder %s51, %s54
      %p63 = scmp.eq.s32.totalorder %s46, 1
      %p64 = por %p62, %p63
      %p65 = scmp.ne.s32.totalorder %s54, %s55
      %p66 = scmp.eq.s32.totalorder %s46, 0
      %p67 = por %p65, %p66
      %p68 = scmp.ne.s32.totalorder %s54, %s55
      %p69 = scmp.eq.s32.totalorder %s47, 1
      %p70 = por %p68, %p69
      %p72 = scmp.ne.s32.totalorder %s55, %s71
      %p73 = scmp.eq.s32.totalorder %s47, 0
      %p74 = por %p72, %p73
      %s75 = ssub.s32 %s41, %s48
      %p76 = scmp.eq.s32.totalorder %s75, 0
      %s78 = sadd.s32 %s77, 1
      %s79 = scalar_select %p76, %s77, %s78
      %p82 = pneg %p76
      %p83 = scmp.eq.s32.totalorder %s41, 1
      %p84 = por %p82, %p83
      %p85 = scmp.ne.s32.totalorder %s77, %s80
      %p86 = scmp.eq.s32.totalorder %s41, 0
      %p87 = por %p85, %p86
      %p88 = scmp.ne.s32.totalorder %s77, %s80
      %p89 = scmp.eq.s32.totalorder %s46, 1
      %p90 = por %p88, %p89
      %p91 = scmp.ne.s32.totalorder %s80, %s81
      %p92 = scmp.eq.s32.totalorder %s46, 0
      %p93 = por %p91, %p92
      %p94 = scmp.ne.s32.totalorder %s80, %s81
      %p95 = scmp.eq.s32.totalorder %s47, 1
      %p96 = por %p94, %p95
      %p98 = scmp.ne.s32.totalorder %s81, %s97
      %p99 = scmp.eq.s32.totalorder %s47, 0
      %p100 = por %p98, %p99
      %s101 = ssub.s32 %s41, %s48
      %p102 = scmp.eq.s32.totalorder %s101, 0
      %s104 = sadd.s32 %s103, 1
      %s105 = scalar_select %p102, %s103, %s104
      %p108 = pneg %p102
      %p109 = scmp.eq.s32.totalorder %s41, 1
      %p110 = por %p108, %p109
      %p111 = scmp.ne.s32.totalorder %s103, %s106
      %p112 = scmp.eq.s32.totalorder %s41, 0
      %p113 = por %p111, %p112
      %p114 = scmp.ne.s32.totalorder %s103, %s106
      %p115 = scmp.eq.s32.totalorder %s46, 1
      %p116 = por %p114, %p115
      %p117 = scmp.ne.s32.totalorder %s106, %s107
      %p118 = scmp.eq.s32.totalorder %s46, 0
      %p119 = por %p117, %p118
      %p120 = scmp.ne.s32.totalorder %s106, %s107
      %p121 = scmp.eq.s32.totalorder %s47, 1
      %p122 = por %p120, %p121
      %p124 = scmp.ne.s32.totalorder %s107, %s123
      %p125 = scmp.eq.s32.totalorder %s47, 0
      %p126 = por %p124, %p125
      %s128 = sadd.s32 %s127, 1
      %p131 = scmp.eq.s32.totalorder %s41, 1
      %p132 = scmp.ne.s32.totalorder %s127, %s129
      %p133 = scmp.eq.s32.totalorder %s41, 0
      %p134 = por %p132, %p133
      %p135 = scmp.ne.s32.totalorder %s127, %s129
      %p136 = scmp.eq.s32.totalorder %s46, 1
      %p137 = por %p135, %p136
      %p138 = scmp.ne.s32.totalorder %s129, %s130
      %p139 = scmp.eq.s32.totalorder %s46, 0
      %p140 = por %p138, %p139
      %p141 = scmp.ne.s32.totalorder %s129, %s130
      %p142 = scmp.eq.s32.totalorder %s47, 1
      %p143 = por %p141, %p142
      %p145 = scmp.ne.s32.totalorder %s130, %s144
      %p146 = scmp.eq.s32.totalorder %s47, 0
      %p147 = por %p145, %p146
      %s149 = sadd.s32 %s148, 1
      %p152 = scmp.eq.s32.totalorder %s41, 1
      %p153 = scmp.ne.s32.totalorder %s148, %s150
      %p154 = scmp.eq.s32.totalorder %s41, 0
      %p155 = por %p153, %p154
      %p156 = scmp.ne.s32.totalorder %s148, %s150
      %p157 = scmp.eq.s32.totalorder %s46, 1
      %p158 = por %p156, %p157
      %p159 = scmp.ne.s32.totalorder %s150, %s151
      %p160 = scmp.eq.s32.totalorder %s46, 0
      %p161 = por %p159, %p160
      %p162 = scmp.ne.s32.totalorder %s150, %s151
      %p163 = scmp.eq.s32.totalorder %s47, 1
      %p164 = por %p162, %p163
      %p166 = scmp.ne.s32.totalorder %s151, %s165
      %p167 = scmp.eq.s32.totalorder %s47, 0
      %p168 = por %p166, %p167
      %s170 = sadd.s32 %s169, 1
      %p173 = scmp.eq.s32.totalorder %s41, 1
      %p174 = scmp.ne.s32.totalorder %s169, %s171
      %p175 = scmp.eq.s32.totalorder %s41, 0
      %p176 = por %p174, %p175
      %p177 = scmp.ne.s32.totalorder %s169, %s171
      %p178 = scmp.eq.s32.totalorder %s46, 1
      %p179 = por %p177, %p178
      %p180 = scmp.ne.s32.totalorder %s171, %s172
      %p181 = scmp.eq.s32.totalorder %s46, 0
      %p182 = por %p180, %p181
      %p183 = scmp.ne.s32.totalorder %s171, %s172
      %p184 = scmp.eq.s32.totalorder %s47, 1
      %p185 = por %p183, %p184
      %p187 = scmp.ne.s32.totalorder %s172, %s186
      %p188 = scmp.eq.s32.totalorder %s47, 0
      %p189 = por %p187, %p188
      %s191 = sadd.s32 %s190, 1
      %p194 = scmp.eq.s32.totalorder %s41, 1
      %p195 = scmp.ne.s32.totalorder %s190, %s192
      %p196 = scmp.eq.s32.totalorder %s41, 0
      %p197 = por %p195, %p196
      %p198 = scmp.ne.s32.totalorder %s190, %s192
      %p199 = scmp.eq.s32.totalorder %s46, 1
      %p200 = por %p198, %p199
      %p201 = scmp.ne.s32.totalorder %s192, %s193
      %p202 = scmp.eq.s32.totalorder %s46, 0
      %p203 = por %p201, %p202
      %p204 = scmp.ne.s32.totalorder %s192, %s193
      %p205 = scmp.eq.s32.totalorder %s47, 1
      %p206 = por %p204, %p205
      %p208 = scmp.ne.s32.totalorder %s193, %s207
      %p209 = scmp.eq.s32.totalorder %s47, 0
      %p210 = por %p208, %p209
      %s212 = sadd.s32 %s211, 1
      %p215 = scmp.eq.s32.totalorder %s41, 1
      %p216 = scmp.ne.s32.totalorder %s211, %s213
      %p217 = scmp.eq.s32.totalorder %s41, 0
      %p218 = por %p216, %p217
      %p219 = scmp.ne.s32.totalorder %s211, %s213
      %p220 = scmp.eq.s32.totalorder %s46, 1
      %p221 = por %p219, %p220
      %p222 = scmp.ne.s32.totalorder %s213, %s214
      %p223 = scmp.eq.s32.totalorder %s46, 0
      %p224 = por %p222, %p223
      %p225 = scmp.ne.s32.totalorder %s213, %s214
      %p226 = scmp.eq.s32.totalorder %s47, 1
      %p227 = por %p225, %p226
      %p229 = scmp.ne.s32.totalorder %s214, %s228
      %p230 = scmp.eq.s32.totalorder %s47, 0
      %p231 = por %p229, %p230
      %s233 = sadd.s32 %s232, 1
      %p236 = scmp.eq.s32.totalorder %s41, 1
      %p237 = scmp.ne.s32.totalorder %s232, %s234
      %p238 = scmp.eq.s32.totalorder %s41, 0
      %p239 = por %p237, %p238
      %p240 = scmp.ne.s32.totalorder %s232, %s234
      %p241 = scmp.eq.s32.totalorder %s46, 1
      %p242 = por %p240, %p241
      %p243 = scmp.ne.s32.totalorder %s234, %s235
      %p244 = scmp.eq.s32.totalorder %s46, 0
      %p245 = por %p243, %p244
      %p246 = scmp.ne.s32.totalorder %s234, %s235
      %p247 = scmp.eq.s32.totalorder %s47, 1
      %p248 = por %p246, %p247
      %p250 = scmp.ne.s32.totalorder %s235, %s249
      %p251 = scmp.eq.s32.totalorder %s47, 0
      %p252 = por %p250, %p251
      %s254 = sadd.s32 %s253, 1
      %p257 = scmp.eq.s32.totalorder %s41, 1
      %p258 = scmp.ne.s32.totalorder %s253, %s255
      %p259 = scmp.eq.s32.totalorder %s41, 0
      %p260 = por %p258, %p259
      %p261 = scmp.ne.s32.totalorder %s253, %s255
      %p262 = scmp.eq.s32.totalorder %s46, 1
      %p263 = por %p261, %p262
      %p264 = scmp.ne.s32.totalorder %s255, %s256
      %p265 = scmp.eq.s32.totalorder %s46, 0
      %p266 = por %p264, %p265
      %p267 = scmp.ne.s32.totalorder %s255, %s256
      %p268 = scmp.eq.s32.totalorder %s47, 1
      %p269 = por %p267, %p268
      %p271 = scmp.ne.s32.totalorder %s256, %s270
      %p272 = scmp.eq.s32.totalorder %s47, 0
      %p273 = por %p271, %p272
      %s275 = sadd.s32 %s274, 1
      %p278 = scmp.eq.s32.totalorder %s41, 1
      %p279 = scmp.ne.s32.totalorder %s274, %s276
      %p280 = scmp.eq.s32.totalorder %s41, 0
      %p281 = por %p279, %p280
      %p282 = scmp.ne.s32.totalorder %s274, %s276
      %p283 = scmp.eq.s32.totalorder %s46, 1
      %p284 = por %p282, %p283
      %p285 = scmp.ne.s32.totalorder %s276, %s277
      %p286 = scmp.eq.s32.totalorder %s46, 0
      %p287 = por %p285, %p286
      %p288 = scmp.ne.s32.totalorder %s276, %s277
      %p289 = scmp.eq.s32.totalorder %s47, 1
      %p290 = por %p288, %p289
      %p292 = scmp.ne.s32.totalorder %s277, %s291
      %p293 = scmp.eq.s32.totalorder %s47, 0
      %p294 = por %p292, %p293
      %s296 = sadd.s32 %s295, 1
      %p299 = scmp.eq.s32.totalorder %s41, 1
      %p300 = scmp.ne.s32.totalorder %s295, %s297
      %p301 = scmp.eq.s32.totalorder %s41, 0
      %p302 = por %p300, %p301
      %p303 = scmp.ne.s32.totalorder %s295, %s297
      %p304 = scmp.eq.s32.totalorder %s46, 1
      %p305 = por %p303, %p304
      %p306 = scmp.ne.s32.totalorder %s297, %s298
      %p307 = scmp.eq.s32.totalorder %s46, 0
      %p308 = por %p306, %p307
      %p309 = scmp.ne.s32.totalorder %s297, %s298
      %p310 = scmp.eq.s32.totalorder %s47, 1
      %p311 = por %p309, %p310
      %p313 = scmp.ne.s32.totalorder %s298, %s312
      %p314 = scmp.eq.s32.totalorder %s47, 0
      %p315 = por %p313, %p314
      %s317 = sadd.s32 %s316, 1
      %p320 = scmp.eq.s32.totalorder %s41, 1
      %p321 = scmp.ne.s32.totalorder %s316, %s318
      %p322 = scmp.eq.s32.totalorder %s41, 0
      %p323 = por %p321, %p322
      %p324 = scmp.ne.s32.totalorder %s316, %s318
      %p325 = scmp.eq.s32.totalorder %s46, 1
      %p326 = por %p324, %p325
      %p327 = scmp.ne.s32.totalorder %s318, %s319
      %p328 = scmp.eq.s32.totalorder %s46, 0
      %p329 = por %p327, %p328
      %p330 = scmp.ne.s32.totalorder %s318, %s319
      %p331 = scmp.eq.s32.totalorder %s47, 1
      %p332 = por %p330, %p331
      %p334 = scmp.ne.s32.totalorder %s319, %s333
      %p335 = scmp.eq.s32.totalorder %s47, 0
      %p336 = por %p334, %p335
      %s338 = sadd.s32 %s337, 1
      %p341 = scmp.eq.s32.totalorder %s41, 1
      %p342 = scmp.ne.s32.totalorder %s337, %s339
      %p343 = scmp.eq.s32.totalorder %s41, 0
      %p344 = por %p342, %p343
      %p345 = scmp.ne.s32.totalorder %s337, %s339
      %p346 = scmp.eq.s32.totalorder %s46, 1
      %p347 = por %p345, %p346
      %p348 = scmp.ne.s32.totalorder %s339, %s340
      %p349 = scmp.eq.s32.totalorder %s46, 0
      %p350 = por %p348, %p349
      %p351 = scmp.ne.s32.totalorder %s339, %s340
      %p352 = scmp.eq.s32.totalorder %s47, 1
      %p353 = por %p351, %p352
      %p355 = scmp.ne.s32.totalorder %s340, %s354
      %p356 = scmp.eq.s32.totalorder %s47, 0
      %p357 = por %p355, %p356
      %s359 = sadd.s32 %s358, 1
      %p362 = scmp.eq.s32.totalorder %s41, 1
      %p363 = scmp.ne.s32.totalorder %s358, %s360
      %p364 = scmp.eq.s32.totalorder %s41, 0
      %p365 = por %p363, %p364
      %p366 = scmp.ne.s32.totalorder %s358, %s360
      %p367 = scmp.eq.s32.totalorder %s46, 1
      %p368 = por %p366, %p367
      %p369 = scmp.ne.s32.totalorder %s360, %s361
      %p370 = scmp.eq.s32.totalorder %s46, 0
      %p371 = por %p369, %p370
      %p372 = scmp.ne.s32.totalorder %s360, %s361
      %p373 = scmp.eq.s32.totalorder %s47, 1
      %p374 = por %p372, %p373
      %p376 = scmp.ne.s32.totalorder %s361, %s375
      %p377 = scmp.eq.s32.totalorder %s47, 0
      %p378 = por %p376, %p377
      %s380 = sadd.s32 %s379, 1
      %p383 = scmp.eq.s32.totalorder %s41, 1
      %p384 = scmp.ne.s32.totalorder %s379, %s381
      %p385 = scmp.eq.s32.totalorder %s41, 0
      %p386 = por %p384, %p385
      %p387 = scmp.ne.s32.totalorder %s379, %s381
      %p388 = scmp.eq.s32.totalorder %s46, 1
      %p389 = por %p387, %p388
      %p390 = scmp.ne.s32.totalorder %s381, %s382
      %p391 = scmp.eq.s32.totalorder %s46, 0
      %p392 = por %p390, %p391
      %p393 = scmp.ne.s32.totalorder %s381, %s382
      %p394 = scmp.eq.s32.totalorder %s47, 1
      %p395 = por %p393, %p394
      %p397 = scmp.ne.s32.totalorder %s382, %s396
      %p398 = scmp.eq.s32.totalorder %s47, 0
      %p399 = por %p397, %p398
      %s401 = sadd.s32 %s400, 1
      %p404 = scmp.eq.s32.totalorder %s41, 1
      %p405 = scmp.ne.s32.totalorder %s400, %s402
      %p406 = scmp.eq.s32.totalorder %s41, 0
      %p407 = por %p405, %p406
      %p408 = scmp.ne.s32.totalorder %s400, %s402
      %p409 = scmp.eq.s32.totalorder %s46, 1
      %p410 = por %p408, %p409
      %p411 = scmp.ne.s32.totalorder %s402, %s403
      %p412 = scmp.eq.s32.totalorder %s46, 0
      %p413 = por %p411, %p412
      %p414 = scmp.ne.s32.totalorder %s402, %s403
      %p415 = scmp.eq.s32.totalorder %s47, 1
      %p416 = por %p414, %p415
      %p418 = scmp.ne.s32.totalorder %s403, %s417
      %p419 = scmp.eq.s32.totalorder %s47, 0
      %p420 = por %p418, %p419
      %s422 = sadd.s32 %s421, 1
      %p425 = scmp.eq.s32.totalorder %s41, 1
      %p426 = scmp.ne.s32.totalorder %s421, %s423
      %p427 = scmp.eq.s32.totalorder %s41, 0
      %p428 = por %p426, %p427
      %p429 = scmp.ne.s32.totalorder %s421, %s423
      %p430 = scmp.eq.s32.totalorder %s46, 1
      %p431 = por %p429, %p430
      %p432 = scmp.ne.s32.totalorder %s423, %s424
      %p433 = scmp.eq.s32.totalorder %s46, 0
      %p434 = por %p432, %p433
      %p435 = scmp.ne.s32.totalorder %s423, %s424
      %p436 = scmp.eq.s32.totalorder %s47, 1
      %p437 = por %p435, %p436
      %p439 = scmp.ne.s32.totalorder %s424, %s438
      %p440 = scmp.eq.s32.totalorder %s47, 0
      %p441 = por %p439, %p440
      %s443 = sadd.s32 %s442, 1
      %p446 = scmp.eq.s32.totalorder %s41, 1
      %p447 = scmp.ne.s32.totalorder %s442, %s444
      %p448 = scmp.eq.s32.totalorder %s41, 0
      %p449 = por %p447, %p448
      %p450 = scmp.ne.s32.totalorder %s442, %s444
      %p451 = scmp.eq.s32.totalorder %s46, 1
      %p452 = por %p450, %p451
      %p453 = scmp.ne.s32.totalorder %s444, %s445
      %p454 = scmp.eq.s32.totalorder %s46, 0
      %p455 = por %p453, %p454
      %p456 = scmp.ne.s32.totalorder %s444, %s445
      %p457 = scmp.eq.s32.totalorder %s47, 1
      %p458 = por %p456, %p457
      %p460 = scmp.ne.s32.totalorder %s445, %s459
      %p461 = scmp.eq.s32.totalorder %s47, 0
      %p462 = por %p460, %p461
      %s464 = sadd.s32 %s463, 1
      %p467 = scmp.eq.s32.totalorder %s41, 1
      %p468 = scmp.ne.s32.totalorder %s463, %s465
      %p469 = scmp.eq.s32.totalorder %s41, 0
      %p470 = por %p468, %p469
      %p471 = scmp.ne.s32.totalorder %s463, %s465
      %p472 = scmp.eq.s32.totalorder %s46, 1
      %p473 = por %p471, %p472
      %p474 = scmp.ne.s32.totalorder %s465, %s466
      %p475 = scmp.eq.s32.totalorder %s46, 0
      %p476 = por %p474, %p475
      %p477 = scmp.ne.s32.totalorder %s465, %s466
      %p478 = scmp.eq.s32.totalorder %s47, 1
      %p479 = por %p477, %p478
      %p481 = scmp.ne.s32.totalorder %s466, %s480
      %p482 = scmp.eq.s32.totalorder %s47, 0
      %p483 = por %p481, %p482
      %s485 = sadd.s32 %s484, 1
      %p488 = scmp.eq.s32.totalorder %s41, 1
      %p489 = scmp.ne.s32.totalorder %s484, %s486
      %p490 = scmp.eq.s32.totalorder %s41, 0
      %p491 = por %p489, %p490
      %p492 = scmp.ne.s32.totalorder %s484, %s486
      %p493 = scmp.eq.s32.totalorder %s46, 1
      %p494 = por %p492, %p493
      %p495 = scmp.ne.s32.totalorder %s486, %s487
      %p496 = scmp.eq.s32.totalorder %s46, 0
      %p497 = por %p495, %p496
      %p498 = scmp.ne.s32.totalorder %s486, %s487
      %p499 = scmp.eq.s32.totalorder %s47, 1
      %p500 = por %p498, %p499
      %p502 = scmp.ne.s32.totalorder %s487, %s501
      %p503 = scmp.eq.s32.totalorder %s47, 0
      %p504 = por %p502, %p503
      %s506 = sadd.s32 %s505, 1
      %p509 = scmp.eq.s32.totalorder %s41, 1
      %p510 = scmp.ne.s32.totalorder %s505, %s507
      %p511 = scmp.eq.s32.totalorder %s41, 0
      %p512 = por %p510, %p511
      %p513 = scmp.ne.s32.totalorder %s505, %s507
      %p514 = scmp.eq.s32.totalorder %s46, 1
      %p515 = por %p513, %p514
      %p516 = scmp.ne.s32.totalorder %s507, %s508
      %p517 = scmp.eq.s32.totalorder %s46, 0
      %p518 = por %p516, %p517
      %p519 = scmp.ne.s32.totalorder %s507, %s508
      %p520 = scmp.eq.s32.totalorder %s47, 1
      %p521 = por %p519, %p520
      %p523 = scmp.ne.s32.totalorder %s508, %s522
      %p524 = scmp.eq.s32.totalorder %s47, 0
      %p525 = por %p523, %p524
      %s526 = ssub.s32 %s41, %s48
      %p527 = scmp.eq.s32.totalorder %s526, 0
      %s529 = sadd.s32 %s528, 1
      %s530 = scalar_select %p527, %s528, %s529
      %p533 = pneg %p527
      %p534 = scmp.eq.s32.totalorder %s41, 1
      %p535 = por %p533, %p534
      %p536 = scmp.ne.s32.totalorder %s528, %s531
      %p537 = scmp.eq.s32.totalorder %s41, 0
      %p538 = por %p536, %p537
      %p539 = scmp.ne.s32.totalorder %s528, %s531
      %p540 = scmp.eq.s32.totalorder %s46, 1
      %p541 = por %p539, %p540
      %p542 = scmp.ne.s32.totalorder %s531, %s532
      %p543 = scmp.eq.s32.totalorder %s46, 0
      %p544 = por %p542, %p543
      %p545 = scmp.ne.s32.totalorder %s531, %s532
      %p546 = scmp.eq.s32.totalorder %s47, 1
      %p547 = por %p545, %p546
      %p549 = scmp.ne.s32.totalorder %s532, %s548
      %p550 = scmp.eq.s32.totalorder %s47, 0
      %p551 = por %p549, %p550
      %s552 = ssub.s32 %s41, %s48
      %p553 = scmp.eq.s32.totalorder %s552, 0
      %s555 = sadd.s32 %s554, 1
      %s556 = scalar_select %p553, %s554, %s555
      %p559 = pneg %p553
      %p560 = scmp.eq.s32.totalorder %s41, 1
      %p561 = por %p559, %p560
      %p562 = scmp.ne.s32.totalorder %s554, %s557
      %p563 = scmp.eq.s32.totalorder %s41, 0
      %p564 = por %p562, %p563
      %p565 = scmp.ne.s32.totalorder %s554, %s557
      %p566 = scmp.eq.s32.totalorder %s46, 1
      %p567 = por %p565, %p566
      %p568 = scmp.ne.s32.totalorder %s557, %s558
      %p569 = scmp.eq.s32.totalorder %s46, 0
      %p570 = por %p568, %p569
      %p571 = scmp.ne.s32.totalorder %s557, %s558
      %p572 = scmp.eq.s32.totalorder %s47, 1
      %p573 = por %p571, %p572
      %p575 = scmp.ne.s32.totalorder %s558, %s574
      %p576 = scmp.eq.s32.totalorder %s47, 0
      %p577 = por %p575, %p576
      %p578 = scmp.le.s32.totalorder 1, %s41
      %p579 = scmp.lt.s32.totalorder %s41, 3
      %p580 = pnand %p578, %p579
      %p581 = pneg %p580
      // Predicated region
      $region9: #{bert_classifier_forward.1} parent=5 // pred_check
        _
      $region10: #{bert_classifier_forward.1} parent=5 // pred_check_branch
        %583 = sbr.rel (%p580) target = $region12
      $region11: #{bert_classifier_forward.1} parent=5 // pred_region
        %s584 = ssub.s32 %s41, 1
        // Predicated region
        $region13: #{bert_classifier_forward.1} parent=11 // pred_check
          %p585 = pneg %p140
        $region14: #{bert_classifier_forward.1} parent=11 // pred_check_branch
          %587 = sbr.rel (%p585) target = $region16
        $region15: #{bert_classifier_forward.1} parent=11 // pred_region
          _
        $region16: #{bert_classifier_forward.1} parent=11 // pred_fallthru
          _
        // Predicated region
        $region17: #{bert_classifier_forward.1} parent=11 // pred_check
          %p588 = pneg %p161
        $region18: #{bert_classifier_forward.1} parent=11 // pred_check_branch
          %590 = sbr.rel (%p588) target = $region20
        $region19: #{bert_classifier_forward.1} parent=11 // pred_region
          _
        $region20: #{bert_classifier_forward.1} parent=11 // pred_fallthru
          _
        // Predicated region
        $region21: #{bert_classifier_forward.1} parent=11 // pred_check
          %p591 = pneg %p182
        $region22: #{bert_classifier_forward.1} parent=11 // pred_check_branch
          %593 = sbr.rel (%p591) target = $region24
        $region23: #{bert_classifier_forward.1} parent=11 // pred_region
          _
        $region24: #{bert_classifier_forward.1} parent=11 // pred_fallthru
          _
        // Predicated region
        $region25: #{bert_classifier_forward.1} parent=11 // pred_check
          %p594 = pneg %p203
        $region26: #{bert_classifier_forward.1} parent=11 // pred_check_branch
          %596 = sbr.rel (%p594) target = $region28
        $region27: #{bert_classifier_forward.1} parent=11 // pred_region
          _
        $region28: #{bert_classifier_forward.1} parent=11 // pred_fallthru
          _
        // Predicated region
        $region29: #{bert_classifier_forward.1} parent=11 // pred_check
          %p597 = pneg %p224
        $region30: #{bert_classifier_forward.1} parent=11 // pred_check_branch
          %599 = sbr.rel (%p597) target = $region32
        $region31: #{bert_classifier_forward.1} parent=11 // pred_region
          %s601 = ssub.s32 16, 16
          %602 = vsyncadd [#allocation3], %s601
          %s604 = sshll.u32 [#allocation2], 4
          %s605 = int_to_ptr.vmem [resolvable:$true] %s604
          %607 = dma.hbm_to_vmem [thread:$0]  %s7, 16, %s605, [#allocation3]
        $region32: #{bert_classifier_forward.1} parent=11 // pred_fallthru
          _
        // Predicated region
        $region33: #{bert_classifier_forward.1} parent=11 // pred_check
          %p608 = pneg %p245
        $region34: #{bert_classifier_forward.1} parent=11 // pred_check_branch
          %610 = sbr.rel (%p608) target = $region36
        $region35: #{bert_classifier_forward.1} parent=11 // pred_region
          %s612 = ssub.s32 6144, 6144
          %613 = vsyncadd [#allocation6], %s612
          %s614 = sshll.u32 [#allocation5], 4
          %s615 = int_to_ptr.vmem [resolvable:$true] %s614
          %620 = dma.hbm_to_vmem [thread:$0]  %s8, 6144, %s615, [#allocation6], 192, 192, 12
        $region36: #{bert_classifier_forward.1} parent=11 // pred_fallthru
          _
        // Predicated region
        $region37: #{bert_classifier_forward.1} parent=11 // pred_check
          %p621 = pneg %p266
        $region38: #{bert_classifier_forward.1} parent=11 // pred_check_branch
          %623 = sbr.rel (%p621) target = $region40
        $region39: #{bert_classifier_forward.1} parent=11 // pred_region
          _
        $region40: #{bert_classifier_forward.1} parent=11 // pred_fallthru
          _
        // Predicated region
        $region41: #{bert_classifier_forward.1} parent=11 // pred_check
          %p624 = pneg %p287
        $region42: #{bert_classifier_forward.1} parent=11 // pred_check_branch
          %626 = sbr.rel (%p624) target = $region44
        $region43: #{bert_classifier_forward.1} parent=11 // pred_region
          %s628 = ssub.s32 2048, 2048
          %629 = vsyncadd [#allocation6], %s628
          %s630 = sshll.u32 [#allocation7], 4
          %s631 = int_to_ptr.vmem [resolvable:$true] %s630
          %636 = dma.hbm_to_vmem [thread:$0]  %s10, 2048, %s631, [#allocation6], 64, 64, 4
        $region44: #{bert_classifier_forward.1} parent=11 // pred_fallthru
          _
        // Predicated region
        $region45: #{bert_classifier_forward.1} parent=11 // pred_check
          %p637 = pneg %p308
        $region46: #{bert_classifier_forward.1} parent=11 // pred_check_branch
          %639 = sbr.rel (%p637) target = $region48
        $region47: #{bert_classifier_forward.1} parent=11 // pred_region
          _
        $region48: #{bert_classifier_forward.1} parent=11 // pred_fallthru
          _
        // Predicated region
        $region49: #{bert_classifier_forward.1} parent=11 // pred_check
          %p640 = pneg %p329
        $region50: #{bert_classifier_forward.1} parent=11 // pred_check_branch
          %642 = sbr.rel (%p640) target = $region52
        $region51: #{bert_classifier_forward.1} parent=11 // pred_region
          _
        $region52: #{bert_classifier_forward.1} parent=11 // pred_fallthru
          _
        // Predicated region
        $region53: #{bert_classifier_forward.1} parent=11 // pred_check
          %p643 = pneg %p350
        $region54: #{bert_classifier_forward.1} parent=11 // pred_check_branch
          %645 = sbr.rel (%p643) target = $region56
        $region55: #{bert_classifier_forward.1} parent=11 // pred_region
          _
        $region56: #{bert_classifier_forward.1} parent=11 // pred_fallthru
          _
        // Predicated region
        $region57: #{bert_classifier_forward.1} parent=11 // pred_check
          %p646 = pneg %p371
        $region58: #{bert_classifier_forward.1} parent=11 // pred_check_branch
          %648 = sbr.rel (%p646) target = $region60
        $region59: #{bert_classifier_forward.1} parent=11 // pred_region
          %s650 = ssub.s32 4096, 4096
          %651 = vsyncadd [#allocation9], %s650
          %s652 = sshll.u32 [#allocation8], 4
          %s653 = int_to_ptr.vmem [resolvable:$true] %s652
          %658 = dma.hbm_to_vmem [thread:$0]  %s14, 4096, %s653, [#allocation9], 128, 128, 8
        $region60: #{bert_classifier_forward.1} parent=11 // pred_fallthru
          _
        // Predicated region
        $region61: #{bert_classifier_forward.1} parent=11 // pred_check
          %p659 = pneg %p392
        $region62: #{bert_classifier_forward.1} parent=11 // pred_check_branch
          %661 = sbr.rel (%p659) target = $region64
        $region63: #{bert_classifier_forward.1} parent=11 // pred_region
          _
        $region64: #{bert_classifier_forward.1} parent=11 // pred_fallthru
          _
        // Predicated region
        $region65: #{bert_classifier_forward.1} parent=11 // pred_check
          %p662 = pneg %p413
        $region66: #{bert_classifier_forward.1} parent=11 // pred_check_branch
          %664 = sbr.rel (%p662) target = $region68
        $region67: #{bert_classifier_forward.1} parent=11 // pred_region
          %s666 = ssub.s32 4096, 4096
          %667 = vsyncadd [#allocation9], %s666
          %s668 = sshll.u32 [#allocation10], 4
          %s669 = int_to_ptr.vmem [resolvable:$true] %s668
          %674 = dma.hbm_to_vmem [thread:$0]  %s16, 4096, %s669, [#allocation9], 64, 64, 4
        $region68: #{bert_classifier_forward.1} parent=11 // pred_fallthru
          _
        // Predicated region
        $region69: #{bert_classifier_forward.1} parent=11 // pred_check
          %p675 = pneg %p434
        $region70: #{bert_classifier_forward.1} parent=11 // pred_check_branch
          %677 = sbr.rel (%p675) target = $region72
        $region71: #{bert_classifier_forward.1} parent=11 // pred_region
          _
        $region72: #{bert_classifier_forward.1} parent=11 // pred_fallthru
          _
        // Predicated region
        $region73: #{bert_classifier_forward.1} parent=11 // pred_check
          %p678 = pneg %p455
        $region74: #{bert_classifier_forward.1} parent=11 // pred_check_branch
          %680 = sbr.rel (%p678) target = $region76
        $region75: #{bert_classifier_forward.1} parent=11 // pred_region
          _
        $region76: #{bert_classifier_forward.1} parent=11 // pred_fallthru
          _
        // Predicated region
        $region77: #{bert_classifier_forward.1} parent=11 // pred_check
          %p681 = pneg %p476
        $region78: #{bert_classifier_forward.1} parent=11 // pred_check_branch
          %683 = sbr.rel (%p681) target = $region80
        $region79: #{bert_classifier_forward.1} parent=11 // pred_region
          %s685 = ssub.s32 32, 32
          %686 = vsyncadd [#allocation12], %s685
          %s687 = sshll.u32 [#allocation11], 4
          %s688 = int_to_ptr.vmem [resolvable:$true] %s687
          %693 = dma.hbm_to_vmem [thread:$0]  %s19, 32, %s688, [#allocation12], 16, 16, 1
        $region80: #{bert_classifier_forward.1} parent=11 // pred_fallthru
          _
        // Predicated region
        $region81: #{bert_classifier_forward.1} parent=11 // pred_check
          %p694 = pneg %p497
        $region82: #{bert_classifier_forward.1} parent=11 // pred_check_branch
          %696 = sbr.rel (%p694) target = $region84
        $region83: #{bert_classifier_forward.1} parent=11 // pred_region
          %s698 = ssub.s32 1024, 1024
          %699 = vsyncadd [#allocation12], %s698
          %s700 = sshll.u32 [#allocation13], 4
          %s701 = int_to_ptr.vmem [resolvable:$true] %s700
          %706 = dma.hbm_to_vmem [thread:$0]  %s20, 1024, %s701, [#allocation12], 64, 64, 4
        $region84: #{bert_classifier_forward.1} parent=11 // pred_fallthru
          _
        // Predicated region
        $region85: #{bert_classifier_forward.1} parent=11 // pred_check
          %p707 = pneg %p518
        $region86: #{bert_classifier_forward.1} parent=11 // pred_check_branch
          %709 = sbr.rel (%p707) target = $region88
        $region87: #{bert_classifier_forward.1} parent=11 // pred_region
          %s711 = ssub.s32 16, 16
          %712 = vsyncadd [#allocation15], %s711
          %s714 = sshll.u32 [#allocation14], 4
          %s715 = int_to_ptr.vmem [resolvable:$true] %s714
          %717 = dma.hbm_to_vmem [thread:$0]  %s21, 16, %s715, [#allocation15]
        $region88: #{bert_classifier_forward.1} parent=11 // pred_fallthru
          _
      $region12: #{bert_classifier_forward.1} parent=5 // pred_fallthru
        _
      %p718 = scmp.lt.s32.totalorder %s41, 2
      // Predicated region
      $region89: #{bert_classifier_forward.1} parent=5 // pred_check
        %p719 = pneg %p718
      $region90: #{bert_classifier_forward.1} parent=5 // pred_check_branch
        %721 = sbr.rel (%p719) target = $region92
      $region91: #{bert_classifier_forward.1} parent=5 // pred_region
        // Predicated region
        $region93: #{bert_classifier_forward.1} parent=91 // pred_check
          %p722 = pneg %p61
        $region94: #{bert_classifier_forward.1} parent=91 // pred_check_branch
          %724 = sbr.rel (%p722) target = $region96
        $region95: #{bert_classifier_forward.1} parent=91 // pred_region
          %p725 = scmp.lt.s32.totalorder %s41, 1
          %s726 = scalar_select %p725, %s41, 1
          %s727 = smul.addr %s726, 8
          %s728 = scalar_lea.vmem %s0, %s727
        $region96: #{bert_classifier_forward.1} parent=91 // pred_fallthru
          _
        // Predicated region
        $region97: #{bert_classifier_forward.1} parent=91 // pred_check
          %p729 = pneg %p87
        $region98: #{bert_classifier_forward.1} parent=91 // pred_check_branch
          %731 = sbr.rel (%p729) target = $region100
        $region99: #{bert_classifier_forward.1} parent=91 // pred_region
          %p732 = scmp.lt.s32.totalorder %s41, 1
          %s733 = scalar_select %p732, %s41, 1
          %s734 = smul.addr %s733, 8
          %s735 = scalar_lea.vmem %s1, %s734
        $region100: #{bert_classifier_forward.1} parent=91 // pred_fallthru
          _
        // Predicated region
        $region101: #{bert_classifier_forward.1} parent=91 // pred_check
          %p736 = pneg %p113
        $region102: #{bert_classifier_forward.1} parent=91 // pred_check_branch
          %738 = sbr.rel (%p736) target = $region104
        $region103: #{bert_classifier_forward.1} parent=91 // pred_region
          %p739 = scmp.lt.s32.totalorder %s41, 1
          %s740 = scalar_select %p739, %s41, 1
          %s741 = scalar_lea.vmem %s2, %s740
        $region104: #{bert_classifier_forward.1} parent=91 // pred_fallthru
          _
      $region92: #{bert_classifier_forward.1} parent=5 // pred_fallthru
        _
      %p742 = scmp.le.s32.totalorder 1, %s41
      %p743 = scmp.lt.s32.totalorder %s41, 3
      %p744 = pnand %p742, %p743
      %p745 = pneg %p744
      // Predicated region
      $region105: #{bert_classifier_forward.1} parent=5 // pred_check
        _
      $region106: #{bert_classifier_forward.1} parent=5 // pred_check_branch
        %747 = sbr.rel (%p744) target = $region108
      $region107: #{bert_classifier_forward.1} parent=5 // pred_region
        %s748 = ssub.s32 %s41, 1
        // Predicated region
        $region109: #{bert_classifier_forward.1} parent=107 // pred_check
          %p749 = pneg %p224
        $region110: #{bert_classifier_forward.1} parent=107 // pred_check_branch
          %751 = sbr.rel (%p749) target = $region112
        $region111: #{bert_classifier_forward.1} parent=107 // pred_region
          %752 = dma.done [#allocation3], 16
        $region112: #{bert_classifier_forward.1} parent=107 // pred_fallthru
          _
        // Predicated region
        $region113: #{bert_classifier_forward.1} parent=107 // pred_check
          %p753 = pneg %p245
        $region114: #{bert_classifier_forward.1} parent=107 // pred_check_branch
          %755 = sbr.rel (%p753) target = $region116
        $region115: #{bert_classifier_forward.1} parent=107 // pred_region
          %756 = dma.done [#allocation6], 6144
        $region116: #{bert_classifier_forward.1} parent=107 // pred_fallthru
          _
        // Predicated region
        $region117: #{bert_classifier_forward.1} parent=107 // pred_check
          %p757 = pneg %p287
        $region118: #{bert_classifier_forward.1} parent=107 // pred_check_branch
          %759 = sbr.rel (%p757) target = $region120
        $region119: #{bert_classifier_forward.1} parent=107 // pred_region
          %760 = dma.done [#allocation6], 2048
        $region120: #{bert_classifier_forward.1} parent=107 // pred_fallthru
          _
        // Predicated region
        $region121: #{bert_classifier_forward.1} parent=107 // pred_check
          %p761 = pneg %p371
        $region122: #{bert_classifier_forward.1} parent=107 // pred_check_branch
          %763 = sbr.rel (%p761) target = $region124
        $region123: #{bert_classifier_forward.1} parent=107 // pred_region
          %764 = dma.done [#allocation9], 4096
        $region124: #{bert_classifier_forward.1} parent=107 // pred_fallthru
          _
        // Predicated region
        $region125: #{bert_classifier_forward.1} parent=107 // pred_check
          %p765 = pneg %p413
        $region126: #{bert_classifier_forward.1} parent=107 // pred_check_branch
          %767 = sbr.rel (%p765) target = $region128
        $region127: #{bert_classifier_forward.1} parent=107 // pred_region
          %768 = dma.done [#allocation9], 4096
        $region128: #{bert_classifier_forward.1} parent=107 // pred_fallthru
          _
        // Predicated region
        $region129: #{bert_classifier_forward.1} parent=107 // pred_check
          %p769 = pneg %p476
        $region130: #{bert_classifier_forward.1} parent=107 // pred_check_branch
          %771 = sbr.rel (%p769) target = $region132
        $region131: #{bert_classifier_forward.1} parent=107 // pred_region
          %772 = dma.done [#allocation12], 32
        $region132: #{bert_classifier_forward.1} parent=107 // pred_fallthru
          _
        // Predicated region
        $region133: #{bert_classifier_forward.1} parent=107 // pred_check
          %p773 = pneg %p497
        $region134: #{bert_classifier_forward.1} parent=107 // pred_check_branch
          %775 = sbr.rel (%p773) target = $region136
        $region135: #{bert_classifier_forward.1} parent=107 // pred_region
          %776 = dma.done [#allocation12], 1024
        $region136: #{bert_classifier_forward.1} parent=107 // pred_fallthru
          _
        // Predicated region
        $region137: #{bert_classifier_forward.1} parent=107 // pred_check
          %p777 = pneg %p518
        $region138: #{bert_classifier_forward.1} parent=107 // pred_check_branch
          %779 = sbr.rel (%p777) target = $region140
        $region139: #{bert_classifier_forward.1} parent=107 // pred_region
          %780 = dma.done [#allocation15], 16
        $region140: #{bert_classifier_forward.1} parent=107 // pred_fallthru
          _
        %p781 = scmp.lt.s32.totalorder %s46, 1
        %s782 = scalar_select %p781, %s46, 1
        %s783 = smul.addr %s782, 8
        %s784 = scalar_lea.vmem %s0, %s783
        %p785 = pneg %p67
        %p786 = pneg %p64
        %p787 = scmp.lt.s32.totalorder %s46, 1
        %s788 = scalar_select %p787, %s46, 1
        %s789 = smul.addr %s788, 8
        %s790 = scalar_lea.vmem %s1, %s789
        %p791 = pneg %p93
        %p792 = pneg %p90
        %p793 = scmp.lt.s32.totalorder %s46, 1
        %s794 = scalar_select %p793, %s46, 1
        %s795 = scalar_lea.vmem %s2, %s794
        %p796 = pneg %p119
        %p797 = pneg %p116
        %p798 = pneg %p140
        %p799 = pneg %p137
        %p800 = pneg %p161
        %p801 = pneg %p158
        %p802 = pneg %p182
        %p803 = pneg %p179
        %p804 = pneg %p203
        %p805 = pneg %p200
        %p806 = pneg %p224
        %p807 = pneg %p221
        %p808 = pneg %p245
        %p809 = pneg %p242
        %p810 = pneg %p266
        %p811 = pneg %p263
        %p812 = pneg %p287
        %p813 = pneg %p284
        %p814 = pneg %p308
        %p815 = pneg %p305
        %p816 = pneg %p329
        %p817 = pneg %p326
        %p818 = pneg %p350
        %p819 = pneg %p347
        %p820 = pneg %p371
        %p821 = pneg %p368
        %p822 = pneg %p392
        %p823 = pneg %p389
        %p824 = pneg %p413
        %p825 = pneg %p410
        %p826 = pneg %p434
        %p827 = pneg %p431
        %p828 = pneg %p455
        %p829 = pneg %p452
        %p830 = pneg %p476
        %p831 = pneg %p473
        %p832 = pneg %p497
        %p833 = pneg %p494
        %p834 = pneg %p518
        %p835 = pneg %p515
        %p836 = pneg %p544
        %p837 = pneg %p541
        %s838 = sand.u32 %s531, 1
        %s839 = scalar_lea.sflag [#allocation4], %s838
        %s840 = sand.u32 %s531, 1
        %s841 = smul.addr %s840, 8
        %s842 = scalar_lea.vmem [#allocation16], %s841
        %p843 = pneg %p570
        %p844 = pneg %p567
        %s845 = sand.u32 %s557, 1
        %s846 = scalar_lea.sflag [#allocation18], %s845
        %s847 = sand.u32 %s557, 1
        %s848 = scalar_lea.vmem [#allocation17], %s847
        %p849 = scmp.lt.s32.totalorder %s46, 1
        %s850 = scalar_select %p849, %s46, 1
        %s851 = smul.addr %s850, 8
        %s852 = scalar_lea.vmem %s0, %s851
        %p853 = scmp.lt.s32.totalorder %s46, 1
        %s854 = scalar_select %p853, %s46, 1
        %s855 = smul.addr %s854, 8
        %s856 = scalar_lea.vmem %s1, %s855
        %p857 = scmp.lt.s32.totalorder %s46, 1
        %s858 = scalar_select %p857, %s46, 1
        %s859 = scalar_lea.vmem %s2, %s858
        %v861 = vld [vmem:[%s852] sm:$0xff]
        %v862 = vld [vmem:[%s856] sm:$0xff]
        %v863 = vld [vmem:[%s3] sm:$0xff]
        %v864 = vld [vmem:[%s3 + $0x8] sm:$0xff]
        %v865 = vld [vmem:[%s3 + $0x10] sm:$0xff]
        %v866 = vld [vmem:[%s3 + $0x18] sm:$0xff]
        %v867 = vld [vmem:[%s3 + $0x20] sm:$0xff]
        %v868 = vld [vmem:[%s3 + $0x28] sm:$0xff]
        %v869 = vld [vmem:[%s3 + $0x30] sm:$0xff]
        %v870 = vld [vmem:[%s3 + $0x38] sm:$0xff]
        %v871 = vlaneseq
        %v872 = vand.u32 %v871, 127
        %873 = vset.pattern.permute.xlu0 0
        %874 = vperm.xlu0 %873, %v861
        %v875 = vpop.permute.xlu0 %874
        %vm876 = vcmp.eq.s32.totalorder %v872, %v875
        %v877 = vsel %vm876, 1, 0
        %v878 = vcvt.s32.f32 %v877
        %v879 = vld [vmem:[%s4] sm:$0xff]
        %vm880 = vcmask 523264
        %v882 = vsel %vm880, %v878, 0
        %884 = vmatprep.subr.mxu0 0.0
        %885 = vmatpush1.msra.mxu0 %v863
        %886 = vmatprep.subr.mxu0 0.0
        %887 = vmatpush1.msra.mxu0 %v864
        %888 = vmatprep.subr.mxu0 0.0
        %889 = vmatpush1.msra.mxu0 %v865
        %890 = vmatprep.subr.mxu0 0.0
        %891 = vmatpush1.msra.mxu0 %v866
        %892 = vmatprep.subr.mxu0 0.0
        %893 = vmatpush1.msra.mxu0 %v867
        %894 = vmatprep.subr.mxu0 0.0
        %895 = vmatpush1.msra.mxu0 %v868
        %896 = vmatprep.subr.mxu0 0.0
        %897 = vmatpush1.msra.mxu0 %v869
        %898 = vmatprep.subr.mxu0 0.0
        %899 = vmatpush1.msra.mxu0 %v870
        %900 = vmatprep.subr.mxu0 0.0
        %901 = vmatpush1.msra.mxu0 0.0
        %902 = vmatprep.subr.mxu0 0.0
        %903 = vmatpush1.msra.mxu0 0.0
        %904 = vmatprep.subr.mxu0 0.0
        %905 = vmatpush1.msra.mxu0 0.0
        %906 = vmatprep.subr.mxu0 0.0
        %907 = vmatpush1.msra.mxu0 0.0
        %908 = vmatprep.subr.mxu0 0.0
        %909 = vmatpush1.msra.mxu0 0.0
        %910 = vmatprep.subr.mxu0 0.0
        %911 = vmatpush1.msra.mxu0 0.0
        %912 = vmatprep.subr.mxu0 0.0
        %913 = vmatpush1.msra.mxu0 0.0
        %914 = vmatprep.subr.mxu0 0.0
        %915 = vmatpush1.msra.mxu0 0.0
        %916 = vmatprep.subr.mxu0 0.0
        %917 = vmatpush1.msra.mxu0 0.0
        %918 = vmatprep.subr.mxu0 0.0
        %919 = vmatpush1.msra.mxu0 0.0
        %920 = vmatprep.subr.mxu0 0.0
        %921 = vmatpush1.msra.mxu0 0.0
        %922 = vmatprep.subr.mxu0 0.0
        %923 = vmatpush1.msra.mxu0 0.0
        %924 = vmatprep.subr.mxu0 0.0
        %925 = vmatpush1.msra.mxu0 0.0
        %926 = vmatprep.subr.mxu0 0.0
        %927 = vmatpush1.msra.mxu0 0.0
        %928 = vmatprep.subr.mxu0 0.0
        %929 = vmatpush1.msra.mxu0 0.0
        %930 = vmatprep.subr.mxu0 0.0
        %931 = vmatpush1.msra.mxu0 0.0
        %932 = vmatprep.subr.mxu0 0.0
        %933 = vmatpush1.msra.mxu0 0.0
        %934 = vmatprep.subr.mxu0 0.0
        %935 = vmatpush1.msra.mxu0 0.0
        %936 = vmatprep.subr.mxu0 0.0
        %937 = vmatpush1.msra.mxu0 0.0
        %938 = vmatprep.subr.mxu0 0.0
        %939 = vmatpush1.msra.mxu0 0.0
        %940 = vmatprep.subr.mxu0 0.0
        %941 = vmatpush1.msra.mxu0 0.0
        %942 = vmatprep.subr.mxu0 0.0
        %943 = vmatpush1.msra.mxu0 0.0
        %944 = vmatprep.subr.mxu0 0.0
        %945 = vmatpush1.msra.mxu0 0.0
        %946 = vmatprep.subr.mxu0 0.0
        %947 = vmatpush1.msra.mxu0 0.0
        %948 = vmatprep.mubr.f32.mxu0 0.0
        %949 = vmatmul.mubr.f32.gmra.mrb[0].mxu0 %v882
        %v950 = vpop.f32.mrb[0].mxu0
        %v951 = vadd.f32 %v879, %v950
        %v952 = vpop.f32.mrb[0].mxu0
        %953 = vdwg.mxu0
        %v954 = vld [vmem:[%s5] sm:$0xff]
        %955 = vset.pattern.permute.xlu0 0
        %956 = vperm.xlu0 %955, %v862
        %v957 = vpop.permute.xlu0 %956
        %vm958 = vcmp.eq.s32.totalorder %v872, %v957
        %v959 = vsel %vm958, 1, 0
        %v960 = vcvt.s32.f32 %v959
        %vm961 = vcmask 64512
        %v963 = vsel %vm961, %v960, 0
        %965 = vmatprep.subr.mxu0 0.0
        %966 = vmatpush1.msra.mxu0 %v954
        %967 = vmatprep.subr.mxu0 0.0
        %968 = vmatpush1.msra.mxu0 0.0
        %969 = vmatprep.subr.mxu0 0.0
        %970 = vmatpush1.msra.mxu0 0.0
        %971 = vmatprep.subr.mxu0 0.0
        %972 = vmatpush1.msra.mxu0 0.0
        %973 = vmatprep.subr.mxu0 0.0
        %974 = vmatpush1.msra.mxu0 0.0
        %975 = vmatprep.subr.mxu0 0.0
        %976 = vmatpush1.msra.mxu0 0.0
        %977 = vmatprep.subr.mxu0 0.0
        %978 = vmatpush1.msra.mxu0 0.0
        %979 = vmatprep.subr.mxu0 0.0
        %980 = vmatpush1.msra.mxu0 0.0
        %981 = vmatprep.subr.mxu0 0.0
        %982 = vmatpush1.msra.mxu0 0.0
        %983 = vmatprep.subr.mxu0 0.0
        %984 = vmatpush1.msra.mxu0 0.0
        %985 = vmatprep.subr.mxu0 0.0
        %986 = vmatpush1.msra.mxu0 0.0
        %987 = vmatprep.subr.mxu0 0.0
        %988 = vmatpush1.msra.mxu0 0.0
        %989 = vmatprep.subr.mxu0 0.0
        %990 = vmatpush1.msra.mxu0 0.0
        %991 = vmatprep.subr.mxu0 0.0
        %992 = vmatpush1.msra.mxu0 0.0
        %993 = vmatprep.subr.mxu0 0.0
        %994 = vmatpush1.msra.mxu0 0.0
        %995 = vmatprep.subr.mxu0 0.0
        %996 = vmatpush1.msra.mxu0 0.0
        %997 = vmatprep.subr.mxu0 0.0
        %998 = vmatpush1.msra.mxu0 0.0
        %999 = vmatprep.subr.mxu0 0.0
        %1000 = vmatpush1.msra.mxu0 0.0
        %1001 = vmatprep.subr.mxu0 0.0
        %1002 = vmatpush1.msra.mxu0 0.0
        %1003 = vmatprep.subr.mxu0 0.0
        %1004 = vmatpush1.msra.mxu0 0.0
        %1005 = vmatprep.subr.mxu0 0.0
        %1006 = vmatpush1.msra.mxu0 0.0
        %1007 = vmatprep.subr.mxu0 0.0
        %1008 = vmatpush1.msra.mxu0 0.0
        %1009 = vmatprep.subr.mxu0 0.0
        %1010 = vmatpush1.msra.mxu0 0.0
        %1011 = vmatprep.subr.mxu0 0.0
        %1012 = vmatpush1.msra.mxu0 0.0
        %1013 = vmatprep.subr.mxu0 0.0
        %1014 = vmatpush1.msra.mxu0 0.0
        %1015 = vmatprep.subr.mxu0 0.0
        %1016 = vmatpush1.msra.mxu0 0.0
        %1017 = vmatprep.subr.mxu0 0.0
        %1018 = vmatpush1.msra.mxu0 0.0
        %1019 = vmatprep.subr.mxu0 0.0
        %1020 = vmatpush1.msra.mxu0 0.0
        %1021 = vmatprep.subr.mxu0 0.0
        %1022 = vmatpush1.msra.mxu0 0.0
        %1023 = vmatprep.subr.mxu0 0.0
        %1024 = vmatpush1.msra.mxu0 0.0
        %1025 = vmatprep.subr.mxu0 0.0
        %1026 = vmatpush1.msra.mxu0 0.0
        %1027 = vmatprep.subr.mxu0 0.0
        %1028 = vmatpush1.msra.mxu0 0.0
        %1029 = vmatprep.mubr.f32.mxu0 0.0
        %1030 = vmatmul.mubr.f32.gmra.mrb[0].mxu0 %v963
        %v1031 = vpop.f32.mrb[0].mxu0
        %v1032 = vadd.f32 0.0, %v1031
        %v1033 = vpop.f32.mrb[0].mxu0
        %1034 = vdwg.mxu0
        %v1035 = vadd.f32 %v951, %v1032
        %v1036 = vld [vmem:[%s6] sm:$0x1]
        %v1037 = vld [vmem:[#allocation2] sm:$0x1]
        %1038 = vadd.xlane.f32.xlu0 %v1035
        %v1039 = vpop.xlane.xlu0 %1038
        %v1040 = vrcp.pop 128.0
        %v1041 = vmul.f32 %v1039, %v1040
        %v1042 = vsub.f32 %v1035, %v1041
        %v1043 = vmul.f32 %v1042, %v1042
        %1044 = vadd.xlane.f32.xlu0 %v1043
        %v1045 = vpop.xlane.xlu0 %1044
        %v1046 = vmul.f32 %v1045, %v1040
        %v1047 = vadd.f32 %v1046, 1e-12
        %v1048 = vrsqrt.pop %v1047
        %v1049 = vmul.f32 %v1042, %v1048
        %v1051 = vlaneseq
        %v1052 = vshrl.u32 %v1051, 7
        %v1053 = vsub.s32 0, %v1052
        %v1054 = vrot.slane %v1036, %v1053
        %v1056 = vmul.f32 %v1049, %v1054
        %v1058 = vlaneseq
        %v1059 = vshrl.u32 %v1058, 7
        %v1060 = vsub.s32 0, %v1059
        %v1061 = vrot.slane %v1037, %v1060
        %v1063 = vadd.f32 %v1056, %v1061
        %v1064 = vld [vmem:[%s859] sm:$0x1]
        %v1065 = vcvt.s32.f32 %v1064
        %v1066 = vsub.f32 1.0, %v1065
        %v1067 = vmul.f32 %v1066, -1e+09
        %v1068 = vld [vmem:[#allocation5] sm:$0xff]
        %v1069 = vld [vmem:[#allocation5 + $0x8] sm:$0xf]
        %v1070 = vld [vmem:[#allocation5 + $0xc] sm:$0xff]
        %v1071 = vld [vmem:[#allocation5 + $0x14] sm:$0xf]
        %v1072 = vld [vmem:[#allocation5 + $0x18] sm:$0xff]
        %v1073 = vld [vmem:[#allocation5 + $0x20] sm:$0xf]
        %v1074 = vld [vmem:[#allocation5 + $0x24] sm:$0xff]
        %v1075 = vld [vmem:[#allocation5 + $0x2c] sm:$0xf]
        %v1076 = vld [vmem:[#allocation5 + $0x30] sm:$0xff]
        %v1077 = vld [vmem:[#allocation5 + $0x38] sm:$0xf]
        %v1078 = vld [vmem:[#allocation5 + $0x3c] sm:$0xff]
        %v1079 = vld [vmem:[#allocation5 + $0x44] sm:$0xf]
        %v1080 = vld [vmem:[#allocation5 + $0x48] sm:$0xff]
        %v1081 = vld [vmem:[#allocation5 + $0x50] sm:$0xf]
        %v1082 = vld [vmem:[#allocation5 + $0x54] sm:$0xff]
        %v1083 = vld [vmem:[#allocation5 + $0x5c] sm:$0xf]
        %v1084 = vld [vmem:[#allocation5 + $0x60] sm:$0xff]
        %v1085 = vld [vmem:[#allocation5 + $0x68] sm:$0xf]
        %v1086 = vld [vmem:[#allocation5 + $0x6c] sm:$0xff]
        %v1087 = vld [vmem:[#allocation5 + $0x74] sm:$0xf]
        %v1088 = vld [vmem:[#allocation5 + $0x78] sm:$0xff]
        %v1089 = vld [vmem:[#allocation5 + $0x80] sm:$0xf]
        %v1090 = vld [vmem:[#allocation5 + $0x84] sm:$0xff]
        %v1091 = vld [vmem:[#allocation5 + $0x8c] sm:$0xf]
        %v1092 = vld [vmem:[#allocation5 + $0x90] sm:$0xff]
        %v1093 = vld [vmem:[#allocation5 + $0x98] sm:$0xf]
        %v1094 = vld [vmem:[#allocation5 + $0x9c] sm:$0xff]
        %v1095 = vld [vmem:[#allocation5 + $0xa4] sm:$0xf]
        %v1096 = vld [vmem:[#allocation5 + $0xa8] sm:$0xff]
        %v1097 = vld [vmem:[#allocation5 + $0xb0] sm:$0xf]
        %v1098 = vld [vmem:[#allocation5 + $0xb4] sm:$0xff]
        %v1099 = vld [vmem:[#allocation5 + $0xbc] sm:$0xf]
        %v1100 = vpack.c.bf16 %v1063, %v1063
        %v1101 = vld [vmem:[%s9] sm:$0x7]
        %v1103 = vlaneseq
        %v1104 = vshrl.u32 %v1103, 7
        %v1105 = vsub.s32 0, %v1104
        %v1106 = vrot.slane %v1101, %v1105
        %v1107 = vlaneseq
        %v1108 = vshrl.u32 %v1107, 7
        %v1109 = vsub.s32 1, %v1108
        %v1110 = vrot.slane %v1101, %v1109
        %v1111 = vlaneseq
        %v1112 = vshrl.u32 %v1111, 7
        %v1113 = vsub.s32 2, %v1112
        %v1114 = vrot.slane %v1101, %v1113
        %v1150 = vunpack.c.l.b16 %v1068
        %v1151 = vunpack.c.h.b16 %v1068
        %v1152 = vunpack.c.l.b16 %v1069
        %v1153 = vunpack.c.l.b16 %v1070
        %v1154 = vunpack.c.h.b16 %v1070
        %v1155 = vunpack.c.l.b16 %v1071
        %v1156 = vunpack.c.l.b16 %v1072
        %v1157 = vunpack.c.h.b16 %v1072
        %v1158 = vunpack.c.l.b16 %v1073
        %v1159 = vunpack.c.l.b16 %v1074
        %v1160 = vunpack.c.h.b16 %v1074
        %v1161 = vunpack.c.l.b16 %v1075
        %v1162 = vunpack.c.l.b16 %v1076
        %v1163 = vunpack.c.h.b16 %v1076
        %v1164 = vunpack.c.l.b16 %v1077
        %v1165 = vunpack.c.l.b16 %v1078
        %v1166 = vunpack.c.h.b16 %v1078
        %v1167 = vunpack.c.l.b16 %v1079
        %v1168 = vunpack.c.l.b16 %v1080
        %v1169 = vunpack.c.h.b16 %v1080
        %v1170 = vunpack.c.l.b16 %v1081
        %v1171 = vunpack.c.l.b16 %v1082
        %v1172 = vunpack.c.h.b16 %v1082
        %v1173 = vunpack.c.l.b16 %v1083
        %v1174 = vunpack.c.l.b16 %v1084
        %v1175 = vunpack.c.h.b16 %v1084
        %v1176 = vunpack.c.l.b16 %v1085
        %v1177 = vunpack.c.l.b16 %v1086
        %v1178 = vunpack.c.h.b16 %v1086
        %v1179 = vunpack.c.l.b16 %v1087
        %v1180 = vunpack.c.l.b16 %v1088
        %v1181 = vunpack.c.h.b16 %v1088
        %v1182 = vunpack.c.l.b16 %v1089
        %v1183 = vunpack.c.l.b16 %v1090
        %v1184 = vunpack.c.h.b16 %v1090
        %v1185 = vunpack.c.l.b16 %v1091
        %v1186 = vunpack.c.l.b16 %v1092
        %v1187 = vunpack.c.h.b16 %v1092
        %v1188 = vunpack.c.l.b16 %v1093
        %v1189 = vunpack.c.l.b16 %v1094
        %v1190 = vunpack.c.h.b16 %v1094
        %v1191 = vunpack.c.l.b16 %v1095
        %v1192 = vunpack.c.l.b16 %v1096
        %v1193 = vunpack.c.h.b16 %v1096
        %v1194 = vunpack.c.l.b16 %v1097
        %v1195 = vunpack.c.l.b16 %v1098
        %v1196 = vunpack.c.h.b16 %v1098
        %v1197 = vunpack.c.l.b16 %v1099
        %v1198 = vpack.c.b16 %v1153, %v1150
        %v1199 = vpack.c.b16 %v1154, %v1151
        %v1200 = vpack.c.b16 %v1155, %v1152
        %v1201 = vpack.c.b16 %v1159, %v1156
        %v1202 = vpack.c.b16 %v1160, %v1157
        %v1203 = vpack.c.b16 %v1161, %v1158
        %v1204 = vpack.c.b16 %v1165, %v1162
        %v1205 = vpack.c.b16 %v1166, %v1163
        %v1206 = vpack.c.b16 %v1167, %v1164
        %v1207 = vpack.c.b16 %v1171, %v1168
        %v1208 = vpack.c.b16 %v1172, %v1169
        %v1209 = vpack.c.b16 %v1173, %v1170
        %v1210 = vpack.c.b16 %v1177, %v1174
        %v1211 = vpack.c.b16 %v1178, %v1175
        %v1212 = vpack.c.b16 %v1179, %v1176
        %v1213 = vpack.c.b16 %v1183, %v1180
        %v1214 = vpack.c.b16 %v1184, %v1181
        %v1215 = vpack.c.b16 %v1185, %v1182
        %v1216 = vpack.c.b16 %v1189, %v1186
        %v1217 = vpack.c.b16 %v1190, %v1187
        %v1218 = vpack.c.b16 %v1191, %v1188
        %v1219 = vpack.c.b16 %v1195, %v1192
        %v1220 = vpack.c.b16 %v1196, %v1193
        %v1221 = vpack.c.b16 %v1197, %v1194
        %1246 = vmatprep.subr.bf16.mxu0 %v1199
        %1247 = vmatpush1.bf16.msra.mxu0 %v1198
        %1248 = vmatprep.subr.bf16.mxu0 %v1202
        %1249 = vmatpush1.bf16.msra.mxu0 %v1201
        %1250 = vmatprep.subr.bf16.mxu0 %v1205
        %1251 = vmatpush1.bf16.msra.mxu0 %v1204
        %1252 = vmatprep.subr.bf16.mxu0 %v1208
        %1253 = vmatpush1.bf16.msra.mxu0 %v1207
        %1254 = vmatprep.subr.bf16.mxu0 %v1211
        %1255 = vmatpush1.bf16.msra.mxu0 %v1210
        %1256 = vmatprep.subr.bf16.mxu0 %v1214
        %1257 = vmatpush1.bf16.msra.mxu0 %v1213
        %1258 = vmatprep.subr.bf16.mxu0 %v1217
        %1259 = vmatpush1.bf16.msra.mxu0 %v1216
        %1260 = vmatprep.subr.bf16.mxu0 %v1220
        %1261 = vmatpush1.bf16.msra.mxu0 %v1219
        %1262 = vmatprep.subr.bf16.mxu0 0
        %1263 = vmatpush1.bf16.msra.mxu0 0
        %1264 = vmatprep.subr.bf16.mxu0 0
        %1265 = vmatpush1.bf16.msra.mxu0 0
        %1266 = vmatprep.subr.bf16.mxu0 0
        %1267 = vmatpush1.bf16.msra.mxu0 0
        %1268 = vmatprep.subr.bf16.mxu0 0
        %1269 = vmatpush1.bf16.msra.mxu0 0
        %1270 = vmatprep.subr.bf16.mxu0 0
        %1271 = vmatpush1.bf16.msra.mxu0 0
        %1272 = vmatprep.subr.bf16.mxu0 0
        %1273 = vmatpush1.bf16.msra.mxu0 0
        %1274 = vmatprep.subr.bf16.mxu0 0
        %1275 = vmatpush1.bf16.msra.mxu0 0
        %1276 = vmatprep.subr.bf16.mxu0 0
        %1277 = vmatpush1.bf16.msra.mxu0 0
        %1278 = vmatprep.mubr.bf16.mxu0 0
        %1279 = vmatmul.mubr.bf16.gmra.mrb[0].mxu0 %v1100
        %v1280 = vpop.f32.mrb[0].mxu0
        %v1281 = vadd.f32 %v1106, %v1280
        %v1282 = vpop.f32.mrb[0].mxu0
        %v1283 = vadd.f32 %v1110, %v1282
        %v1284 = vpop.f32.mrb[0].mxu0
        %v1285 = vpop.f32.mrb[0].mxu0
        %1286 = vdwg.mxu0
        %1287 = vmatprep.subr.bf16.mxu0 0
        %1288 = vmatpush1.bf16.msra.mxu0 %v1200
        %1289 = vmatprep.subr.bf16.mxu0 0
        %1290 = vmatpush1.bf16.msra.mxu0 %v1203
        %1291 = vmatprep.subr.bf16.mxu0 0
        %1292 = vmatpush1.bf16.msra.mxu0 %v1206
        %1293 = vmatprep.subr.bf16.mxu0 0
        %1294 = vmatpush1.bf16.msra.mxu0 %v1209
        %1295 = vmatprep.subr.bf16.mxu0 0
        %1296 = vmatpush1.bf16.msra.mxu0 %v1212
        %1297 = vmatprep.subr.bf16.mxu0 0
        %1298 = vmatpush1.bf16.msra.mxu0 %v1215
        %1299 = vmatprep.subr.bf16.mxu0 0
        %1300 = vmatpush1.bf16.msra.mxu0 %v1218
        %1301 = vmatprep.subr.bf16.mxu0 0
        %1302 = vmatpush1.bf16.msra.mxu0 %v1221
        %1303 = vmatprep.subr.bf16.mxu0 0
        %1304 = vmatpush1.bf16.msra.mxu0 0
        %1305 = vmatprep.subr.bf16.mxu0 0
        %1306 = vmatpush1.bf16.msra.mxu0 0
        %1307 = vmatprep.subr.bf16.mxu0 0
        %1308 = vmatpush1.bf16.msra.mxu0 0
        %1309 = vmatprep.subr.bf16.mxu0 0
        %1310 = vmatpush1.bf16.msra.mxu0 0
        %1311 = vmatprep.subr.bf16.mxu0 0
        %1312 = vmatpush1.bf16.msra.mxu0 0
        %1313 = vmatprep.subr.bf16.mxu0 0
        %1314 = vmatpush1.bf16.msra.mxu0 0
        %1315 = vmatprep.subr.bf16.mxu0 0
        %1316 = vmatpush1.bf16.msra.mxu0 0
        %1317 = vmatprep.subr.bf16.mxu0 0
        %1318 = vmatpush1.bf16.msra.mxu0 0
        %1319 = vmatprep.mubr.bf16.mxu0 0
        %1320 = vmatmul.mubr.bf16.gmra.mrb[0].mxu0 %v1100
        %v1321 = vpop.f32.mrb[0].mxu0
        %v1322 = vadd.f32 %v1114, %v1321
        %v1323 = vpop.f32.mrb[0].mxu0
        %v1324 = vpop.f32.mrb[0].mxu0
        %v1325 = vpop.f32.mrb[0].mxu0
        %1326 = vdwg.mxu0
        %v1328 = vsel %vm880, %v1281, 0
        %v1331 = vsel %vm880, %v1283, 0
        %1333 = vmatprep.subr.mxu0 0.0
        %1334 = vmatpush1.xpose.msra.mxu0 %v1331
        %1335 = vmatprep.subr.mxu0 0.0
        %1336 = vmatpush1.xpose.msra.mxu0 0.0
        %1337 = vmatprep.subr.mxu0 0.0
        %1338 = vmatpush1.xpose.msra.mxu0 0.0
        %1339 = vmatprep.subr.mxu0 0.0
        %1340 = vmatpush1.xpose.msra.mxu0 0.0
        %1341 = vmatprep.subr.mxu0 0.0
        %1342 = vmatpush1.xpose.msra.mxu0 0.0
        %1343 = vmatprep.subr.mxu0 0.0
        %1344 = vmatpush1.xpose.msra.mxu0 0.0
        %1345 = vmatprep.subr.mxu0 0.0
        %1346 = vmatpush1.xpose.msra.mxu0 0.0
        %1347 = vmatprep.subr.mxu0 0.0
        %1348 = vmatpush1.xpose.msra.mxu0 0.0
        %1349 = vmatprep.subr.mxu0 0.0
        %1350 = vmatpush1.xpose.msra.mxu0 0.0
        %1351 = vmatprep.subr.mxu0 0.0
        %1352 = vmatpush1.xpose.msra.mxu0 0.0
        %1353 = vmatprep.subr.mxu0 0.0
        %1354 = vmatpush1.xpose.msra.mxu0 0.0
        %1355 = vmatprep.subr.mxu0 0.0
        %1356 = vmatpush1.xpose.msra.mxu0 0.0
        %1357 = vmatprep.subr.mxu0 0.0
        %1358 = vmatpush1.xpose.msra.mxu0 0.0
        %1359 = vmatprep.subr.mxu0 0.0
        %1360 = vmatpush1.xpose.msra.mxu0 0.0
        %1361 = vmatprep.subr.mxu0 0.0
        %1362 = vmatpush1.xpose.msra.mxu0 0.0
        %1363 = vmatprep.subr.mxu0 0.0
        %1364 = vmatpush1.xpose.msra.mxu0 0.0
        %1365 = vmatprep.subr.mxu0 0.0
        %1366 = vmatpush1.xpose.msra.mxu0 0.0
        %1367 = vmatprep.subr.mxu0 0.0
        %1368 = vmatpush1.xpose.msra.mxu0 0.0
        %1369 = vmatprep.subr.mxu0 0.0
        %1370 = vmatpush1.xpose.msra.mxu0 0.0
        %1371 = vmatprep.subr.mxu0 0.0
        %1372 = vmatpush1.xpose.msra.mxu0 0.0
        %1373 = vmatprep.subr.mxu0 0.0
        %1374 = vmatpush1.xpose.msra.mxu0 0.0
        %1375 = vmatprep.subr.mxu0 0.0
        %1376 = vmatpush1.xpose.msra.mxu0 0.0
        %1377 = vmatprep.subr.mxu0 0.0
        %1378 = vmatpush1.xpose.msra.mxu0 0.0
        %1379 = vmatprep.subr.mxu0 0.0
        %1380 = vmatpush1.xpose.msra.mxu0 0.0
        %1381 = vmatprep.subr.mxu0 0.0
        %1382 = vmatpush1.xpose.msra.mxu0 0.0
        %1383 = vmatprep.subr.mxu0 0.0
        %1384 = vmatpush1.xpose.msra.mxu0 0.0
        %1385 = vmatprep.subr.mxu0 0.0
        %1386 = vmatpush1.xpose.msra.mxu0 0.0
        %1387 = vmatprep.subr.mxu0 0.0
        %1388 = vmatpush1.xpose.msra.mxu0 0.0
        %1389 = vmatprep.subr.mxu0 0.0
        %1390 = vmatpush1.xpose.msra.mxu0 0.0
        %1391 = vmatprep.subr.mxu0 0.0
        %1392 = vmatpush1.xpose.msra.mxu0 0.0
        %1393 = vmatprep.subr.mxu0 0.0
        %1394 = vmatpush1.xpose.msra.mxu0 0.0
        %1395 = vmatprep.subr.mxu0 0.0
        %1396 = vmatpush1.xpose.msra.mxu0 0.0
        %1397 = vmatprep.mubr.f32.mxu0 0.0
        %1398 = vmatmul.mubr.f32.gmra.mrb[0].mxu0 %v1328
        %v1399 = vpop.f32.mrb[0].mxu0
        %v1400 = vadd.f32 0.0, %v1399
        %v1401 = vpop.f32.mrb[0].mxu0
        %1402 = vdwg.mxu0
        %v1403 = vmul.f32 %v1400, 0.125
        %v1405 = vlaneseq
        %v1406 = vshrl.u32 %v1405, 7
        %v1407 = vsub.s32 0, %v1406
        %v1408 = vrot.slane %v1067, %v1407
        %v1410 = vadd.f32 %v1403, %v1408
        %v1411 = vsel %vm961, %v1410, -inf
        %1412 = vmax.xlane.f32.xlu0 %v1411
        %v1413 = vpop.xlane.xlu0 %1412
        %v1414 = vsub.f32 %v1410, %v1413
        %v1415 = vmul.f32 %v1414, 1.442695
        %v1416 = vpow.pop %v1415
        %v1417 = vsel %vm961, %v1416, 0.0
        %1418 = vadd.xlane.f32.xlu0 %v1417
        %v1419 = vpop.xlane.xlu0 %1418
        %v1420 = vrcp.pop %v1419
        %v1421 = vmul.f32 %v1416, %v1420
        %v1423 = vsel %vm961, %v1421, 0
        %1425 = vmatprep.subr.mxu0 0.0
        %1426 = vmatpush1.msra.mxu0 %v1322
        %1427 = vmatprep.subr.mxu0 0.0
        %1428 = vmatpush1.msra.mxu0 0.0
        %1429 = vmatprep.subr.mxu0 0.0
        %1430 = vmatpush1.msra.mxu0 0.0
        %1431 = vmatprep.subr.mxu0 0.0
        %1432 = vmatpush1.msra.mxu0 0.0
        %1433 = vmatprep.subr.mxu0 0.0
        %1434 = vmatpush1.msra.mxu0 0.0
        %1435 = vmatprep.subr.mxu0 0.0
        %1436 = vmatpush1.msra.mxu0 0.0
        %1437 = vmatprep.subr.mxu0 0.0
        %1438 = vmatpush1.msra.mxu0 0.0
        %1439 = vmatprep.subr.mxu0 0.0
        %1440 = vmatpush1.msra.mxu0 0.0
        %1441 = vmatprep.subr.mxu0 0.0
        %1442 = vmatpush1.msra.mxu0 0.0
        %1443 = vmatprep.subr.mxu0 0.0
        %1444 = vmatpush1.msra.mxu0 0.0
        %1445 = vmatprep.subr.mxu0 0.0
        %1446 = vmatpush1.msra.mxu0 0.0
        %1447 = vmatprep.subr.mxu0 0.0
        %1448 = vmatpush1.msra.mxu0 0.0
        %1449 = vmatprep.subr.mxu0 0.0
        %1450 = vmatpush1.msra.mxu0 0.0
        %1451 = vmatprep.subr.mxu0 0.0
        %1452 = vmatpush1.msra.mxu0 0.0
        %1453 = vmatprep.subr.mxu0 0.0
        %1454 = vmatpush1.msra.mxu0 0.0
        %1455 = vmatprep.subr.mxu0 0.0
        %1456 = vmatpush1.msra.mxu0 0.0
        %1457 = vmatprep.subr.mxu0 0.0
        %1458 = vmatpush1.msra.mxu0 0.0
        %1459 = vmatprep.subr.mxu0 0.0
        %1460 = vmatpush1.msra.mxu0 0.0
        %1461 = vmatprep.subr.mxu0 0.0
        %1462 = vmatpush1.msra.mxu0 0.0
        %1463 = vmatprep.subr.mxu0 0.0
        %1464 = vmatpush1.msra.mxu0 0.0
        %1465 = vmatprep.subr.mxu0 0.0
        %1466 = vmatpush1.msra.mxu0 0.0
        %1467 = vmatprep.subr.mxu0 0.0
        %1468 = vmatpush1.msra.mxu0 0.0
        %1469 = vmatprep.subr.mxu0 0.0
        %1470 = vmatpush1.msra.mxu0 0.0
        %1471 = vmatprep.subr.mxu0 0.0
        %1472 = vmatpush1.msra.mxu0 0.0
        %1473 = vmatprep.subr.mxu0 0.0
        %1474 = vmatpush1.msra.mxu0 0.0
        %1475 = vmatprep.subr.mxu0 0.0
        %1476 = vmatpush1.msra.mxu0 0.0
        %1477 = vmatprep.subr.mxu0 0.0
        %1478 = vmatpush1.msra.mxu0 0.0
        %1479 = vmatprep.subr.mxu0 0.0
        %1480 = vmatpush1.msra.mxu0 0.0
        %1481 = vmatprep.subr.mxu0 0.0
        %1482 = vmatpush1.msra.mxu0 0.0
        %1483 = vmatprep.subr.mxu0 0.0
        %1484 = vmatpush1.msra.mxu0 0.0
        %1485 = vmatprep.subr.mxu0 0.0
        %1486 = vmatpush1.msra.mxu0 0.0
        %1487 = vmatprep.subr.mxu0 0.0
        %1488 = vmatpush1.msra.mxu0 0.0
        %1489 = vmatprep.mubr.f32.mxu0 0.0
        %1490 = vmatmul.mubr.f32.gmra.mrb[0].mxu0 %v1423
        %v1491 = vpop.f32.mrb[0].mxu0
        %v1492 = vadd.f32 0.0, %v1491
        %v1493 = vpop.f32.mrb[0].mxu0
        %1494 = vdwg.mxu0
        %v1495 = vld [vmem:[#allocation7] sm:$0xf]
        %v1496 = vld [vmem:[#allocation7 + $0x4] sm:$0xf]
        %v1497 = vld [vmem:[#allocation7 + $0x8] sm:$0xf]
        %v1498 = vld [vmem:[#allocation7 + $0xc] sm:$0xf]
        %v1499 = vld [vmem:[#allocation7 + $0x10] sm:$0xf]
        %v1500 = vld [vmem:[#allocation7 + $0x14] sm:$0xf]
        %v1501 = vld [vmem:[#allocation7 + $0x18] sm:$0xf]
        %v1502 = vld [vmem:[#allocation7 + $0x1c] sm:$0xf]
        %v1503 = vpack.c.bf16 %v1492, %v1492
        %1504 = vrot.lane.b32.xlu0 %v1281, 64
        %v1505 = vpop.permute.xlu0 %1504
        %1506 = vrot.lane.b32.xlu0 %v1283, 64
        %v1507 = vpop.permute.xlu0 %1506
        %v1508 = vsel %vm880, %v1505, 0
        %v1510 = vsel %vm880, %v1507, 0
        %1512 = vmatprep.subr.mxu0 0.0
        %1513 = vmatpush1.xpose.msra.mxu0 %v1510
        %1514 = vmatprep.subr.mxu0 0.0
        %1515 = vmatpush1.xpose.msra.mxu0 0.0
        %1516 = vmatprep.subr.mxu0 0.0
        %1517 = vmatpush1.xpose.msra.mxu0 0.0
        %1518 = vmatprep.subr.mxu0 0.0
        %1519 = vmatpush1.xpose.msra.mxu0 0.0
        %1520 = vmatprep.subr.mxu0 0.0
        %1521 = vmatpush1.xpose.msra.mxu0 0.0
        %1522 = vmatprep.subr.mxu0 0.0
        %1523 = vmatpush1.xpose.msra.mxu0 0.0
        %1524 = vmatprep.subr.mxu0 0.0
        %1525 = vmatpush1.xpose.msra.mxu0 0.0
        %1526 = vmatprep.subr.mxu0 0.0
        %1527 = vmatpush1.xpose.msra.mxu0 0.0
        %1528 = vmatprep.subr.mxu0 0.0
        %1529 = vmatpush1.xpose.msra.mxu0 0.0
        %1530 = vmatprep.subr.mxu0 0.0
        %1531 = vmatpush1.xpose.msra.mxu0 0.0
        %1532 = vmatprep.subr.mxu0 0.0
        %1533 = vmatpush1.xpose.msra.mxu0 0.0
        %1534 = vmatprep.subr.mxu0 0.0
        %1535 = vmatpush1.xpose.msra.mxu0 0.0
        %1536 = vmatprep.subr.mxu0 0.0
        %1537 = vmatpush1.xpose.msra.mxu0 0.0
        %1538 = vmatprep.subr.mxu0 0.0
        %1539 = vmatpush1.xpose.msra.mxu0 0.0
        %1540 = vmatprep.subr.mxu0 0.0
        %1541 = vmatpush1.xpose.msra.mxu0 0.0
        %1542 = vmatprep.subr.mxu0 0.0
        %1543 = vmatpush1.xpose.msra.mxu0 0.0
        %1544 = vmatprep.subr.mxu0 0.0
        %1545 = vmatpush1.xpose.msra.mxu0 0.0
        %1546 = vmatprep.subr.mxu0 0.0
        %1547 = vmatpush1.xpose.msra.mxu0 0.0
        %1548 = vmatprep.subr.mxu0 0.0
        %1549 = vmatpush1.xpose.msra.mxu0 0.0
        %1550 = vmatprep.subr.mxu0 0.0
        %1551 = vmatpush1.xpose.msra.mxu0 0.0
        %1552 = vmatprep.subr.mxu0 0.0
        %1553 = vmatpush1.xpose.msra.mxu0 0.0
        %1554 = vmatprep.subr.mxu0 0.0
        %1555 = vmatpush1.xpose.msra.mxu0 0.0
        %1556 = vmatprep.subr.mxu0 0.0
        %1557 = vmatpush1.xpose.msra.mxu0 0.0
        %1558 = vmatprep.subr.mxu0 0.0
        %1559 = vmatpush1.xpose.msra.mxu0 0.0
        %1560 = vmatprep.subr.mxu0 0.0
        %1561 = vmatpush1.xpose.msra.mxu0 0.0
        %1562 = vmatprep.subr.mxu0 0.0
        %1563 = vmatpush1.xpose.msra.mxu0 0.0
        %1564 = vmatprep.subr.mxu0 0.0
        %1565 = vmatpush1.xpose.msra.mxu0 0.0
        %1566 = vmatprep.subr.mxu0 0.0
        %1567 = vmatpush1.xpose.msra.mxu0 0.0
        %1568 = vmatprep.subr.mxu0 0.0
        %1569 = vmatpush1.xpose.msra.mxu0 0.0
        %1570 = vmatprep.subr.mxu0 0.0
        %1571 = vmatpush1.xpose.msra.mxu0 0.0
        %1572 = vmatprep.subr.mxu0 0.0
        %1573 = vmatpush1.xpose.msra.mxu0 0.0
        %1574 = vmatprep.subr.mxu0 0.0
        %1575 = vmatpush1.xpose.msra.mxu0 0.0
        %1576 = vmatprep.mubr.f32.mxu0 0.0
        %1577 = vmatmul.mubr.f32.gmra.mrb[0].mxu0 %v1508
        %v1578 = vpop.f32.mrb[0].mxu0
        %v1579 = vadd.f32 0.0, %v1578
        %v1580 = vpop.f32.mrb[0].mxu0
        %1581 = vdwg.mxu0
        %v1582 = vmul.f32 %v1579, 0.125
        %v1583 = vadd.f32 %v1582, %v1408
        %v1584 = vsel %vm961, %v1583, -inf
        %1585 = vmax.xlane.f32.xlu0 %v1584
        %v1586 = vpop.xlane.xlu0 %1585
        %v1587 = vsub.f32 %v1583, %v1586
        %v1588 = vmul.f32 %v1587, 1.442695
        %v1589 = vpow.pop %v1588
        %v1590 = vsel %vm961, %v1589, 0.0
        %1591 = vadd.xlane.f32.xlu0 %v1590
        %v1592 = vpop.xlane.xlu0 %1591
        %v1593 = vrcp.pop %v1592
        %v1594 = vmul.f32 %v1589, %v1593
        %1596 = vrot.lane.b32.xlu0 %v1322, 64
        %v1597 = vpop.permute.xlu0 %1596
        %v1600 = vsel %vm961, %v1594, 0
        %1602 = vmatprep.subr.mxu0 0.0
        %1603 = vmatpush1.msra.mxu0 %v1597
        %1604 = vmatprep.subr.mxu0 0.0
        %1605 = vmatpush1.msra.mxu0 0.0
        %1606 = vmatprep.subr.mxu0 0.0
        %1607 = vmatpush1.msra.mxu0 0.0
        %1608 = vmatprep.subr.mxu0 0.0
        %1609 = vmatpush1.msra.mxu0 0.0
        %1610 = vmatprep.subr.mxu0 0.0
        %1611 = vmatpush1.msra.mxu0 0.0
        %1612 = vmatprep.subr.mxu0 0.0
        %1613 = vmatpush1.msra.mxu0 0.0
        %1614 = vmatprep.subr.mxu0 0.0
        %1615 = vmatpush1.msra.mxu0 0.0
        %1616 = vmatprep.subr.mxu0 0.0
        %1617 = vmatpush1.msra.mxu0 0.0
        %1618 = vmatprep.subr.mxu0 0.0
        %1619 = vmatpush1.msra.mxu0 0.0
        %1620 = vmatprep.subr.mxu0 0.0
        %1621 = vmatpush1.msra.mxu0 0.0
        %1622 = vmatprep.subr.mxu0 0.0
        %1623 = vmatpush1.msra.mxu0 0.0
        %1624 = vmatprep.subr.mxu0 0.0
        %1625 = vmatpush1.msra.mxu0 0.0
        %1626 = vmatprep.subr.mxu0 0.0
        %1627 = vmatpush1.msra.mxu0 0.0
        %1628 = vmatprep.subr.mxu0 0.0
        %1629 = vmatpush1.msra.mxu0 0.0
        %1630 = vmatprep.subr.mxu0 0.0
        %1631 = vmatpush1.msra.mxu0 0.0
        %1632 = vmatprep.subr.mxu0 0.0
        %1633 = vmatpush1.msra.mxu0 0.0
        %1634 = vmatprep.subr.mxu0 0.0
        %1635 = vmatpush1.msra.mxu0 0.0
        %1636 = vmatprep.subr.mxu0 0.0
        %1637 = vmatpush1.msra.mxu0 0.0
        %1638 = vmatprep.subr.mxu0 0.0
        %1639 = vmatpush1.msra.mxu0 0.0
        %1640 = vmatprep.subr.mxu0 0.0
        %1641 = vmatpush1.msra.mxu0 0.0
        %1642 = vmatprep.subr.mxu0 0.0
        %1643 = vmatpush1.msra.mxu0 0.0
        %1644 = vmatprep.subr.mxu0 0.0
        %1645 = vmatpush1.msra.mxu0 0.0
        %1646 = vmatprep.subr.mxu0 0.0
        %1647 = vmatpush1.msra.mxu0 0.0
        %1648 = vmatprep.subr.mxu0 0.0
        %1649 = vmatpush1.msra.mxu0 0.0
        %1650 = vmatprep.subr.mxu0 0.0
        %1651 = vmatpush1.msra.mxu0 0.0
        %1652 = vmatprep.subr.mxu0 0.0
        %1653 = vmatpush1.msra.mxu0 0.0
        %1654 = vmatprep.subr.mxu0 0.0
        %1655 = vmatpush1.msra.mxu0 0.0
        %1656 = vmatprep.subr.mxu0 0.0
        %1657 = vmatpush1.msra.mxu0 0.0
        %1658 = vmatprep.subr.mxu0 0.0
        %1659 = vmatpush1.msra.mxu0 0.0
        %1660 = vmatprep.subr.mxu0 0.0
        %1661 = vmatpush1.msra.mxu0 0.0
        %1662 = vmatprep.subr.mxu0 0.0
        %1663 = vmatpush1.msra.mxu0 0.0
        %1664 = vmatprep.subr.mxu0 0.0
        %1665 = vmatpush1.msra.mxu0 0.0
        %1666 = vmatprep.mubr.f32.mxu0 0.0
        %1667 = vmatmul.mubr.f32.gmra.mrb[0].mxu0 %v1600
        %v1668 = vpop.f32.mrb[0].mxu0
        %v1669 = vadd.f32 0.0, %v1668
        %v1670 = vpop.f32.mrb[0].mxu0
        %1671 = vdwg.mxu0
        %s1672 = scalar_lea.vmem [#allocation7], 32
        %v1673 = vld [vmem:[%s1672] sm:$0xf]
        %v1674 = vld [vmem:[%s1672 + $0x4] sm:$0xf]
        %v1675 = vld [vmem:[%s1672 + $0x8] sm:$0xf]
        %v1676 = vld [vmem:[%s1672 + $0xc] sm:$0xf]
        %v1677 = vld [vmem:[%s1672 + $0x10] sm:$0xf]
        %v1678 = vld [vmem:[%s1672 + $0x14] sm:$0xf]
        %v1679 = vld [vmem:[%s1672 + $0x18] sm:$0xf]
        %v1680 = vld [vmem:[%s1672 + $0x1c] sm:$0xf]
        %v1681 = vpack.c.bf16 %v1669, %v1669
        %v1690 = vunpack.c.l.b16 %v1673
        %v1691 = vunpack.c.l.b16 %v1674
        %v1692 = vunpack.c.l.b16 %v1675
        %v1693 = vunpack.c.l.b16 %v1676
        %v1694 = vunpack.c.l.b16 %v1677
        %v1695 = vunpack.c.l.b16 %v1678
        %v1696 = vunpack.c.l.b16 %v1679
        %v1697 = vunpack.c.l.b16 %v1680
        %v1698 = vpack.c.b16 %v1691, %v1690
        %v1699 = vpack.c.b16 %v1693, %v1692
        %v1700 = vpack.c.b16 %v1695, %v1694
        %v1701 = vpack.c.b16 %v1697, %v1696
        %v1707 = vsel %vm880, %v1681, 0
        %1709 = vmatprep.subr.bf16.mxu0 0
        %1710 = vmatpush1.bf16.msra.mxu0 %v1698
        %1711 = vmatprep.subr.bf16.mxu0 0
        %1712 = vmatpush1.bf16.msra.mxu0 %v1699
        %1713 = vmatprep.subr.bf16.mxu0 0
        %1714 = vmatpush1.bf16.msra.mxu0 %v1700
        %1715 = vmatprep.subr.bf16.mxu0 0
        %1716 = vmatpush1.bf16.msra.mxu0 %v1701
        %1717 = vmatprep.subr.bf16.mxu0 0
        %1718 = vmatpush1.bf16.msra.mxu0 0
        %1719 = vmatprep.subr.bf16.mxu0 0
        %1720 = vmatpush1.bf16.msra.mxu0 0
        %1721 = vmatprep.subr.bf16.mxu0 0
        %1722 = vmatpush1.bf16.msra.mxu0 0
        %1723 = vmatprep.subr.bf16.mxu0 0
        %1724 = vmatpush1.bf16.msra.mxu0 0
        %1725 = vmatprep.subr.bf16.mxu0 0
        %1726 = vmatpush1.bf16.msra.mxu0 0
        %1727 = vmatprep.subr.bf16.mxu0 0
        %1728 = vmatpush1.bf16.msra.mxu0 0
        %1729 = vmatprep.subr.bf16.mxu0 0
        %1730 = vmatpush1.bf16.msra.mxu0 0
        %1731 = vmatprep.subr.bf16.mxu0 0
        %1732 = vmatpush1.bf16.msra.mxu0 0
        %1733 = vmatprep.subr.bf16.mxu0 0
        %1734 = vmatpush1.bf16.msra.mxu0 0
        %1735 = vmatprep.subr.bf16.mxu0 0
        %1736 = vmatpush1.bf16.msra.mxu0 0
        %1737 = vmatprep.subr.bf16.mxu0 0
        %1738 = vmatpush1.bf16.msra.mxu0 0
        %1739 = vmatprep.subr.bf16.mxu0 0
        %1740 = vmatpush1.bf16.msra.mxu0 0
        %1741 = vmatprep.mubr.bf16.mxu0 0
        %1742 = vmatmul.mubr.bf16.gmra.mrb[0].mxu0 %v1707
        %v1743 = vpop.f32.mrb[0].mxu0
        %v1744 = vadd.f32 0.0, %v1743
        %v1745 = vpop.f32.mrb[0].mxu0
        %v1746 = vpop.f32.mrb[0].mxu0
        %v1747 = vpop.f32.mrb[0].mxu0
        %1748 = vdwg.mxu0
        %v1757 = vunpack.c.l.b16 %v1495
        %v1758 = vunpack.c.l.b16 %v1496
        %v1759 = vunpack.c.l.b16 %v1497
        %v1760 = vunpack.c.l.b16 %v1498
        %v1761 = vunpack.c.l.b16 %v1499
        %v1762 = vunpack.c.l.b16 %v1500
        %v1763 = vunpack.c.l.b16 %v1501
        %v1764 = vunpack.c.l.b16 %v1502
        %v1765 = vpack.c.b16 %v1758, %v1757
        %v1766 = vpack.c.b16 %v1760, %v1759
        %v1767 = vpack.c.b16 %v1762, %v1761
        %v1768 = vpack.c.b16 %v1764, %v1763
        %v1774 = vsel %vm880, %v1503, 0
        %1776 = vmatprep.subr.bf16.mxu0 0
        %1777 = vmatpush1.bf16.msra.mxu0 %v1765
        %1778 = vmatprep.subr.bf16.mxu0 0
        %1779 = vmatpush1.bf16.msra.mxu0 %v1766
        %1780 = vmatprep.subr.bf16.mxu0 0
        %1781 = vmatpush1.bf16.msra.mxu0 %v1767
        %1782 = vmatprep.subr.bf16.mxu0 0
        %1783 = vmatpush1.bf16.msra.mxu0 %v1768
        %1784 = vmatprep.subr.bf16.mxu0 0
        %1785 = vmatpush1.bf16.msra.mxu0 0
        %1786 = vmatprep.subr.bf16.mxu0 0
        %1787 = vmatpush1.bf16.msra.mxu0 0
        %1788 = vmatprep.subr.bf16.mxu0 0
        %1789 = vmatpush1.bf16.msra.mxu0 0
        %1790 = vmatprep.subr.bf16.mxu0 0
        %1791 = vmatpush1.bf16.msra.mxu0 0
        %1792 = vmatprep.subr.bf16.mxu0 0
        %1793 = vmatpush1.bf16.msra.mxu0 0
        %1794 = vmatprep.subr.bf16.mxu0 0
        %1795 = vmatpush1.bf16.msra.mxu0 0
        %1796 = vmatprep.subr.bf16.mxu0 0
        %1797 = vmatpush1.bf16.msra.mxu0 0
        %1798 = vmatprep.subr.bf16.mxu0 0
        %1799 = vmatpush1.bf16.msra.mxu0 0
        %1800 = vmatprep.subr.bf16.mxu0 0
        %1801 = vmatpush1.bf16.msra.mxu0 0
        %1802 = vmatprep.subr.bf16.mxu0 0
        %1803 = vmatpush1.bf16.msra.mxu0 0
        %1804 = vmatprep.subr.bf16.mxu0 0
        %1805 = vmatpush1.bf16.msra.mxu0 0
        %1806 = vmatprep.subr.bf16.mxu0 0
        %1807 = vmatpush1.bf16.msra.mxu0 0
        %1808 = vmatprep.mubr.bf16.mxu0 0
        %1809 = vmatmul.mubr.bf16.gmra.mrb[0].mxu0 %v1774
        %v1810 = vpop.f32.mrb[0].mxu0
        %v1811 = vadd.f32 %v1744, %v1810
        %v1812 = vpop.f32.mrb[0].mxu0
        %v1813 = vpop.f32.mrb[0].mxu0
        %v1814 = vpop.f32.mrb[0].mxu0
        %1815 = vdwg.mxu0
        %v1816 = vld [vmem:[%s11] sm:$0x1]
        %v1818 = vlaneseq
        %v1819 = vshrl.u32 %v1818, 7
        %v1820 = vsub.s32 0, %v1819
        %v1821 = vrot.slane %v1816, %v1820
        %v1823 = vadd.f32 %v1811, %v1821
        %v1824 = vadd.f32 %v1063, %v1823
        %v1825 = vld [vmem:[%s12] sm:$0x1]
        %v1826 = vld [vmem:[%s13] sm:$0x1]
        %1827 = vadd.xlane.f32.xlu0 %v1824
        %v1828 = vpop.xlane.xlu0 %1827
        %v1829 = vmul.f32 %v1828, %v1040
        %v1830 = vsub.f32 %v1824, %v1829
        %v1831 = vmul.f32 %v1830, %v1830
        %1832 = vadd.xlane.f32.xlu0 %v1831
        %v1833 = vpop.xlane.xlu0 %1832
        %v1834 = vmul.f32 %v1833, %v1040
        %v1835 = vadd.f32 %v1834, 1e-12
        %v1836 = vrsqrt.pop %v1835
        %v1837 = vmul.f32 %v1830, %v1836
        %v1839 = vlaneseq
        %v1840 = vshrl.u32 %v1839, 7
        %v1841 = vsub.s32 0, %v1840
        %v1842 = vrot.slane %v1825, %v1841
        %v1844 = vmul.f32 %v1837, %v1842
        %v1846 = vlaneseq
        %v1847 = vshrl.u32 %v1846, 7
        %v1848 = vsub.s32 0, %v1847
        %v1849 = vrot.slane %v1826, %v1848
        %v1851 = vadd.f32 %v1844, %v1849
        %v1852 = vld [vmem:[#allocation8] sm:$0xff]
        %v1853 = vld [vmem:[#allocation8 + $0x8] sm:$0xff]
        %v1854 = vld [vmem:[#allocation8 + $0x10] sm:$0xff]
        %v1855 = vld [vmem:[#allocation8 + $0x18] sm:$0xff]
        %v1856 = vld [vmem:[#allocation8 + $0x20] sm:$0xff]
        %v1857 = vld [vmem:[#allocation8 + $0x28] sm:$0xff]
        %v1858 = vld [vmem:[#allocation8 + $0x30] sm:$0xff]
        %v1859 = vld [vmem:[#allocation8 + $0x38] sm:$0xff]
        %v1860 = vld [vmem:[#allocation8 + $0x40] sm:$0xff]
        %v1861 = vld [vmem:[#allocation8 + $0x48] sm:$0xff]
        %v1862 = vld [vmem:[#allocation8 + $0x50] sm:$0xff]
        %v1863 = vld [vmem:[#allocation8 + $0x58] sm:$0xff]
        %v1864 = vld [vmem:[#allocation8 + $0x60] sm:$0xff]
        %v1865 = vld [vmem:[#allocation8 + $0x68] sm:$0xff]
        %v1866 = vld [vmem:[#allocation8 + $0x70] sm:$0xff]
        %v1867 = vld [vmem:[#allocation8 + $0x78] sm:$0xff]
        %v1868 = vpack.c.bf16 %v1851, %v1851
        %v1869 = vld [vmem:[%s15] sm:$0x3]
        %v1871 = vlaneseq
        %v1872 = vshrl.u32 %v1871, 7
        %v1873 = vsub.s32 0, %v1872
        %v1874 = vrot.slane %v1869, %v1873
        %v1875 = vlaneseq
        %v1876 = vshrl.u32 %v1875, 7
        %v1877 = vsub.s32 1, %v1876
        %v1878 = vrot.slane %v1869, %v1877
        %v1897 = vunpack.c.l.b16 %v1852
        %v1898 = vunpack.c.h.b16 %v1852
        %v1899 = vunpack.c.l.b16 %v1853
        %v1900 = vunpack.c.h.b16 %v1853
        %v1901 = vunpack.c.l.b16 %v1854
        %v1902 = vunpack.c.h.b16 %v1854
        %v1903 = vunpack.c.l.b16 %v1855
        %v1904 = vunpack.c.h.b16 %v1855
        %v1905 = vunpack.c.l.b16 %v1856
        %v1906 = vunpack.c.h.b16 %v1856
        %v1907 = vunpack.c.l.b16 %v1857
        %v1908 = vunpack.c.h.b16 %v1857
        %v1909 = vunpack.c.l.b16 %v1858
        %v1910 = vunpack.c.h.b16 %v1858
        %v1911 = vunpack.c.l.b16 %v1859
        %v1912 = vunpack.c.h.b16 %v1859
        %v1913 = vunpack.c.l.b16 %v1860
        %v1914 = vunpack.c.h.b16 %v1860
        %v1915 = vunpack.c.l.b16 %v1861
        %v1916 = vunpack.c.h.b16 %v1861
        %v1917 = vunpack.c.l.b16 %v1862
        %v1918 = vunpack.c.h.b16 %v1862
        %v1919 = vunpack.c.l.b16 %v1863
        %v1920 = vunpack.c.h.b16 %v1863
        %v1921 = vunpack.c.l.b16 %v1864
        %v1922 = vunpack.c.h.b16 %v1864
        %v1923 = vunpack.c.l.b16 %v1865
        %v1924 = vunpack.c.h.b16 %v1865
        %v1925 = vunpack.c.l.b16 %v1866
        %v1926 = vunpack.c.h.b16 %v1866
        %v1927 = vunpack.c.l.b16 %v1867
        %v1928 = vunpack.c.h.b16 %v1867
        %v1929 = vpack.c.b16 %v1899, %v1897
        %v1930 = vpack.c.b16 %v1900, %v1898
        %v1931 = vpack.c.b16 %v1903, %v1901
        %v1932 = vpack.c.b16 %v1904, %v1902
        %v1933 = vpack.c.b16 %v1907, %v1905
        %v1934 = vpack.c.b16 %v1908, %v1906
        %v1935 = vpack.c.b16 %v1911, %v1909
        %v1936 = vpack.c.b16 %v1912, %v1910
        %v1937 = vpack.c.b16 %v1915, %v1913
        %v1938 = vpack.c.b16 %v1916, %v1914
        %v1939 = vpack.c.b16 %v1919, %v1917
        %v1940 = vpack.c.b16 %v1920, %v1918
        %v1941 = vpack.c.b16 %v1923, %v1921
        %v1942 = vpack.c.b16 %v1924, %v1922
        %v1943 = vpack.c.b16 %v1927, %v1925
        %v1944 = vpack.c.b16 %v1928, %v1926
        %1961 = vmatprep.subr.bf16.mxu0 %v1930
        %1962 = vmatpush1.bf16.msra.mxu0 %v1929
        %1963 = vmatprep.subr.bf16.mxu0 %v1932
        %1964 = vmatpush1.bf16.msra.mxu0 %v1931
        %1965 = vmatprep.subr.bf16.mxu0 %v1934
        %1966 = vmatpush1.bf16.msra.mxu0 %v1933
        %1967 = vmatprep.subr.bf16.mxu0 %v1936
        %1968 = vmatpush1.bf16.msra.mxu0 %v1935
        %1969 = vmatprep.subr.bf16.mxu0 %v1938
        %1970 = vmatpush1.bf16.msra.mxu0 %v1937
        %1971 = vmatprep.subr.bf16.mxu0 %v1940
        %1972 = vmatpush1.bf16.msra.mxu0 %v1939
        %1973 = vmatprep.subr.bf16.mxu0 %v1942
        %1974 = vmatpush1.bf16.msra.mxu0 %v1941
        %1975 = vmatprep.subr.bf16.mxu0 %v1944
        %1976 = vmatpush1.bf16.msra.mxu0 %v1943
        %1977 = vmatprep.subr.bf16.mxu0 0
        %1978 = vmatpush1.bf16.msra.mxu0 0
        %1979 = vmatprep.subr.bf16.mxu0 0
        %1980 = vmatpush1.bf16.msra.mxu0 0
        %1981 = vmatprep.subr.bf16.mxu0 0
        %1982 = vmatpush1.bf16.msra.mxu0 0
        %1983 = vmatprep.subr.bf16.mxu0 0
        %1984 = vmatpush1.bf16.msra.mxu0 0
        %1985 = vmatprep.subr.bf16.mxu0 0
        %1986 = vmatpush1.bf16.msra.mxu0 0
        %1987 = vmatprep.subr.bf16.mxu0 0
        %1988 = vmatpush1.bf16.msra.mxu0 0
        %1989 = vmatprep.subr.bf16.mxu0 0
        %1990 = vmatpush1.bf16.msra.mxu0 0
        %1991 = vmatprep.subr.bf16.mxu0 0
        %1992 = vmatpush1.bf16.msra.mxu0 0
        %1993 = vmatprep.mubr.bf16.mxu0 0
        %1994 = vmatmul.mubr.bf16.gmra.mrb[0].mxu0 %v1868
        %v1995 = vpop.f32.mrb[0].mxu0
        %v1996 = vadd.f32 %v1874, %v1995
        %v1997 = vpop.f32.mrb[0].mxu0
        %v1998 = vadd.f32 %v1878, %v1997
        %v1999 = vpop.f32.mrb[0].mxu0
        %v2000 = vpop.f32.mrb[0].mxu0
        %2001 = vdwg.mxu0
        %v2002 = vmul.f32 %v1996, %v1996
        %v2003 = vmul.f32 %v1998, %v1998
        %v2004 = vmul.f32 %v1996, %v2002
        %v2005 = vmul.f32 %v1998, %v2003
        %v2006 = vmul.f32 %v2004, 0.044715
        %v2007 = vmul.f32 %v2005, 0.044715
        %v2008 = vadd.f32 %v1996, %v2006
        %v2009 = vadd.f32 %v1998, %v2007
        %v2010 = vmul.f32 %v2008, 0.7978846
        %v2011 = vmul.f32 %v2009, 0.7978846
        %v2012 = vtanh.pop %v2010
        %v2013 = vtanh.pop %v2011
        %v2014 = vadd.f32 %v2012, 1.0
        %v2015 = vadd.f32 %v2013, 1.0
        %v2016 = vmul.f32 %v2014, 0.5
        %v2017 = vmul.f32 %v2015, 0.5
        %v2018 = vmul.f32 %v1996, %v2016
        %v2019 = vmul.f32 %v1998, %v2017
        %v2020 = vld [vmem:[#allocation10] sm:$0xf]
        %v2021 = vld [vmem:[#allocation10 + $0x4] sm:$0xf]
        %v2022 = vld [vmem:[#allocation10 + $0x8] sm:$0xf]
        %v2023 = vld [vmem:[#allocation10 + $0xc] sm:$0xf]
        %v2024 = vld [vmem:[#allocation10 + $0x10] sm:$0xf]
        %v2025 = vld [vmem:[#allocation10 + $0x14] sm:$0xf]
        %v2026 = vld [vmem:[#allocation10 + $0x18] sm:$0xf]
        %v2027 = vld [vmem:[#allocation10 + $0x1c] sm:$0xf]
        %v2028 = vld [vmem:[#allocation10 + $0x20] sm:$0xf]
        %v2029 = vld [vmem:[#allocation10 + $0x24] sm:$0xf]
        %v2030 = vld [vmem:[#allocation10 + $0x28] sm:$0xf]
        %v2031 = vld [vmem:[#allocation10 + $0x2c] sm:$0xf]
        %v2032 = vld [vmem:[#allocation10 + $0x30] sm:$0xf]
        %v2033 = vld [vmem:[#allocation10 + $0x34] sm:$0xf]
        %v2034 = vld [vmem:[#allocation10 + $0x38] sm:$0xf]
        %v2035 = vld [vmem:[#allocation10 + $0x3c] sm:$0xf]
        %v2036 = vld [vmem:[#allocation10 + $0x40] sm:$0xf]
        %v2037 = vld [vmem:[#allocation10 + $0x44] sm:$0xf]
        %v2038 = vld [vmem:[#allocation10 + $0x48] sm:$0xf]
        %v2039 = vld [vmem:[#allocation10 + $0x4c] sm:$0xf]
        %v2040 = vld [vmem:[#allocation10 + $0x50] sm:$0xf]
        %v2041 = vld [vmem:[#allocation10 + $0x54] sm:$0xf]
        %v2042 = vld [vmem:[#allocation10 + $0x58] sm:$0xf]
        %v2043 = vld [vmem:[#allocation10 + $0x5c] sm:$0xf]
        %v2044 = vld [vmem:[#allocation10 + $0x60] sm:$0xf]
        %v2045 = vld [vmem:[#allocation10 + $0x64] sm:$0xf]
        %v2046 = vld [vmem:[#allocation10 + $0x68] sm:$0xf]
        %v2047 = vld [vmem:[#allocation10 + $0x6c] sm:$0xf]
        %v2048 = vld [vmem:[#allocation10 + $0x70] sm:$0xf]
        %v2049 = vld [vmem:[#allocation10 + $0x74] sm:$0xf]
        %v2050 = vld [vmem:[#allocation10 + $0x78] sm:$0xf]
        %v2051 = vld [vmem:[#allocation10 + $0x7c] sm:$0xf]
        %v2052 = vpack.c.bf16 %v2018, %v2018
        %v2053 = vpack.c.bf16 %v2019, %v2019
        %v2054 = vld [vmem:[%s17] sm:$0x1]
        %v2056 = vlaneseq
        %v2057 = vshrl.u32 %v2056, 7
        %v2058 = vsub.s32 0, %v2057
        %v2059 = vrot.slane %v2054, %v2058
        %v2093 = vunpack.c.l.b16 %v2020
        %v2094 = vunpack.c.l.b16 %v2021
        %v2095 = vunpack.c.l.b16 %v2022
        %v2096 = vunpack.c.l.b16 %v2023
        %v2097 = vunpack.c.l.b16 %v2024
        %v2098 = vunpack.c.l.b16 %v2025
        %v2099 = vunpack.c.l.b16 %v2026
        %v2100 = vunpack.c.l.b16 %v2027
        %v2101 = vunpack.c.l.b16 %v2028
        %v2102 = vunpack.c.l.b16 %v2029
        %v2103 = vunpack.c.l.b16 %v2030
        %v2104 = vunpack.c.l.b16 %v2031
        %v2105 = vunpack.c.l.b16 %v2032
        %v2106 = vunpack.c.l.b16 %v2033
        %v2107 = vunpack.c.l.b16 %v2034
        %v2108 = vunpack.c.l.b16 %v2035
        %v2109 = vunpack.c.l.b16 %v2036
        %v2110 = vunpack.c.l.b16 %v2037
        %v2111 = vunpack.c.l.b16 %v2038
        %v2112 = vunpack.c.l.b16 %v2039
        %v2113 = vunpack.c.l.b16 %v2040
        %v2114 = vunpack.c.l.b16 %v2041
        %v2115 = vunpack.c.l.b16 %v2042
        %v2116 = vunpack.c.l.b16 %v2043
        %v2117 = vunpack.c.l.b16 %v2044
        %v2118 = vunpack.c.l.b16 %v2045
        %v2119 = vunpack.c.l.b16 %v2046
        %v2120 = vunpack.c.l.b16 %v2047
        %v2121 = vunpack.c.l.b16 %v2048
        %v2122 = vunpack.c.l.b16 %v2049
        %v2123 = vunpack.c.l.b16 %v2050
        %v2124 = vunpack.c.l.b16 %v2051
        %v2125 = vpack.c.b16 %v2094, %v2093
        %v2126 = vpack.c.b16 %v2096, %v2095
        %v2127 = vpack.c.b16 %v2098, %v2097
        %v2128 = vpack.c.b16 %v2100, %v2099
        %v2129 = vpack.c.b16 %v2102, %v2101
        %v2130 = vpack.c.b16 %v2104, %v2103
        %v2131 = vpack.c.b16 %v2106, %v2105
        %v2132 = vpack.c.b16 %v2108, %v2107
        %v2133 = vpack.c.b16 %v2110, %v2109
        %v2134 = vpack.c.b16 %v2112, %v2111
        %v2135 = vpack.c.b16 %v2114, %v2113
        %v2136 = vpack.c.b16 %v2116, %v2115
        %v2137 = vpack.c.b16 %v2118, %v2117
        %v2138 = vpack.c.b16 %v2120, %v2119
        %v2139 = vpack.c.b16 %v2122, %v2121
        %v2140 = vpack.c.b16 %v2124, %v2123
        %2157 = vmatprep.subr.bf16.mxu0 0
        %2158 = vmatpush1.bf16.msra.mxu0 %v2125
        %2159 = vmatprep.subr.bf16.mxu0 0
        %2160 = vmatpush1.bf16.msra.mxu0 %v2126
        %2161 = vmatprep.subr.bf16.mxu0 0
        %2162 = vmatpush1.bf16.msra.mxu0 %v2127
        %2163 = vmatprep.subr.bf16.mxu0 0
        %2164 = vmatpush1.bf16.msra.mxu0 %v2128
        %2165 = vmatprep.subr.bf16.mxu0 0
        %2166 = vmatpush1.bf16.msra.mxu0 %v2129
        %2167 = vmatprep.subr.bf16.mxu0 0
        %2168 = vmatpush1.bf16.msra.mxu0 %v2130
        %2169 = vmatprep.subr.bf16.mxu0 0
        %2170 = vmatpush1.bf16.msra.mxu0 %v2131
        %2171 = vmatprep.subr.bf16.mxu0 0
        %2172 = vmatpush1.bf16.msra.mxu0 %v2132
        %2173 = vmatprep.subr.bf16.mxu0 0
        %2174 = vmatpush1.bf16.msra.mxu0 %v2133
        %2175 = vmatprep.subr.bf16.mxu0 0
        %2176 = vmatpush1.bf16.msra.mxu0 %v2134
        %2177 = vmatprep.subr.bf16.mxu0 0
        %2178 = vmatpush1.bf16.msra.mxu0 %v2135
        %2179 = vmatprep.subr.bf16.mxu0 0
        %2180 = vmatpush1.bf16.msra.mxu0 %v2136
        %2181 = vmatprep.subr.bf16.mxu0 0
        %2182 = vmatpush1.bf16.msra.mxu0 %v2137
        %2183 = vmatprep.subr.bf16.mxu0 0
        %2184 = vmatpush1.bf16.msra.mxu0 %v2138
        %2185 = vmatprep.subr.bf16.mxu0 0
        %2186 = vmatpush1.bf16.msra.mxu0 %v2139
        %2187 = vmatprep.subr.bf16.mxu0 0
        %2188 = vmatpush1.bf16.msra.mxu0 %v2140
        %2189 = vmatprep.mubr.bf16.mxu0 %v2053
        %2190 = vmatmul.mubr.bf16.gmra.mrb[0].mxu0 %v2052
        %v2191 = vpop.f32.mrb[0].mxu0
        %v2192 = vadd.f32 %v2059, %v2191
        %v2193 = vpop.f32.mrb[0].mxu0
        %v2194 = vpop.f32.mrb[0].mxu0
        %v2195 = vpop.f32.mrb[0].mxu0
        %2196 = vdwg.mxu0
        %v2197 = vadd.f32 %v1851, %v2192
        %v2198 = vld [vmem:[%s18] sm:$0x1]
        %v2199 = vld [vmem:[#allocation11] sm:$0x1]
        %2200 = vadd.xlane.f32.xlu0 %v2197
        %v2201 = vpop.xlane.xlu0 %2200
        %v2202 = vmul.f32 %v2201, %v1040
        %v2203 = vsub.f32 %v2197, %v2202
        %v2204 = vmul.f32 %v2203, %v2203
        %2205 = vadd.xlane.f32.xlu0 %v2204
        %v2206 = vpop.xlane.xlu0 %2205
        %v2207 = vmul.f32 %v2206, %v1040
        %v2208 = vadd.f32 %v2207, 1e-12
        %v2209 = vrsqrt.pop %v2208
        %v2210 = vmul.f32 %v2203, %v2209
        %v2212 = vlaneseq
        %v2213 = vshrl.u32 %v2212, 7
        %v2214 = vsub.s32 0, %v2213
        %v2215 = vrot.slane %v2198, %v2214
        %v2217 = vmul.f32 %v2210, %v2215
        %v2219 = vlaneseq
        %v2220 = vshrl.u32 %v2219, 7
        %v2221 = vsub.s32 0, %v2220
        %v2222 = vrot.slane %v2199, %v2221
        %v2224 = vadd.f32 %v2217, %v2222
        %s2225 = scalar_lea.vmem [#allocation5], 192
        %v2226 = vld [vmem:[%s2225] sm:$0xff]
        %v2227 = vld [vmem:[%s2225 + $0x8] sm:$0xf]
        %v2228 = vld [vmem:[%s2225 + $0xc] sm:$0xff]
        %v2229 = vld [vmem:[%s2225 + $0x14] sm:$0xf]
        %v2230 = vld [vmem:[%s2225 + $0x18] sm:$0xff]
        %v2231 = vld [vmem:[%s2225 + $0x20] sm:$0xf]
        %v2232 = vld [vmem:[%s2225 + $0x24] sm:$0xff]
        %v2233 = vld [vmem:[%s2225 + $0x2c] sm:$0xf]
        %v2234 = vld [vmem:[%s2225 + $0x30] sm:$0xff]
        %v2235 = vld [vmem:[%s2225 + $0x38] sm:$0xf]
        %v2236 = vld [vmem:[%s2225 + $0x3c] sm:$0xff]
        %v2237 = vld [vmem:[%s2225 + $0x44] sm:$0xf]
        %v2238 = vld [vmem:[%s2225 + $0x48] sm:$0xff]
        %v2239 = vld [vmem:[%s2225 + $0x50] sm:$0xf]
        %v2240 = vld [vmem:[%s2225 + $0x54] sm:$0xff]
        %v2241 = vld [vmem:[%s2225 + $0x5c] sm:$0xf]
        %v2242 = vld [vmem:[%s2225 + $0x60] sm:$0xff]
        %v2243 = vld [vmem:[%s2225 + $0x68] sm:$0xf]
        %v2244 = vld [vmem:[%s2225 + $0x6c] sm:$0xff]
        %v2245 = vld [vmem:[%s2225 + $0x74] sm:$0xf]
        %v2246 = vld [vmem:[%s2225 + $0x78] sm:$0xff]
        %v2247 = vld [vmem:[%s2225 + $0x80] sm:$0xf]
        %v2248 = vld [vmem:[%s2225 + $0x84] sm:$0xff]
        %v2249 = vld [vmem:[%s2225 + $0x8c] sm:$0xf]
        %v2250 = vld [vmem:[%s2225 + $0x90] sm:$0xff]
        %v2251 = vld [vmem:[%s2225 + $0x98] sm:$0xf]
        %v2252 = vld [vmem:[%s2225 + $0x9c] sm:$0xff]
        %v2253 = vld [vmem:[%s2225 + $0xa4] sm:$0xf]
        %v2254 = vld [vmem:[%s2225 + $0xa8] sm:$0xff]
        %v2255 = vld [vmem:[%s2225 + $0xb0] sm:$0xf]
        %v2256 = vld [vmem:[%s2225 + $0xb4] sm:$0xff]
        %v2257 = vld [vmem:[%s2225 + $0xbc] sm:$0xf]
        %v2258 = vpack.c.bf16 %v2224, %v2224
        %s2259 = scalar_lea.vmem %s9, 3
        %v2260 = vld [vmem:[%s2259] sm:$0x7]
        %v2262 = vlaneseq
        %v2263 = vshrl.u32 %v2262, 7
        %v2264 = vsub.s32 0, %v2263
        %v2265 = vrot.slane %v2260, %v2264
        %v2266 = vlaneseq
        %v2267 = vshrl.u32 %v2266, 7
        %v2268 = vsub.s32 1, %v2267
        %v2269 = vrot.slane %v2260, %v2268
        %v2270 = vlaneseq
        %v2271 = vshrl.u32 %v2270, 7
        %v2272 = vsub.s32 2, %v2271
        %v2273 = vrot.slane %v2260, %v2272
        %v2309 = vunpack.c.l.b16 %v2226
        %v2310 = vunpack.c.h.b16 %v2226
        %v2311 = vunpack.c.l.b16 %v2227
        %v2312 = vunpack.c.l.b16 %v2228
        %v2313 = vunpack.c.h.b16 %v2228
        %v2314 = vunpack.c.l.b16 %v2229
        %v2315 = vunpack.c.l.b16 %v2230
        %v2316 = vunpack.c.h.b16 %v2230
        %v2317 = vunpack.c.l.b16 %v2231
        %v2318 = vunpack.c.l.b16 %v2232
        %v2319 = vunpack.c.h.b16 %v2232
        %v2320 = vunpack.c.l.b16 %v2233
        %v2321 = vunpack.c.l.b16 %v2234
        %v2322 = vunpack.c.h.b16 %v2234
        %v2323 = vunpack.c.l.b16 %v2235
        %v2324 = vunpack.c.l.b16 %v2236
        %v2325 = vunpack.c.h.b16 %v2236
        %v2326 = vunpack.c.l.b16 %v2237
        %v2327 = vunpack.c.l.b16 %v2238
        %v2328 = vunpack.c.h.b16 %v2238
        %v2329 = vunpack.c.l.b16 %v2239
        %v2330 = vunpack.c.l.b16 %v2240
        %v2331 = vunpack.c.h.b16 %v2240
        %v2332 = vunpack.c.l.b16 %v2241
        %v2333 = vunpack.c.l.b16 %v2242
        %v2334 = vunpack.c.h.b16 %v2242
        %v2335 = vunpack.c.l.b16 %v2243
        %v2336 = vunpack.c.l.b16 %v2244
        %v2337 = vunpack.c.h.b16 %v2244
        %v2338 = vunpack.c.l.b16 %v2245
        %v2339 = vunpack.c.l.b16 %v2246
        %v2340 = vunpack.c.h.b16 %v2246
        %v2341 = vunpack.c.l.b16 %v2247
        %v2342 = vunpack.c.l.b16 %v2248
        %v2343 = vunpack.c.h.b16 %v2248
        %v2344 = vunpack.c.l.b16 %v2249
        %v2345 = vunpack.c.l.b16 %v2250
        %v2346 = vunpack.c.h.b16 %v2250
        %v2347 = vunpack.c.l.b16 %v2251
        %v2348 = vunpack.c.l.b16 %v2252
        %v2349 = vunpack.c.h.b16 %v2252
        %v2350 = vunpack.c.l.b16 %v2253
        %v2351 = vunpack.c.l.b16 %v2254
        %v2352 = vunpack.c.h.b16 %v2254
        %v2353 = vunpack.c.l.b16 %v2255
        %v2354 = vunpack.c.l.b16 %v2256
        %v2355 = vunpack.c.h.b16 %v2256
        %v2356 = vunpack.c.l.b16 %v2257
        %v2357 = vpack.c.b16 %v2312, %v2309
        %v2358 = vpack.c.b16 %v2313, %v2310
        %v2359 = vpack.c.b16 %v2314, %v2311
        %v2360 = vpack.c.b16 %v2318, %v2315
        %v2361 = vpack.c.b16 %v2319, %v2316
        %v2362 = vpack.c.b16 %v2320, %v2317
        %v2363 = vpack.c.b16 %v2324, %v2321
        %v2364 = vpack.c.b16 %v2325, %v2322
        %v2365 = vpack.c.b16 %v2326, %v2323
        %v2366 = vpack.c.b16 %v2330, %v2327
        %v2367 = vpack.c.b16 %v2331, %v2328
        %v2368 = vpack.c.b16 %v2332, %v2329
        %v2369 = vpack.c.b16 %v2336, %v2333
        %v2370 = vpack.c.b16 %v2337, %v2334
        %v2371 = vpack.c.b16 %v2338, %v2335
        %v2372 = vpack.c.b16 %v2342, %v2339
        %v2373 = vpack.c.b16 %v2343, %v2340
        %v2374 = vpack.c.b16 %v2344, %v2341
        %v2375 = vpack.c.b16 %v2348, %v2345
        %v2376 = vpack.c.b16 %v2349, %v2346
        %v2377 = vpack.c.b16 %v2350, %v2347
        %v2378 = vpack.c.b16 %v2354, %v2351
        %v2379 = vpack.c.b16 %v2355, %v2352
        %v2380 = vpack.c.b16 %v2356, %v2353
        %2405 = vmatprep.subr.bf16.mxu0 %v2358
        %2406 = vmatpush1.bf16.msra.mxu0 %v2357
        %2407 = vmatprep.subr.bf16.mxu0 %v2361
        %2408 = vmatpush1.bf16.msra.mxu0 %v2360
        %2409 = vmatprep.subr.bf16.mxu0 %v2364
        %2410 = vmatpush1.bf16.msra.mxu0 %v2363
        %2411 = vmatprep.subr.bf16.mxu0 %v2367
        %2412 = vmatpush1.bf16.msra.mxu0 %v2366
        %2413 = vmatprep.subr.bf16.mxu0 %v2370
        %2414 = vmatpush1.bf16.msra.mxu0 %v2369
        %2415 = vmatprep.subr.bf16.mxu0 %v2373
        %2416 = vmatpush1.bf16.msra.mxu0 %v2372
        %2417 = vmatprep.subr.bf16.mxu0 %v2376
        %2418 = vmatpush1.bf16.msra.mxu0 %v2375
        %2419 = vmatprep.subr.bf16.mxu0 %v2379
        %2420 = vmatpush1.bf16.msra.mxu0 %v2378
        %2421 = vmatprep.subr.bf16.mxu0 0
        %2422 = vmatpush1.bf16.msra.mxu0 0
        %2423 = vmatprep.subr.bf16.mxu0 0
        %2424 = vmatpush1.bf16.msra.mxu0 0
        %2425 = vmatprep.subr.bf16.mxu0 0
        %2426 = vmatpush1.bf16.msra.mxu0 0
        %2427 = vmatprep.subr.bf16.mxu0 0
        %2428 = vmatpush1.bf16.msra.mxu0 0
        %2429 = vmatprep.subr.bf16.mxu0 0
        %2430 = vmatpush1.bf16.msra.mxu0 0
        %2431 = vmatprep.subr.bf16.mxu0 0
        %2432 = vmatpush1.bf16.msra.mxu0 0
        %2433 = vmatprep.subr.bf16.mxu0 0
        %2434 = vmatpush1.bf16.msra.mxu0 0
        %2435 = vmatprep.subr.bf16.mxu0 0
        %2436 = vmatpush1.bf16.msra.mxu0 0
        %2437 = vmatprep.mubr.bf16.mxu0 0
        %2438 = vmatmul.mubr.bf16.gmra.mrb[0].mxu0 %v2258
        %v2439 = vpop.f32.mrb[0].mxu0
        %v2440 = vadd.f32 %v2265, %v2439
        %v2441 = vpop.f32.mrb[0].mxu0
        %v2442 = vadd.f32 %v2269, %v2441
        %v2443 = vpop.f32.mrb[0].mxu0
        %v2444 = vpop.f32.mrb[0].mxu0
        %2445 = vdwg.mxu0
        %2446 = vmatprep.subr.bf16.mxu0 0
        %2447 = vmatpush1.bf16.msra.mxu0 %v2359
        %2448 = vmatprep.subr.bf16.mxu0 0
        %2449 = vmatpush1.bf16.msra.mxu0 %v2362
        %2450 = vmatprep.subr.bf16.mxu0 0
        %2451 = vmatpush1.bf16.msra.mxu0 %v2365
        %2452 = vmatprep.subr.bf16.mxu0 0
        %2453 = vmatpush1.bf16.msra.mxu0 %v2368
        %2454 = vmatprep.subr.bf16.mxu0 0
        %2455 = vmatpush1.bf16.msra.mxu0 %v2371
        %2456 = vmatprep.subr.bf16.mxu0 0
        %2457 = vmatpush1.bf16.msra.mxu0 %v2374
        %2458 = vmatprep.subr.bf16.mxu0 0
        %2459 = vmatpush1.bf16.msra.mxu0 %v2377
        %2460 = vmatprep.subr.bf16.mxu0 0
        %2461 = vmatpush1.bf16.msra.mxu0 %v2380
        %2462 = vmatprep.subr.bf16.mxu0 0
        %2463 = vmatpush1.bf16.msra.mxu0 0
        %2464 = vmatprep.subr.bf16.mxu0 0
        %2465 = vmatpush1.bf16.msra.mxu0 0
        %2466 = vmatprep.subr.bf16.mxu0 0
        %2467 = vmatpush1.bf16.msra.mxu0 0
        %2468 = vmatprep.subr.bf16.mxu0 0
        %2469 = vmatpush1.bf16.msra.mxu0 0
        %2470 = vmatprep.subr.bf16.mxu0 0
        %2471 = vmatpush1.bf16.msra.mxu0 0
        %2472 = vmatprep.subr.bf16.mxu0 0
        %2473 = vmatpush1.bf16.msra.mxu0 0
        %2474 = vmatprep.subr.bf16.mxu0 0
        %2475 = vmatpush1.bf16.msra.mxu0 0
        %2476 = vmatprep.subr.bf16.mxu0 0
        %2477 = vmatpush1.bf16.msra.mxu0 0
        %2478 = vmatprep.mubr.bf16.mxu0 0
        %2479 = vmatmul.mubr.bf16.gmra.mrb[0].mxu0 %v2258
        %v2480 = vpop.f32.mrb[0].mxu0
        %v2481 = vadd.f32 %v2273, %v2480
        %v2482 = vpop.f32.mrb[0].mxu0
        %v2483 = vpop.f32.mrb[0].mxu0
        %v2484 = vpop.f32.mrb[0].mxu0
        %2485 = vdwg.mxu0
        %v2487 = vsel %vm880, %v2440, 0
        %v2490 = vsel %vm880, %v2442, 0
        %2492 = vmatprep.subr.mxu0 0.0
        %2493 = vmatpush1.xpose.msra.mxu0 %v2490
        %2494 = vmatprep.subr.mxu0 0.0
        %2495 = vmatpush1.xpose.msra.mxu0 0.0
        %2496 = vmatprep.subr.mxu0 0.0
        %2497 = vmatpush1.xpose.msra.mxu0 0.0
        %2498 = vmatprep.subr.mxu0 0.0
        %2499 = vmatpush1.xpose.msra.mxu0 0.0
        %2500 = vmatprep.subr.mxu0 0.0
        %2501 = vmatpush1.xpose.msra.mxu0 0.0
        %2502 = vmatprep.subr.mxu0 0.0
        %2503 = vmatpush1.xpose.msra.mxu0 0.0
        %2504 = vmatprep.subr.mxu0 0.0
        %2505 = vmatpush1.xpose.msra.mxu0 0.0
        %2506 = vmatprep.subr.mxu0 0.0
        %2507 = vmatpush1.xpose.msra.mxu0 0.0
        %2508 = vmatprep.subr.mxu0 0.0
        %2509 = vmatpush1.xpose.msra.mxu0 0.0
        %2510 = vmatprep.subr.mxu0 0.0
        %2511 = vmatpush1.xpose.msra.mxu0 0.0
        %2512 = vmatprep.subr.mxu0 0.0
        %2513 = vmatpush1.xpose.msra.mxu0 0.0
        %2514 = vmatprep.subr.mxu0 0.0
        %2515 = vmatpush1.xpose.msra.mxu0 0.0
        %2516 = vmatprep.subr.mxu0 0.0
        %2517 = vmatpush1.xpose.msra.mxu0 0.0
        %2518 = vmatprep.subr.mxu0 0.0
        %2519 = vmatpush1.xpose.msra.mxu0 0.0
        %2520 = vmatprep.subr.mxu0 0.0
        %2521 = vmatpush1.xpose.msra.mxu0 0.0
        %2522 = vmatprep.subr.mxu0 0.0
        %2523 = vmatpush1.xpose.msra.mxu0 0.0
        %2524 = vmatprep.subr.mxu0 0.0
        %2525 = vmatpush1.xpose.msra.mxu0 0.0
        %2526 = vmatprep.subr.mxu0 0.0
        %2527 = vmatpush1.xpose.msra.mxu0 0.0
        %2528 = vmatprep.subr.mxu0 0.0
        %2529 = vmatpush1.xpose.msra.mxu0 0.0
        %2530 = vmatprep.subr.mxu0 0.0
        %2531 = vmatpush1.xpose.msra.mxu0 0.0
        %2532 = vmatprep.subr.mxu0 0.0
        %2533 = vmatpush1.xpose.msra.mxu0 0.0
        %2534 = vmatprep.subr.mxu0 0.0
        %2535 = vmatpush1.xpose.msra.mxu0 0.0
        %2536 = vmatprep.subr.mxu0 0.0
        %2537 = vmatpush1.xpose.msra.mxu0 0.0
        %2538 = vmatprep.subr.mxu0 0.0
        %2539 = vmatpush1.xpose.msra.mxu0 0.0
        %2540 = vmatprep.subr.mxu0 0.0
        %2541 = vmatpush1.xpose.msra.mxu0 0.0
        %2542 = vmatprep.subr.mxu0 0.0
        %2543 = vmatpush1.xpose.msra.mxu0 0.0
        %2544 = vmatprep.subr.mxu0 0.0
        %2545 = vmatpush1.xpose.msra.mxu0 0.0
        %2546 = vmatprep.subr.mxu0 0.0
        %2547 = vmatpush1.xpose.msra.mxu0 0.0
        %2548 = vmatprep.subr.mxu0 0.0
        %2549 = vmatpush1.xpose.msra.mxu0 0.0
        %2550 = vmatprep.subr.mxu0 0.0
        %2551 = vmatpush1.xpose.msra.mxu0 0.0
        %2552 = vmatprep.subr.mxu0 0.0
        %2553 = vmatpush1.xpose.msra.mxu0 0.0
        %2554 = vmatprep.subr.mxu0 0.0
        %2555 = vmatpush1.xpose.msra.mxu0 0.0
        %2556 = vmatprep.mubr.f32.mxu0 0.0
        %2557 = vmatmul.mubr.f32.gmra.mrb[0].mxu0 %v2487
        %v2558 = vpop.f32.mrb[0].mxu0
        %v2559 = vadd.f32 0.0, %v2558
        %v2560 = vpop.f32.mrb[0].mxu0
        %2561 = vdwg.mxu0
        %v2562 = vmul.f32 %v2559, 0.125
        %v2563 = vadd.f32 %v2562, %v1408
        %v2564 = vsel %vm961, %v2563, -inf
        %2565 = vmax.xlane.f32.xlu0 %v2564
        %v2566 = vpop.xlane.xlu0 %2565
        %v2567 = vsub.f32 %v2563, %v2566
        %v2568 = vmul.f32 %v2567, 1.442695
        %v2569 = vpow.pop %v2568
        %v2570 = vsel %vm961, %v2569, 0.0
        %2571 = vadd.xlane.f32.xlu0 %v2570
        %v2572 = vpop.xlane.xlu0 %2571
        %v2573 = vrcp.pop %v2572
        %v2574 = vmul.f32 %v2569, %v2573
        %v2576 = vsel %vm961, %v2574, 0
        %2578 = vmatprep.subr.mxu0 0.0
        %2579 = vmatpush1.msra.mxu0 %v2481
        %2580 = vmatprep.subr.mxu0 0.0
        %2581 = vmatpush1.msra.mxu0 0.0
        %2582 = vmatprep.subr.mxu0 0.0
        %2583 = vmatpush1.msra.mxu0 0.0
        %2584 = vmatprep.subr.mxu0 0.0
        %2585 = vmatpush1.msra.mxu0 0.0
        %2586 = vmatprep.subr.mxu0 0.0
        %2587 = vmatpush1.msra.mxu0 0.0
        %2588 = vmatprep.subr.mxu0 0.0
        %2589 = vmatpush1.msra.mxu0 0.0
        %2590 = vmatprep.subr.mxu0 0.0
        %2591 = vmatpush1.msra.mxu0 0.0
        %2592 = vmatprep.subr.mxu0 0.0
        %2593 = vmatpush1.msra.mxu0 0.0
        %2594 = vmatprep.subr.mxu0 0.0
        %2595 = vmatpush1.msra.mxu0 0.0
        %2596 = vmatprep.subr.mxu0 0.0
        %2597 = vmatpush1.msra.mxu0 0.0
        %2598 = vmatprep.subr.mxu0 0.0
        %2599 = vmatpush1.msra.mxu0 0.0
        %2600 = vmatprep.subr.mxu0 0.0
        %2601 = vmatpush1.msra.mxu0 0.0
        %2602 = vmatprep.subr.mxu0 0.0
        %2603 = vmatpush1.msra.mxu0 0.0
        %2604 = vmatprep.subr.mxu0 0.0
        %2605 = vmatpush1.msra.mxu0 0.0
        %2606 = vmatprep.subr.mxu0 0.0
        %2607 = vmatpush1.msra.mxu0 0.0
        %2608 = vmatprep.subr.mxu0 0.0
        %2609 = vmatpush1.msra.mxu0 0.0
        %2610 = vmatprep.subr.mxu0 0.0
        %2611 = vmatpush1.msra.mxu0 0.0
        %2612 = vmatprep.subr.mxu0 0.0
        %2613 = vmatpush1.msra.mxu0 0.0
        %2614 = vmatprep.subr.mxu0 0.0
        %2615 = vmatpush1.msra.mxu0 0.0
        %2616 = vmatprep.subr.mxu0 0.0
        %2617 = vmatpush1.msra.mxu0 0.0
        %2618 = vmatprep.subr.mxu0 0.0
        %2619 = vmatpush1.msra.mxu0 0.0
        %2620 = vmatprep.subr.mxu0 0.0
        %2621 = vmatpush1.msra.mxu0 0.0
        %2622 = vmatprep.subr.mxu0 0.0
        %2623 = vmatpush1.msra.mxu0 0.0
        %2624 = vmatprep.subr.mxu0 0.0
        %2625 = vmatpush1.msra.mxu0 0.0
        %2626 = vmatprep.subr.mxu0 0.0
        %2627 = vmatpush1.msra.mxu0 0.0
        %2628 = vmatprep.subr.mxu0 0.0
        %2629 = vmatpush1.msra.mxu0 0.0
        %2630 = vmatprep.subr.mxu0 0.0
        %2631 = vmatpush1.msra.mxu0 0.0
        %2632 = vmatprep.subr.mxu0 0.0
        %2633 = vmatpush1.msra.mxu0 0.0
        %2634 = vmatprep.subr.mxu0 0.0
        %2635 = vmatpush1.msra.mxu0 0.0
        %2636 = vmatprep.subr.mxu0 0.0
        %2637 = vmatpush1.msra.mxu0 0.0
        %2638 = vmatprep.subr.mxu0 0.0
        %2639 = vmatpush1.msra.mxu0 0.0
        %2640 = vmatprep.subr.mxu0 0.0
        %2641 = vmatpush1.msra.mxu0 0.0
        %2642 = vmatprep.mubr.f32.mxu0 0.0
        %2643 = vmatmul.mubr.f32.gmra.mrb[0].mxu0 %v2576
        %v2644 = vpop.f32.mrb[0].mxu0
        %v2645 = vadd.f32 0.0, %v2644
        %v2646 = vpop.f32.mrb[0].mxu0
        %2647 = vdwg.mxu0
        %s2648 = scalar_lea.vmem [#allocation7], 64
        %v2649 = vld [vmem:[%s2648] sm:$0xf]
        %v2650 = vld [vmem:[%s2648 + $0x4] sm:$0xf]
        %v2651 = vld [vmem:[%s2648 + $0x8] sm:$0xf]
        %v2652 = vld [vmem:[%s2648 + $0xc] sm:$0xf]
        %v2653 = vld [vmem:[%s2648 + $0x10] sm:$0xf]
        %v2654 = vld [vmem:[%s2648 + $0x14] sm:$0xf]
        %v2655 = vld [vmem:[%s2648 + $0x18] sm:$0xf]
        %v2656 = vld [vmem:[%s2648 + $0x1c] sm:$0xf]
        %v2657 = vpack.c.bf16 %v2645, %v2645
        %2658 = vrot.lane.b32.xlu0 %v2440, 64
        %v2659 = vpop.permute.xlu0 %2658
        %2660 = vrot.lane.b32.xlu0 %v2442, 64
        %v2661 = vpop.permute.xlu0 %2660
        %v2662 = vsel %vm880, %v2659, 0
        %v2664 = vsel %vm880, %v2661, 0
        %2666 = vmatprep.subr.mxu0 0.0
        %2667 = vmatpush1.xpose.msra.mxu0 %v2664
        %2668 = vmatprep.subr.mxu0 0.0
        %2669 = vmatpush1.xpose.msra.mxu0 0.0
        %2670 = vmatprep.subr.mxu0 0.0
        %2671 = vmatpush1.xpose.msra.mxu0 0.0
        %2672 = vmatprep.subr.mxu0 0.0
        %2673 = vmatpush1.xpose.msra.mxu0 0.0
        %2674 = vmatprep.subr.mxu0 0.0
        %2675 = vmatpush1.xpose.msra.mxu0 0.0
        %2676 = vmatprep.subr.mxu0 0.0
        %2677 = vmatpush1.xpose.msra.mxu0 0.0
        %2678 = vmatprep.subr.mxu0 0.0
        %2679 = vmatpush1.xpose.msra.mxu0 0.0
        %2680 = vmatprep.subr.mxu0 0.0
        %2681 = vmatpush1.xpose.msra.mxu0 0.0
        %2682 = vmatprep.subr.mxu0 0.0
        %2683 = vmatpush1.xpose.msra.mxu0 0.0
        %2684 = vmatprep.subr.mxu0 0.0
        %2685 = vmatpush1.xpose.msra.mxu0 0.0
        %2686 = vmatprep.subr.mxu0 0.0
        %2687 = vmatpush1.xpose.msra.mxu0 0.0
        %2688 = vmatprep.subr.mxu0 0.0
        %2689 = vmatpush1.xpose.msra.mxu0 0.0
        %2690 = vmatprep.subr.mxu0 0.0
        %2691 = vmatpush1.xpose.msra.mxu0 0.0
        %2692 = vmatprep.subr.mxu0 0.0
        %2693 = vmatpush1.xpose.msra.mxu0 0.0
        %2694 = vmatprep.subr.mxu0 0.0
        %2695 = vmatpush1.xpose.msra.mxu0 0.0
        %2696 = vmatprep.subr.mxu0 0.0
        %2697 = vmatpush1.xpose.msra.mxu0 0.0
        %2698 = vmatprep.subr.mxu0 0.0
        %2699 = vmatpush1.xpose.msra.mxu0 0.0
        %2700 = vmatprep.subr.mxu0 0.0
        %2701 = vmatpush1.xpose.msra.mxu0 0.0
        %2702 = vmatprep.subr.mxu0 0.0
        %2703 = vmatpush1.xpose.msra.mxu0 0.0
        %2704 = vmatprep.subr.mxu0 0.0
        %2705 = vmatpush1.xpose.msra.mxu0 0.0
        %2706 = vmatprep.subr.mxu0 0.0
        %2707 = vmatpush1.xpose.msra.mxu0 0.0
        %2708 = vmatprep.subr.mxu0 0.0
        %2709 = vmatpush1.xpose.msra.mxu0 0.0
        %2710 = vmatprep.subr.mxu0 0.0
        %2711 = vmatpush1.xpose.msra.mxu0 0.0
        %2712 = vmatprep.subr.mxu0 0.0
        %2713 = vmatpush1.xpose.msra.mxu0 0.0
        %2714 = vmatprep.subr.mxu0 0.0
        %2715 = vmatpush1.xpose.msra.mxu0 0.0
        %2716 = vmatprep.subr.mxu0 0.0
        %2717 = vmatpush1.xpose.msra.mxu0 0.0
        %2718 = vmatprep.subr.mxu0 0.0
        %2719 = vmatpush1.xpose.msra.mxu0 0.0
        %2720 = vmatprep.subr.mxu0 0.0
        %2721 = vmatpush1.xpose.msra.mxu0 0.0
        %2722 = vmatprep.subr.mxu0 0.0
        %2723 = vmatpush1.xpose.msra.mxu0 0.0
        %2724 = vmatprep.subr.mxu0 0.0
        %2725 = vmatpush1.xpose.msra.mxu0 0.0
        %2726 = vmatprep.subr.mxu0 0.0
        %2727 = vmatpush1.xpose.msra.mxu0 0.0
        %2728 = vmatprep.subr.mxu0 0.0
        %2729 = vmatpush1.xpose.msra.mxu0 0.0
        %2730 = vmatprep.mubr.f32.mxu0 0.0
        %2731 = vmatmul.mubr.f32.gmra.mrb[0].mxu0 %v2662
        %v2732 = vpop.f32.mrb[0].mxu0
        %v2733 = vadd.f32 0.0, %v2732
        %v2734 = vpop.f32.mrb[0].mxu0
        %2735 = vdwg.mxu0
        %v2736 = vmul.f32 %v2733, 0.125
        %v2737 = vadd.f32 %v2736, %v1408
        %v2738 = vsel %vm961, %v2737, -inf
        %2739 = vmax.xlane.f32.xlu0 %v2738
        %v2740 = vpop.xlane.xlu0 %2739
        %v2741 = vsub.f32 %v2737, %v2740
        %v2742 = vmul.f32 %v2741, 1.442695
        %v2743 = vpow.pop %v2742
        %v2744 = vsel %vm961, %v2743, 0.0
        %2745 = vadd.xlane.f32.xlu0 %v2744
        %v2746 = vpop.xlane.xlu0 %2745
        %v2747 = vrcp.pop %v2746
        %v2748 = vmul.f32 %v2743, %v2747
        %2750 = vrot.lane.b32.xlu0 %v2481, 64
        %v2751 = vpop.permute.xlu0 %2750
        %v2754 = vsel %vm961, %v2748, 0
        %2756 = vmatprep.subr.mxu0 0.0
        %2757 = vmatpush1.msra.mxu0 %v2751
        %2758 = vmatprep.subr.mxu0 0.0
        %2759 = vmatpush1.msra.mxu0 0.0
        %2760 = vmatprep.subr.mxu0 0.0
        %2761 = vmatpush1.msra.mxu0 0.0
        %2762 = vmatprep.subr.mxu0 0.0
        %2763 = vmatpush1.msra.mxu0 0.0
        %2764 = vmatprep.subr.mxu0 0.0
        %2765 = vmatpush1.msra.mxu0 0.0
        %2766 = vmatprep.subr.mxu0 0.0
        %2767 = vmatpush1.msra.mxu0 0.0
        %2768 = vmatprep.subr.mxu0 0.0
        %2769 = vmatpush1.msra.mxu0 0.0
        %2770 = vmatprep.subr.mxu0 0.0
        %2771 = vmatpush1.msra.mxu0 0.0
        %2772 = vmatprep.subr.mxu0 0.0
        %2773 = vmatpush1.msra.mxu0 0.0
        %2774 = vmatprep.subr.mxu0 0.0
        %2775 = vmatpush1.msra.mxu0 0.0
        %2776 = vmatprep.subr.mxu0 0.0
        %2777 = vmatpush1.msra.mxu0 0.0
        %2778 = vmatprep.subr.mxu0 0.0
        %2779 = vmatpush1.msra.mxu0 0.0
        %2780 = vmatprep.subr.mxu0 0.0
        %2781 = vmatpush1.msra.mxu0 0.0
        %2782 = vmatprep.subr.mxu0 0.0
        %2783 = vmatpush1.msra.mxu0 0.0
        %2784 = vmatprep.subr.mxu0 0.0
        %2785 = vmatpush1.msra.mxu0 0.0
        %2786 = vmatprep.subr.mxu0 0.0
        %2787 = vmatpush1.msra.mxu0 0.0
        %2788 = vmatprep.subr.mxu0 0.0
        %2789 = vmatpush1.msra.mxu0 0.0
        %2790 = vmatprep.subr.mxu0 0.0
        %2791 = vmatpush1.msra.mxu0 0.0
        %2792 = vmatprep.subr.mxu0 0.0
        %2793 = vmatpush1.msra.mxu0 0.0
        %2794 = vmatprep.subr.mxu0 0.0
        %2795 = vmatpush1.msra.mxu0 0.0
        %2796 = vmatprep.subr.mxu0 0.0
        %2797 = vmatpush1.msra.mxu0 0.0
        %2798 = vmatprep.subr.mxu0 0.0
        %2799 = vmatpush1.msra.mxu0 0.0
        %2800 = vmatprep.subr.mxu0 0.0
        %2801 = vmatpush1.msra.mxu0 0.0
        %2802 = vmatprep.subr.mxu0 0.0
        %2803 = vmatpush1.msra.mxu0 0.0
        %2804 = vmatprep.subr.mxu0 0.0
        %2805 = vmatpush1.msra.mxu0 0.0
        %2806 = vmatprep.subr.mxu0 0.0
        %2807 = vmatpush1.msra.mxu0 0.0
        %2808 = vmatprep.subr.mxu0 0.0
        %2809 = vmatpush1.msra.mxu0 0.0
        %2810 = vmatprep.subr.mxu0 0.0
        %2811 = vmatpush1.msra.mxu0 0.0
        %2812 = vmatprep.subr.mxu0 0.0
        %2813 = vmatpush1.msra.mxu0 0.0
        %2814 = vmatprep.subr.mxu0 0.0
        %2815 = vmatpush1.msra.mxu0 0.0
        %2816 = vmatprep.subr.mxu0 0.0
        %2817 = vmatpush1.msra.mxu0 0.0
        %2818 = vmatprep.subr.mxu0 0.0
        %2819 = vmatpush1.msra.mxu0 0.0
        %2820 = vmatprep.mubr.f32.mxu0 0.0
        %2821 = vmatmul.mubr.f32.gmra.mrb[0].mxu0 %v2754
        %v2822 = vpop.f32.mrb[0].mxu0
        %v2823 = vadd.f32 0.0, %v2822
        %v2824 = vpop.f32.mrb[0].mxu0
        %2825 = vdwg.mxu0
        %s2826 = scalar_lea.vmem [#allocation7], 96
        %v2827 = vld [vmem:[%s2826] sm:$0xf]
        %v2828 = vld [vmem:[%s2826 + $0x4] sm:$0xf]
        %v2829 = vld [vmem:[%s2826 + $0x8] sm:$0xf]
        %v2830 = vld [vmem:[%s2826 + $0xc] sm:$0xf]
        %v2831 = vld [vmem:[%s2826 + $0x10] sm:$0xf]
        %v2832 = vld [vmem:[%s2826 + $0x14] sm:$0xf]
        %v2833 = vld [vmem:[%s2826 + $0x18] sm:$0xf]
        %v2834 = vld [vmem:[%s2826 + $0x1c] sm:$0xf]
        %v2835 = vpack.c.bf16 %v2823, %v2823
        %v2844 = vunpack.c.l.b16 %v2827
        %v2845 = vunpack.c.l.b16 %v2828
        %v2846 = vunpack.c.l.b16 %v2829
        %v2847 = vunpack.c.l.b16 %v2830
        %v2848 = vunpack.c.l.b16 %v2831
        %v2849 = vunpack.c.l.b16 %v2832
        %v2850 = vunpack.c.l.b16 %v2833
        %v2851 = vunpack.c.l.b16 %v2834
        %v2852 = vpack.c.b16 %v2845, %v2844
        %v2853 = vpack.c.b16 %v2847, %v2846
        %v2854 = vpack.c.b16 %v2849, %v2848
        %v2855 = vpack.c.b16 %v2851, %v2850
        %v2861 = vsel %vm880, %v2835, 0
        %2863 = vmatprep.subr.bf16.mxu0 0
        %2864 = vmatpush1.bf16.msra.mxu0 %v2852
        %2865 = vmatprep.subr.bf16.mxu0 0
        %2866 = vmatpush1.bf16.msra.mxu0 %v2853
        %2867 = vmatprep.subr.bf16.mxu0 0
        %2868 = vmatpush1.bf16.msra.mxu0 %v2854
        %2869 = vmatprep.subr.bf16.mxu0 0
        %2870 = vmatpush1.bf16.msra.mxu0 %v2855
        %2871 = vmatprep.subr.bf16.mxu0 0
        %2872 = vmatpush1.bf16.msra.mxu0 0
        %2873 = vmatprep.subr.bf16.mxu0 0
        %2874 = vmatpush1.bf16.msra.mxu0 0
        %2875 = vmatprep.subr.bf16.mxu0 0
        %2876 = vmatpush1.bf16.msra.mxu0 0
        %2877 = vmatprep.subr.bf16.mxu0 0
        %2878 = vmatpush1.bf16.msra.mxu0 0
        %2879 = vmatprep.subr.bf16.mxu0 0
        %2880 = vmatpush1.bf16.msra.mxu0 0
        %2881 = vmatprep.subr.bf16.mxu0 0
        %2882 = vmatpush1.bf16.msra.mxu0 0
        %2883 = vmatprep.subr.bf16.mxu0 0
        %2884 = vmatpush1.bf16.msra.mxu0 0
        %2885 = vmatprep.subr.bf16.mxu0 0
        %2886 = vmatpush1.bf16.msra.mxu0 0
        %2887 = vmatprep.subr.bf16.mxu0 0
        %2888 = vmatpush1.bf16.msra.mxu0 0
        %2889 = vmatprep.subr.bf16.mxu0 0
        %2890 = vmatpush1.bf16.msra.mxu0 0
        %2891 = vmatprep.subr.bf16.mxu0 0
        %2892 = vmatpush1.bf16.msra.mxu0 0
        %2893 = vmatprep.subr.bf16.mxu0 0
        %2894 = vmatpush1.bf16.msra.mxu0 0
        %2895 = vmatprep.mubr.bf16.mxu0 0
        %2896 = vmatmul.mubr.bf16.gmra.mrb[0].mxu0 %v2861
        %v2897 = vpop.f32.mrb[0].mxu0
        %v2898 = vadd.f32 0.0, %v2897
        %v2899 = vpop.f32.mrb[0].mxu0
        %v2900 = vpop.f32.mrb[0].mxu0
        %v2901 = vpop.f32.mrb[0].mxu0
        %2902 = vdwg.mxu0
        %v2911 = vunpack.c.l.b16 %v2649
        %v2912 = vunpack.c.l.b16 %v2650
        %v2913 = vunpack.c.l.b16 %v2651
        %v2914 = vunpack.c.l.b16 %v2652
        %v2915 = vunpack.c.l.b16 %v2653
        %v2916 = vunpack.c.l.b16 %v2654
        %v2917 = vunpack.c.l.b16 %v2655
        %v2918 = vunpack.c.l.b16 %v2656
        %v2919 = vpack.c.b16 %v2912, %v2911
        %v2920 = vpack.c.b16 %v2914, %v2913
        %v2921 = vpack.c.b16 %v2916, %v2915
        %v2922 = vpack.c.b16 %v2918, %v2917
        %v2928 = vsel %vm880, %v2657, 0
        %2930 = vmatprep.subr.bf16.mxu0 0
        %2931 = vmatpush1.bf16.msra.mxu0 %v2919
        %2932 = vmatprep.subr.bf16.mxu0 0
        %2933 = vmatpush1.bf16.msra.mxu0 %v2920
        %2934 = vmatprep.subr.bf16.mxu0 0
        %2935 = vmatpush1.bf16.msra.mxu0 %v2921
        %2936 = vmatprep.subr.bf16.mxu0 0
        %2937 = vmatpush1.bf16.msra.mxu0 %v2922
        %2938 = vmatprep.subr.bf16.mxu0 0
        %2939 = vmatpush1.bf16.msra.mxu0 0
        %2940 = vmatprep.subr.bf16.mxu0 0
        %2941 = vmatpush1.bf16.msra.mxu0 0
        %2942 = vmatprep.subr.bf16.mxu0 0
        %2943 = vmatpush1.bf16.msra.mxu0 0
        %2944 = vmatprep.subr.bf16.mxu0 0
        %2945 = vmatpush1.bf16.msra.mxu0 0
        %2946 = vmatprep.subr.bf16.mxu0 0
        %2947 = vmatpush1.bf16.msra.mxu0 0
        %2948 = vmatprep.subr.bf16.mxu0 0
        %2949 = vmatpush1.bf16.msra.mxu0 0
        %2950 = vmatprep.subr.bf16.mxu0 0
        %2951 = vmatpush1.bf16.msra.mxu0 0
        %2952 = vmatprep.subr.bf16.mxu0 0
        %2953 = vmatpush1.bf16.msra.mxu0 0
        %2954 = vmatprep.subr.bf16.mxu0 0
        %2955 = vmatpush1.bf16.msra.mxu0 0
        %2956 = vmatprep.subr.bf16.mxu0 0
        %2957 = vmatpush1.bf16.msra.mxu0 0
        %2958 = vmatprep.subr.bf16.mxu0 0
        %2959 = vmatpush1.bf16.msra.mxu0 0
        %2960 = vmatprep.subr.bf16.mxu0 0
        %2961 = vmatpush1.bf16.msra.mxu0 0
        %2962 = vmatprep.mubr.bf16.mxu0 0
        %2963 = vmatmul.mubr.bf16.gmra.mrb[0].mxu0 %v2928
        %v2964 = vpop.f32.mrb[0].mxu0
        %v2965 = vadd.f32 %v2898, %v2964
        %v2966 = vpop.f32.mrb[0].mxu0
        %v2967 = vpop.f32.mrb[0].mxu0
        %v2968 = vpop.f32.mrb[0].mxu0
        %2969 = vdwg.mxu0
        %s2970 = scalar_lea.vmem %s11, 1
        %v2971 = vld [vmem:[%s2970] sm:$0x1]
        %v2973 = vlaneseq
        %v2974 = vshrl.u32 %v2973, 7
        %v2975 = vsub.s32 0, %v2974
        %v2976 = vrot.slane %v2971, %v2975
        %v2978 = vadd.f32 %v2965, %v2976
        %v2979 = vadd.f32 %v2224, %v2978
        %s2980 = scalar_lea.vmem %s12, 1
        %v2981 = vld [vmem:[%s2980] sm:$0x1]
        %s2982 = scalar_lea.vmem %s13, 1
        %v2983 = vld [vmem:[%s2982] sm:$0x1]
        %2984 = vadd.xlane.f32.xlu0 %v2979
        %v2985 = vpop.xlane.xlu0 %2984
        %v2986 = vmul.f32 %v2985, %v1040
        %v2987 = vsub.f32 %v2979, %v2986
        %v2988 = vmul.f32 %v2987, %v2987
        %2989 = vadd.xlane.f32.xlu0 %v2988
        %v2990 = vpop.xlane.xlu0 %2989
        %v2991 = vmul.f32 %v2990, %v1040
        %v2992 = vadd.f32 %v2991, 1e-12
        %v2993 = vrsqrt.pop %v2992
        %v2994 = vmul.f32 %v2987, %v2993
        %v2996 = vlaneseq
        %v2997 = vshrl.u32 %v2996, 7
        %v2998 = vsub.s32 0, %v2997
        %v2999 = vrot.slane %v2981, %v2998
        %v3001 = vmul.f32 %v2994, %v2999
        %v3003 = vlaneseq
        %v3004 = vshrl.u32 %v3003, 7
        %v3005 = vsub.s32 0, %v3004
        %v3006 = vrot.slane %v2983, %v3005
        %v3008 = vadd.f32 %v3001, %v3006
        %s3009 = scalar_lea.vmem [#allocation8], 128
        %v3010 = vld [vmem:[%s3009] sm:$0xff]
        %v3011 = vld [vmem:[%s3009 + $0x8] sm:$0xff]
        %v3012 = vld [vmem:[%s3009 + $0x10] sm:$0xff]
        %v3013 = vld [vmem:[%s3009 + $0x18] sm:$0xff]
        %v3014 = vld [vmem:[%s3009 + $0x20] sm:$0xff]
        %v3015 = vld [vmem:[%s3009 + $0x28] sm:$0xff]
        %v3016 = vld [vmem:[%s3009 + $0x30] sm:$0xff]
        %v3017 = vld [vmem:[%s3009 + $0x38] sm:$0xff]
        %v3018 = vld [vmem:[%s3009 + $0x40] sm:$0xff]
        %v3019 = vld [vmem:[%s3009 + $0x48] sm:$0xff]
        %v3020 = vld [vmem:[%s3009 + $0x50] sm:$0xff]
        %v3021 = vld [vmem:[%s3009 + $0x58] sm:$0xff]
        %v3022 = vld [vmem:[%s3009 + $0x60] sm:$0xff]
        %v3023 = vld [vmem:[%s3009 + $0x68] sm:$0xff]
        %v3024 = vld [vmem:[%s3009 + $0x70] sm:$0xff]
        %v3025 = vld [vmem:[%s3009 + $0x78] sm:$0xff]
        %v3026 = vpack.c.bf16 %v3008, %v3008
        %s3027 = scalar_lea.vmem %s15, 2
        %v3028 = vld [vmem:[%s3027] sm:$0x3]
        %v3030 = vlaneseq
        %v3031 = vshrl.u32 %v3030, 7
        %v3032 = vsub.s32 0, %v3031
        %v3033 = vrot.slane %v3028, %v3032
        %v3034 = vlaneseq
        %v3035 = vshrl.u32 %v3034, 7
        %v3036 = vsub.s32 1, %v3035
        %v3037 = vrot.slane %v3028, %v3036
        %v3056 = vunpack.c.l.b16 %v3010
        %v3057 = vunpack.c.h.b16 %v3010
        %v3058 = vunpack.c.l.b16 %v3011
        %v3059 = vunpack.c.h.b16 %v3011
        %v3060 = vunpack.c.l.b16 %v3012
        %v3061 = vunpack.c.h.b16 %v3012
        %v3062 = vunpack.c.l.b16 %v3013
        %v3063 = vunpack.c.h.b16 %v3013
        %v3064 = vunpack.c.l.b16 %v3014
        %v3065 = vunpack.c.h.b16 %v3014
        %v3066 = vunpack.c.l.b16 %v3015
        %v3067 = vunpack.c.h.b16 %v3015
        %v3068 = vunpack.c.l.b16 %v3016
        %v3069 = vunpack.c.h.b16 %v3016
        %v3070 = vunpack.c.l.b16 %v3017
        %v3071 = vunpack.c.h.b16 %v3017
        %v3072 = vunpack.c.l.b16 %v3018
        %v3073 = vunpack.c.h.b16 %v3018
        %v3074 = vunpack.c.l.b16 %v3019
        %v3075 = vunpack.c.h.b16 %v3019
        %v3076 = vunpack.c.l.b16 %v3020
        %v3077 = vunpack.c.h.b16 %v3020
        %v3078 = vunpack.c.l.b16 %v3021
        %v3079 = vunpack.c.h.b16 %v3021
        %v3080 = vunpack.c.l.b16 %v3022
        %v3081 = vunpack.c.h.b16 %v3022
        %v3082 = vunpack.c.l.b16 %v3023
        %v3083 = vunpack.c.h.b16 %v3023
        %v3084 = vunpack.c.l.b16 %v3024
        %v3085 = vunpack.c.h.b16 %v3024
        %v3086 = vunpack.c.l.b16 %v3025
        %v3087 = vunpack.c.h.b16 %v3025
        %v3088 = vpack.c.b16 %v3058, %v3056
        %v3089 = vpack.c.b16 %v3059, %v3057
        %v3090 = vpack.c.b16 %v3062, %v3060
        %v3091 = vpack.c.b16 %v3063, %v3061
        %v3092 = vpack.c.b16 %v3066, %v3064
        %v3093 = vpack.c.b16 %v3067, %v3065
        %v3094 = vpack.c.b16 %v3070, %v3068
        %v3095 = vpack.c.b16 %v3071, %v3069
        %v3096 = vpack.c.b16 %v3074, %v3072
        %v3097 = vpack.c.b16 %v3075, %v3073
        %v3098 = vpack.c.b16 %v3078, %v3076
        %v3099 = vpack.c.b16 %v3079, %v3077
        %v3100 = vpack.c.b16 %v3082, %v3080
        %v3101 = vpack.c.b16 %v3083, %v3081
        %v3102 = vpack.c.b16 %v3086, %v3084
        %v3103 = vpack.c.b16 %v3087, %v3085
        %3120 = vmatprep.subr.bf16.mxu0 %v3089
        %3121 = vmatpush1.bf16.msra.mxu0 %v3088
        %3122 = vmatprep.subr.bf16.mxu0 %v3091
        %3123 = vmatpush1.bf16.msra.mxu0 %v3090
        %3124 = vmatprep.subr.bf16.mxu0 %v3093
        %3125 = vmatpush1.bf16.msra.mxu0 %v3092
        %3126 = vmatprep.subr.bf16.mxu0 %v3095
        %3127 = vmatpush1.bf16.msra.mxu0 %v3094
        %3128 = vmatprep.subr.bf16.mxu0 %v3097
        %3129 = vmatpush1.bf16.msra.mxu0 %v3096
        %3130 = vmatprep.subr.bf16.mxu0 %v3099
        %3131 = vmatpush1.bf16.msra.mxu0 %v3098
        %3132 = vmatprep.subr.bf16.mxu0 %v3101
        %3133 = vmatpush1.bf16.msra.mxu0 %v3100
        %3134 = vmatprep.subr.bf16.mxu0 %v3103
        %3135 = vmatpush1.bf16.msra.mxu0 %v3102
        %3136 = vmatprep.subr.bf16.mxu0 0
        %3137 = vmatpush1.bf16.msra.mxu0 0
        %3138 = vmatprep.subr.bf16.mxu0 0
        %3139 = vmatpush1.bf16.msra.mxu0 0
        %3140 = vmatprep.subr.bf16.mxu0 0
        %3141 = vmatpush1.bf16.msra.mxu0 0
        %3142 = vmatprep.subr.bf16.mxu0 0
        %3143 = vmatpush1.bf16.msra.mxu0 0
        %3144 = vmatprep.subr.bf16.mxu0 0
        %3145 = vmatpush1.bf16.msra.mxu0 0
        %3146 = vmatprep.subr.bf16.mxu0 0
        %3147 = vmatpush1.bf16.msra.mxu0 0
        %3148 = vmatprep.subr.bf16.mxu0 0
        %3149 = vmatpush1.bf16.msra.mxu0 0
        %3150 = vmatprep.subr.bf16.mxu0 0
        %3151 = vmatpush1.bf16.msra.mxu0 0
        %3152 = vmatprep.mubr.bf16.mxu0 0
        %3153 = vmatmul.mubr.bf16.gmra.mrb[0].mxu0 %v3026
        %v3154 = vpop.f32.mrb[0].mxu0
        %v3155 = vadd.f32 %v3033, %v3154
        %v3156 = vpop.f32.mrb[0].mxu0
        %v3157 = vadd.f32 %v3037, %v3156
        %v3158 = vpop.f32.mrb[0].mxu0
        %v3159 = vpop.f32.mrb[0].mxu0
        %3160 = vdwg.mxu0
        %v3161 = vmul.f32 %v3155, %v3155
        %v3162 = vmul.f32 %v3157, %v3157
        %v3163 = vmul.f32 %v3155, %v3161
        %v3164 = vmul.f32 %v3157, %v3162
        %v3165 = vmul.f32 %v3163, 0.044715
        %v3166 = vmul.f32 %v3164, 0.044715
        %v3167 = vadd.f32 %v3155, %v3165
        %v3168 = vadd.f32 %v3157, %v3166
        %v3169 = vmul.f32 %v3167, 0.7978846
        %v3170 = vmul.f32 %v3168, 0.7978846
        %v3171 = vtanh.pop %v3169
        %v3172 = vtanh.pop %v3170
        %v3173 = vadd.f32 %v3171, 1.0
        %v3174 = vadd.f32 %v3172, 1.0
        %v3175 = vmul.f32 %v3173, 0.5
        %v3176 = vmul.f32 %v3174, 0.5
        %v3177 = vmul.f32 %v3155, %v3175
        %v3178 = vmul.f32 %v3157, %v3176
        %s3179 = scalar_lea.vmem [#allocation10], 128
        %v3180 = vld [vmem:[%s3179] sm:$0xf]
        %v3181 = vld [vmem:[%s3179 + $0x4] sm:$0xf]
        %v3182 = vld [vmem:[%s3179 + $0x8] sm:$0xf]
        %v3183 = vld [vmem:[%s3179 + $0xc] sm:$0xf]
        %v3184 = vld [vmem:[%s3179 + $0x10] sm:$0xf]
        %v3185 = vld [vmem:[%s3179 + $0x14] sm:$0xf]
        %v3186 = vld [vmem:[%s3179 + $0x18] sm:$0xf]
        %v3187 = vld [vmem:[%s3179 + $0x1c] sm:$0xf]
        %v3188 = vld [vmem:[%s3179 + $0x20] sm:$0xf]
        %v3189 = vld [vmem:[%s3179 + $0x24] sm:$0xf]
        %v3190 = vld [vmem:[%s3179 + $0x28] sm:$0xf]
        %v3191 = vld [vmem:[%s3179 + $0x2c] sm:$0xf]
        %v3192 = vld [vmem:[%s3179 + $0x30] sm:$0xf]
        %v3193 = vld [vmem:[%s3179 + $0x34] sm:$0xf]
        %v3194 = vld [vmem:[%s3179 + $0x38] sm:$0xf]
        %v3195 = vld [vmem:[%s3179 + $0x3c] sm:$0xf]
        %v3196 = vld [vmem:[%s3179 + $0x40] sm:$0xf]
        %v3197 = vld [vmem:[%s3179 + $0x44] sm:$0xf]
        %v3198 = vld [vmem:[%s3179 + $0x48] sm:$0xf]
        %v3199 = vld [vmem:[%s3179 + $0x4c] sm:$0xf]
        %v3200 = vld [vmem:[%s3179 + $0x50] sm:$0xf]
        %v3201 = vld [vmem:[%s3179 + $0x54] sm:$0xf]
        %v3202 = vld [vmem:[%s3179 + $0x58] sm:$0xf]
        %v3203 = vld [vmem:[%s3179 + $0x5c] sm:$0xf]
        %v3204 = vld [vmem:[%s3179 + $0x60] sm:$0xf]
        %v3205 = vld [vmem:[%s3179 + $0x64] sm:$0xf]
        %v3206 = vld [vmem:[%s3179 + $0x68] sm:$0xf]
        %v3207 = vld [vmem:[%s3179 + $0x6c] sm:$0xf]
        %v3208 = vld [vmem:[%s3179 + $0x70] sm:$0xf]
        %v3209 = vld [vmem:[%s3179 + $0x74] sm:$0xf]
        %v3210 = vld [vmem:[%s3179 + $0x78] sm:$0xf]
        %v3211 = vld [vmem:[%s3179 + $0x7c] sm:$0xf]
        %v3212 = vpack.c.bf16 %v3177, %v3177
        %v3213 = vpack.c.bf16 %v3178, %v3178
        %s3214 = scalar_lea.vmem %s17, 1
        %v3215 = vld [vmem:[%s3214] sm:$0x1]
        %v3217 = vlaneseq
        %v3218 = vshrl.u32 %v3217, 7
        %v3219 = vsub.s32 0, %v3218
        %v3220 = vrot.slane %v3215, %v3219
        %v3254 = vunpack.c.l.b16 %v3180
        %v3255 = vunpack.c.l.b16 %v3181
        %v3256 = vunpack.c.l.b16 %v3182
        %v3257 = vunpack.c.l.b16 %v3183
        %v3258 = vunpack.c.l.b16 %v3184
        %v3259 = vunpack.c.l.b16 %v3185
        %v3260 = vunpack.c.l.b16 %v3186
        %v3261 = vunpack.c.l.b16 %v3187
        %v3262 = vunpack.c.l.b16 %v3188
        %v3263 = vunpack.c.l.b16 %v3189
        %v3264 = vunpack.c.l.b16 %v3190
        %v3265 = vunpack.c.l.b16 %v3191
        %v3266 = vunpack.c.l.b16 %v3192
        %v3267 = vunpack.c.l.b16 %v3193
        %v3268 = vunpack.c.l.b16 %v3194
        %v3269 = vunpack.c.l.b16 %v3195
        %v3270 = vunpack.c.l.b16 %v3196
        %v3271 = vunpack.c.l.b16 %v3197
        %v3272 = vunpack.c.l.b16 %v3198
        %v3273 = vunpack.c.l.b16 %v3199
        %v3274 = vunpack.c.l.b16 %v3200
        %v3275 = vunpack.c.l.b16 %v3201
        %v3276 = vunpack.c.l.b16 %v3202
        %v3277 = vunpack.c.l.b16 %v3203
        %v3278 = vunpack.c.l.b16 %v3204
        %v3279 = vunpack.c.l.b16 %v3205
        %v3280 = vunpack.c.l.b16 %v3206
        %v3281 = vunpack.c.l.b16 %v3207
        %v3282 = vunpack.c.l.b16 %v3208
        %v3283 = vunpack.c.l.b16 %v3209
        %v3284 = vunpack.c.l.b16 %v3210
        %v3285 = vunpack.c.l.b16 %v3211
        %v3286 = vpack.c.b16 %v3255, %v3254
        %v3287 = vpack.c.b16 %v3257, %v3256
        %v3288 = vpack.c.b16 %v3259, %v3258
        %v3289 = vpack.c.b16 %v3261, %v3260
        %v3290 = vpack.c.b16 %v3263, %v3262
        %v3291 = vpack.c.b16 %v3265, %v3264
        %v3292 = vpack.c.b16 %v3267, %v3266
        %v3293 = vpack.c.b16 %v3269, %v3268
        %v3294 = vpack.c.b16 %v3271, %v3270
        %v3295 = vpack.c.b16 %v3273, %v3272
        %v3296 = vpack.c.b16 %v3275, %v3274
        %v3297 = vpack.c.b16 %v3277, %v3276
        %v3298 = vpack.c.b16 %v3279, %v3278
        %v3299 = vpack.c.b16 %v3281, %v3280
        %v3300 = vpack.c.b16 %v3283, %v3282
        %v3301 = vpack.c.b16 %v3285, %v3284
        %3318 = vmatprep.subr.bf16.mxu0 0
        %3319 = vmatpush1.bf16.msra.mxu0 %v3286
        %3320 = vmatprep.subr.bf16.mxu0 0
        %3321 = vmatpush1.bf16.msra.mxu0 %v3287
        %3322 = vmatprep.subr.bf16.mxu0 0
        %3323 = vmatpush1.bf16.msra.mxu0 %v3288
        %3324 = vmatprep.subr.bf16.mxu0 0
        %3325 = vmatpush1.bf16.msra.mxu0 %v3289
        %3326 = vmatprep.subr.bf16.mxu0 0
        %3327 = vmatpush1.bf16.msra.mxu0 %v3290
        %3328 = vmatprep.subr.bf16.mxu0 0
        %3329 = vmatpush1.bf16.msra.mxu0 %v3291
        %3330 = vmatprep.subr.bf16.mxu0 0
        %3331 = vmatpush1.bf16.msra.mxu0 %v3292
        %3332 = vmatprep.subr.bf16.mxu0 0
        %3333 = vmatpush1.bf16.msra.mxu0 %v3293
        %3334 = vmatprep.subr.bf16.mxu0 0
        %3335 = vmatpush1.bf16.msra.mxu0 %v3294
        %3336 = vmatprep.subr.bf16.mxu0 0
        %3337 = vmatpush1.bf16.msra.mxu0 %v3295
        %3338 = vmatprep.subr.bf16.mxu0 0
        %3339 = vmatpush1.bf16.msra.mxu0 %v3296
        %3340 = vmatprep.subr.bf16.mxu0 0
        %3341 = vmatpush1.bf16.msra.mxu0 %v3297
        %3342 = vmatprep.subr.bf16.mxu0 0
        %3343 = vmatpush1.bf16.msra.mxu0 %v3298
        %3344 = vmatprep.subr.bf16.mxu0 0
        %3345 = vmatpush1.bf16.msra.mxu0 %v3299
        %3346 = vmatprep.subr.bf16.mxu0 0
        %3347 = vmatpush1.bf16.msra.mxu0 %v3300
        %3348 = vmatprep.subr.bf16.mxu0 0
        %3349 = vmatpush1.bf16.msra.mxu0 %v3301
        %3350 = vmatprep.mubr.bf16.mxu0 %v3213
        %3351 = vmatmul.mubr.bf16.gmra.mrb[0].mxu0 %v3212
        %v3352 = vpop.f32.mrb[0].mxu0
        %v3353 = vadd.f32 %v3220, %v3352
        %v3354 = vpop.f32.mrb[0].mxu0
        %v3355 = vpop.f32.mrb[0].mxu0
        %v3356 = vpop.f32.mrb[0].mxu0
        %3357 = vdwg.mxu0
        %v3358 = vadd.f32 %v3008, %v3353
        %s3359 = scalar_lea.vmem %s18, 1
        %v3360 = vld [vmem:[%s3359] sm:$0x1]
        %s3361 = scalar_lea.vmem [#allocation11], 1
        %v3362 = vld [vmem:[%s3361] sm:$0x1]
        %3363 = vadd.xlane.f32.xlu0 %v3358
        %v3364 = vpop.xlane.xlu0 %3363
        %v3365 = vmul.f32 %v3364, %v1040
        %v3366 = vsub.f32 %v3358, %v3365
        %v3367 = vmul.f32 %v3366, %v3366
        %3368 = vadd.xlane.f32.xlu0 %v3367
        %v3369 = vpop.xlane.xlu0 %3368
        %v3370 = vmul.f32 %v3369, %v1040
        %v3371 = vadd.f32 %v3370, 1e-12
        %v3372 = vrsqrt.pop %v3371
        %v3373 = vmul.f32 %v3366, %v3372
        %v3375 = vlaneseq
        %v3376 = vshrl.u32 %v3375, 7
        %v3377 = vsub.s32 0, %v3376
        %v3378 = vrot.slane %v3360, %v3377
        %v3380 = vmul.f32 %v3373, %v3378
        %v3382 = vlaneseq
        %v3383 = vshrl.u32 %v3382, 7
        %v3384 = vsub.s32 0, %v3383
        %v3385 = vrot.slane %v3362, %v3384
        %v3387 = vadd.f32 %v3380, %v3385
        %3388 = vst [vmem:[%s842] sm:$0xff] %v3387
        %v3389 = vld [vmem:[#allocation13] sm:$0xf]
        %v3390 = vld [vmem:[#allocation13 + $0x4] sm:$0xf]
        %v3391 = vld [vmem:[#allocation13 + $0x8] sm:$0xf]
        %v3392 = vld [vmem:[#allocation13 + $0xc] sm:$0xf]
        %v3393 = vld [vmem:[#allocation13 + $0x10] sm:$0xf]
        %v3394 = vld [vmem:[#allocation13 + $0x14] sm:$0xf]
        %v3395 = vld [vmem:[#allocation13 + $0x18] sm:$0xf]
        %v3396 = vld [vmem:[#allocation13 + $0x1c] sm:$0xf]
        %v3397 = vld [vmem:[#allocation13 + $0x20] sm:$0xf]
        %v3398 = vld [vmem:[#allocation13 + $0x24] sm:$0xf]
        %v3399 = vld [vmem:[#allocation13 + $0x28] sm:$0xf]
        %v3400 = vld [vmem:[#allocation13 + $0x2c] sm:$0xf]
        %v3401 = vld [vmem:[#allocation13 + $0x30] sm:$0xf]
        %v3402 = vld [vmem:[#allocation13 + $0x34] sm:$0xf]
        %v3403 = vld [vmem:[#allocation13 + $0x38] sm:$0xf]
        %v3404 = vld [vmem:[#allocation13 + $0x3c] sm:$0xf]
        %v3405 = vpack.c.bf16 %v3387, %v3387
        %v3406 = vld [vmem:[#allocation14] sm:$0x1]
        %v3423 = vunpack.c.l.b16 %v3389
        %v3424 = vunpack.c.l.b16 %v3390
        %v3425 = vunpack.c.l.b16 %v3391
        %v3426 = vunpack.c.l.b16 %v3392
        %v3427 = vunpack.c.l.b16 %v3393
        %v3428 = vunpack.c.l.b16 %v3394
        %v3429 = vunpack.c.l.b16 %v3395
        %v3430 = vunpack.c.l.b16 %v3396
        %v3431 = vunpack.c.l.b16 %v3397
        %v3432 = vunpack.c.l.b16 %v3398
        %v3433 = vunpack.c.l.b16 %v3399
        %v3434 = vunpack.c.l.b16 %v3400
        %v3435 = vunpack.c.l.b16 %v3401
        %v3436 = vunpack.c.l.b16 %v3402
        %v3437 = vunpack.c.l.b16 %v3403
        %v3438 = vunpack.c.l.b16 %v3404
        %v3439 = vpack.c.b16 %v3424, %v3423
        %v3440 = vpack.c.b16 %v3426, %v3425
        %v3441 = vpack.c.b16 %v3428, %v3427
        %v3442 = vpack.c.b16 %v3430, %v3429
        %v3443 = vpack.c.b16 %v3432, %v3431
        %v3444 = vpack.c.b16 %v3434, %v3433
        %v3445 = vpack.c.b16 %v3436, %v3435
        %v3446 = vpack.c.b16 %v3438, %v3437
        %3455 = vmatprep.subr.bf16.mxu0 0
        %3456 = vmatpush1.bf16.msra.mxu0 %v3439
        %3457 = vmatprep.subr.bf16.mxu0 0
        %3458 = vmatpush1.bf16.msra.mxu0 %v3440
        %3459 = vmatprep.subr.bf16.mxu0 0
        %3460 = vmatpush1.bf16.msra.mxu0 %v3441
        %3461 = vmatprep.subr.bf16.mxu0 0
        %3462 = vmatpush1.bf16.msra.mxu0 %v3442
        %3463 = vmatprep.subr.bf16.mxu0 0
        %3464 = vmatpush1.bf16.msra.mxu0 %v3443
        %3465 = vmatprep.subr.bf16.mxu0 0
        %3466 = vmatpush1.bf16.msra.mxu0 %v3444
        %3467 = vmatprep.subr.bf16.mxu0 0
        %3468 = vmatpush1.bf16.msra.mxu0 %v3445
        %3469 = vmatprep.subr.bf16.mxu0 0
        %3470 = vmatpush1.bf16.msra.mxu0 %v3446
        %3471 = vmatprep.subr.bf16.mxu0 0
        %3472 = vmatpush1.bf16.msra.mxu0 0
        %3473 = vmatprep.subr.bf16.mxu0 0
        %3474 = vmatpush1.bf16.msra.mxu0 0
        %3475 = vmatprep.subr.bf16.mxu0 0
        %3476 = vmatpush1.bf16.msra.mxu0 0
        %3477 = vmatprep.subr.bf16.mxu0 0
        %3478 = vmatpush1.bf16.msra.mxu0 0
        %3479 = vmatprep.subr.bf16.mxu0 0
        %3480 = vmatpush1.bf16.msra.mxu0 0
        %3481 = vmatprep.subr.bf16.mxu0 0
        %3482 = vmatpush1.bf16.msra.mxu0 0
        %3483 = vmatprep.subr.bf16.mxu0 0
        %3484 = vmatpush1.bf16.msra.mxu0 0
        %3485 = vmatprep.subr.bf16.mxu0 0
        %3486 = vmatpush1.bf16.msra.mxu0 0
        %3487 = vmatprep.mubr.bf16.mxu0 0
        %3488 = vmatmul.mubr.bf16.gmra.mrb[0].mxu0 %v3405
        %v3489 = vpop.f32.mrb[0].mxu0
        %v3490 = vadd.f32 %v3406, %v3489
        %v3491 = vpop.f32.mrb[0].mxu0
        %v3492 = vpop.f32.mrb[0].mxu0
        %v3493 = vpop.f32.mrb[0].mxu0
        %3494 = vdwg.mxu0
        %v3495 = vtanh.pop %v3490
        %3496 = vst [vmem:[%s848] sm:$0x1] %v3495
        %s3497 = sand.u32 %s531, 1
        %s3498 = scalar_lea.sflag [#allocation4], %s3497
        %s3499 = sand.u32 %s531, 1
        %s3500 = smul.addr %s3499, 8
        %s3501 = scalar_lea.vmem [#allocation16], %s3500
        %s3502 = sand.u32 %s557, 1
        %s3503 = scalar_lea.sflag [#allocation18], %s3502
        %s3504 = sand.u32 %s557, 1
        %s3505 = scalar_lea.vmem [#allocation17], %s3504
        // Predicated region
        $region141: #{bert_classifier_forward.1} parent=107 // pred_check
          %p3506 = pneg %p541
        $region142: #{bert_classifier_forward.1} parent=107 // pred_check_branch
          %3508 = sbr.rel (%p3506) target = $region144
        $region143: #{bert_classifier_forward.1} parent=107 // pred_region
          %s3510 = ssub.s32 128, 128
          %3511 = vsyncadd %s3498, %s3510
          %s3512 = smul.addr %s46, 128
          %s3513 = scalar_lea.hbm %s22, %s3512
          %s3515 = sshll.u32 %s3501, 4
          %s3516 = int_to_ptr.vmem [resolvable:$true] %s3515
          %3518 = dma.vmem_to_hbm [thread:$0]  %s3516, 128, %s3513, %s3498
        $region144: #{bert_classifier_forward.1} parent=107 // pred_fallthru
          _
        // Predicated region
        $region145: #{bert_classifier_forward.1} parent=107 // pred_check
          %p3519 = pneg %p567
        $region146: #{bert_classifier_forward.1} parent=107 // pred_check_branch
          %3521 = sbr.rel (%p3519) target = $region148
        $region147: #{bert_classifier_forward.1} parent=107 // pred_region
          %s3523 = ssub.s32 16, 16
          %3524 = vsyncadd %s3503, %s3523
          %s3525 = smul.addr %s46, 16
          %s3526 = scalar_lea.hbm %s23, %s3525
          %s3528 = sshll.u32 %s3505, 4
          %s3529 = int_to_ptr.vmem [resolvable:$true] %s3528
          %3531 = dma.vmem_to_hbm [thread:$0]  %s3529, 16, %s3526, %s3503
        $region148: #{bert_classifier_forward.1} parent=107 // pred_fallthru
          _
      $region108: #{bert_classifier_forward.1} parent=5 // pred_fallthru
        _
      %p3532 = scmp.le.s32.totalorder 2, %s41
      // Predicated region
      $region149: #{bert_classifier_forward.1} parent=5 // pred_check
        %p3533 = pneg %p3532
      $region150: #{bert_classifier_forward.1} parent=5 // pred_check_branch
        %3535 = sbr.rel (%p3533) target = $region152
      $region151: #{bert_classifier_forward.1} parent=5 // pred_region
        %s3536 = ssub.s32 %s41, 2
        // Predicated region
        $region153: #{bert_classifier_forward.1} parent=151 // pred_check
          %p3537 = pneg %p547
        $region154: #{bert_classifier_forward.1} parent=151 // pred_check_branch
          %3539 = sbr.rel (%p3537) target = $region156
        $region155: #{bert_classifier_forward.1} parent=151 // pred_region
          %s3540 = sand.u32 %s532, 1
          %s3541 = scalar_lea.sflag [#allocation4], %s3540
          %s3542 = sand.u32 %s532, 1
          %s3543 = smul.addr %s3542, 8
          %s3544 = scalar_lea.vmem [#allocation16], %s3543
          %3545 = dma.done %s3541, 128
        $region156: #{bert_classifier_forward.1} parent=151 // pred_fallthru
          _
        // Predicated region
        $region157: #{bert_classifier_forward.1} parent=151 // pred_check
          %p3546 = pneg %p573
        $region158: #{bert_classifier_forward.1} parent=151 // pred_check_branch
          %3548 = sbr.rel (%p3546) target = $region160
        $region159: #{bert_classifier_forward.1} parent=151 // pred_region
          %s3549 = sand.u32 %s558, 1
          %s3550 = scalar_lea.sflag [#allocation18], %s3549
          %s3551 = sand.u32 %s558, 1
          %s3552 = scalar_lea.vmem [#allocation17], %s3551
          %3553 = dma.done %s3550, 16
        $region160: #{bert_classifier_forward.1} parent=151 // pred_fallthru
          _
      $region152: #{bert_classifier_forward.1} parent=5 // pred_fallthru
        _
    $region6: #{bert_classifier_forward.1} parent=1 // loop_footer
      %s45 = sadd.s32 1, %s41
    $region7: #{bert_classifier_forward.1} parent=1 // loop_footer_branch
      %40 = sbr.rel target = $region3
    $region8: #{bert_classifier_forward.1} parent=1 // loop_exit
      _
    %3554 = vsyncpa [#allocation3], 1
    %s3555 = scalar_lea.sflag [#allocation3], 1
    %3556 = vsyncpa %s3555, 1
    %3557 = vsyncpa [#allocation6], 1
    %3558 = vsyncpa [#allocation9], 1
    %3559 = vsyncpa [#allocation12], 1
    %3560 = vsyncpa [#allocation15], 1
    %3561 = vsyncpa [#allocation4], 1
    %s3562 = scalar_lea.sflag [#allocation4], 1
    %3563 = vsyncpa %s3562, 1
    %3564 = vsyncpa [#allocation18], 1
    %s3565 = scalar_lea.sflag [#allocation18], 1
    %3566 = vsyncpa %s3565, 1

</llo_original>
